<compile_context>
chip_gen: v7x
topology: tpu7x:2x2x1
jax: 0.10.0
libtpu: 0.0.40
codegen_flags: <defaults>
</compile_context>

<pallas_src>
import jax
import jax.numpy as jnp
from jax.experimental import pallas as pl
from jax.experimental.pallas import tpu as pltpu

EPS = 1e-5


def _round_up(v, m):
    return (v + m - 1) // m * m


def _vmem_limit(block_bytes, scratch_bytes):
    need = 2 * block_bytes + scratch_bytes + (4 << 20)
    return int(min(100 << 20, max(32 << 20, need)))


def _make_masks(D, H, W):
    """(27, D*H*W) f32 validity masks for the 27 conv taps (flat-shift order)."""
    d = jnp.arange(D).reshape(D, 1, 1)
    h = jnp.arange(H).reshape(1, H, 1)
    w = jnp.arange(W).reshape(1, 1, W)
    rows = []
    for kd in range(3):
        for kh in range(3):
            for kw in range(3):
                m = ((d + kd - 1 >= 0) & (d + kd - 1 < D) &
                     (h + kh - 1 >= 0) & (h + kh - 1 < H) &
                     (w + kw - 1 >= 0) & (w + kw - 1 < W))
                rows.append(m.reshape(-1))
    return jnp.stack(rows).astype(jnp.float32)


# ------------------- fused BN1+ReLU+Conv1 (+ per-n BN2 stats) ----------------

def _conv1_call(xp, scale, shift, w1f, b1, masks, D, H, W):
    """xp:(N,Cp,DHW) f32; scale/shift:(Cp,1); w1f:(Chp,27*Cp) bf16; b1:(Chp,1);
    masks:(27,DHW). Returns c1:(N,Chp,DHW) bf16, stats:(N,Chp,2) f32 (sum,sumsq)."""
    N, Cp, DHW = xp.shape
    Chp, K1 = w1f.shape
    PAD = _round_up(H * W + W + 1, 128)
    WTOT = PAD + DHW + PAD

    def kernel(x_ref, s_ref, t_ref, w_ref, b_ref, m_ref, o_ref, st_ref,
               flat_ref, patch_ref):
        # prologue: BN1 affine + ReLU (f32 VPU), into the flat zero-halo buffer.
        h = jnp.maximum(x_ref[...] * s_ref[...] + t_ref[...], 0.0)
        flat_ref[:, :PAD] = jnp.zeros((Cp, PAD), jnp.float32)
        flat_ref[:, PAD + DHW:] = jnp.zeros((Cp, PAD), jnp.float32)
        flat_ref[:, PAD:PAD + DHW] = h
        # im2col in VMEM: 27 flat-shifted, boundary-masked slabs -> bf16 patch.
        for tap in range(27):
            kd, kh, kw = tap // 9, (tap // 3) % 3, tap % 3
            off = (kd - 1) * H * W + (kh - 1) * W + (kw - 1)
            slab = flat_ref[:, PAD + off:PAD + off + DHW]
            patch_ref[tap * Cp:(tap + 1) * Cp, :] = (
                slab * m_ref[tap:tap + 1, :]).astype(jnp.bfloat16)
        # single fused MXU matmul, lane-dense (Chp, DHW) result kept in vregs.
        out = jnp.dot(w_ref[...], patch_ref[...],
                      preferred_element_type=jnp.float32) + b_ref[...]
        o_ref[...] = out.astype(o_ref.dtype)
        # per-sample BN2 partial statistics (reduced in the wrapper) so the batch
        # grid axis stays megacore-parallel.
        st_ref[:, 0:1] = jnp.sum(out, axis=1, keepdims=True)
        st_ref[:, 1:2] = jnp.sum(out * out, axis=1, keepdims=True)

    block_bytes = (Cp * DHW * 4 + 2 * Cp * 4 + Chp * K1 * 2 + Chp * 4 +
                   27 * DHW * 4 + Chp * DHW * 2 + Chp * 2 * 4)
    scratch_bytes = Cp * WTOT * 4 + K1 * DHW * 2

    return pl.pallas_call(
        kernel,
        grid=(N,),
        out_shape=(jax.ShapeDtypeStruct((N, Chp, DHW), jnp.bfloat16),
                   jax.ShapeDtypeStruct((N, Chp, 2), jnp.float32)),
        in_specs=[
            pl.BlockSpec((None, Cp, DHW), lambda n: (n, 0, 0)),
            pl.BlockSpec((Cp, 1), lambda n: (0, 0)),
            pl.BlockSpec((Cp, 1), lambda n: (0, 0)),
            pl.BlockSpec((Chp, K1), lambda n: (0, 0)),
            pl.BlockSpec((Chp, 1), lambda n: (0, 0)),
            pl.BlockSpec((27, DHW), lambda n: (0, 0)),
        ],
        out_specs=(
            pl.BlockSpec((None, Chp, DHW), lambda n: (n, 0, 0)),
            pl.BlockSpec((None, Chp, 2), lambda n: (n, 0, 0)),
        ),
        scratch_shapes=[
            pltpu.VMEM((Cp, WTOT), jnp.float32),     # flat zero-halo activations
            pltpu.VMEM((K1, DHW), jnp.bfloat16),     # im2col patch matrix
        ],
        compiler_params=pltpu.CompilerParams(
            dimension_semantics=("parallel",),
            vmem_limit_bytes=_vmem_limit(block_bytes, scratch_bytes),
        ),
    )(xp, scale, shift, w1f, b1, masks)


# ------------------- fused BN2+ReLU+Conv2+skip(+bias) ------------------------

def _conv2_call(c1, scale, shift, w2f, bias, masks, xp, D, H, W):
    """c1:(N,Chp,DHW) bf16; scale/shift:(Chp,1); w2f:(Coutp, 27*Chp+Cp) bf16
    (last Cp cols = padded skip weight); bias:(Coutp,1)=b2+bs; xp:(N,Cp,DHW) f32.
    Returns out:(N,Coutp,DHW) f32."""
    N, Chp, DHW = c1.shape
    Cp = xp.shape[1]
    Coutp, K2 = w2f.shape
    K_conv = 27 * Chp
    PAD = _round_up(H * W + W + 1, 128)
    WTOT = PAD + DHW + PAD

    def kernel(c_ref, s_ref, t_ref, w_ref, b_ref, m_ref, x_ref, o_ref,
               flat_ref, patch_ref):
        h = jnp.maximum(
            c_ref[...].astype(jnp.float32) * s_ref[...] + t_ref[...], 0.0)
        flat_ref[:, :PAD] = jnp.zeros((Chp, PAD), jnp.float32)
        flat_ref[:, PAD + DHW:] = jnp.zeros((Chp, PAD), jnp.float32)
        flat_ref[:, PAD:PAD + DHW] = h
        for tap in range(27):
            kd, kh, kw = tap // 9, (tap // 3) % 3, tap % 3
            off = (kd - 1) * H * W + (kh - 1) * W + (kw - 1)
            slab = flat_ref[:, PAD + off:PAD + off + DHW]
            patch_ref[tap * Chp:(tap + 1) * Chp, :] = (
                slab * m_ref[tap:tap + 1, :]).astype(jnp.bfloat16)
        # skip path: raw input appended as extra contraction rows -> one fused dot.
        patch_ref[K_conv:K_conv + Cp, :] = x_ref[...].astype(jnp.bfloat16)
        out = jnp.dot(w_ref[...], patch_ref[...],
                      preferred_element_type=jnp.float32) + b_ref[...]
        o_ref[...] = out

    block_bytes = (Chp * DHW * 2 + 2 * Chp * 4 + Coutp * K2 * 2 + Coutp * 4 +
                   27 * DHW * 4 + Cp * DHW * 4 + Coutp * DHW * 4)
    scratch_bytes = Chp * WTOT * 4 + K2 * DHW * 2

    return pl.pallas_call(
        kernel,
        grid=(N,),
        out_shape=jax.ShapeDtypeStruct((N, Coutp, DHW), jnp.float32),
        in_specs=[
            pl.BlockSpec((None, Chp, DHW), lambda n: (n, 0, 0)),
            pl.BlockSpec((Chp, 1), lambda n: (0, 0)),
            pl.BlockSpec((Chp, 1), lambda n: (0, 0)),
            pl.BlockSpec((Coutp, K2), lambda n: (0, 0)),
            pl.BlockSpec((Coutp, 1), lambda n: (0, 0)),
            pl.BlockSpec((27, DHW), lambda n: (0, 0)),
            pl.BlockSpec((None, Cp, DHW), lambda n: (n, 0, 0)),
        ],
        out_specs=pl.BlockSpec((None, Coutp, DHW), lambda n: (n, 0, 0)),
        scratch_shapes=[
            pltpu.VMEM((Chp, WTOT), jnp.float32),
            pltpu.VMEM((K2, DHW), jnp.bfloat16),
        ],
        compiler_params=pltpu.CompilerParams(
            dimension_semantics=("parallel",),
            vmem_limit_bytes=_vmem_limit(block_bytes, scratch_bytes),
        ),
    )(c1, scale, shift, w2f, bias, masks, xp)


# --------------------------------- forward -----------------------------------

def resblock3d_forward(x, params):
    """x: (N, Cin, D, H, W) NCDHW -> (N, Cout, D, H, W)."""
    N, Cin, D, H, W = x.shape
    Ch = params["w1"].shape[-1]
    Cout = params["w2"].shape[-1]
    DHW = D * H * W
    Cp, Chp, Coutp = _round_up(Cin, 8), _round_up(Ch, 8), _round_up(Cout, 8)

    xf = x.reshape(N, Cin, DHW)

    # BN1 batch statistics (training mode, biased var) - plain jnp, XLA fuses.
    mean1 = jnp.mean(xf, axis=(0, 2))
    var1 = jnp.var(xf, axis=(0, 2))
    scale1 = params["g1"] * jax.lax.rsqrt(var1 + EPS)
    shift1 = params["be1"] - mean1 * scale1

    # channel-pad everything to sublane multiples (pad channels contribute 0).
    xp = jnp.pad(xf, ((0, 0), (0, Cp - Cin), (0, 0)))
    scale1p = jnp.pad(scale1, (0, Cp - Cin)).reshape(Cp, 1)
    shift1p = jnp.pad(shift1, (0, Cp - Cin)).reshape(Cp, 1)

    masks = _make_masks(D, H, W)

    # fused conv1 weight: (Chp, 27*Cp) bf16, column = tap*Cp + cin.
    w1p = jnp.pad(params["w1"],
                  ((0, 0), (0, 0), (0, 0), (0, Cp - Cin), (0, Chp - Ch)))
    w1f = w1p.reshape(27 * Cp, Chp).T.astype(jnp.bfloat16)
    b1p = jnp.pad(params["b1"], (0, Chp - Ch)).reshape(Chp, 1)

    c1, stats = _conv1_call(xp, scale1p, shift1p, w1f, b1p, masks, D, H, W)

    # BN2 batch statistics from conv1's per-sample partial sums.
    M = N * DHW
    s2 = jnp.sum(stats[:, :, 0], axis=0)
    q2 = jnp.sum(stats[:, :, 1], axis=0)
    mean2 = s2 / M
    var2 = q2 / M - mean2 * mean2
    g2p = jnp.pad(params["g2"], (0, Chp - Ch))
    be2p = jnp.pad(params["be2"], (0, Chp - Ch))
    scale2 = g2p * jax.lax.rsqrt(var2 + EPS)
    shift2 = be2p - mean2 * scale2

    # fused conv2 (+skip) weight: (Coutp, 27*Chp + Cp) bf16; skip bias folded in.
    w2p = jnp.pad(params["w2"],
                  ((0, 0), (0, 0), (0, 0), (0, Chp - Ch), (0, Coutp - Cout)))
    wsp = jnp.pad(params["ws"], ((0, Cp - Cin), (0, Coutp - Cout)))
    w2f = jnp.concatenate([w2p.reshape(27 * Chp, Coutp), wsp],
                          axis=0).T.astype(jnp.bfloat16)
    bias2 = jnp.pad(params["b2"] + params["bs"],
                    (0, Coutp - Cout)).reshape(Coutp, 1)

    out = _conv2_call(c1, scale2.reshape(Chp, 1), shift2.reshape(Chp, 1),
                      w2f, bias2, masks, xp, D, H, W)
    return out.reshape(N, Coutp, D, H, W)[:, :Cout]


# -------------------------- pure-JAX reference --------------------------------

def ref_forward(x, params):
    def bn_relu_ref(t, g, b):
        m = t.mean(axis=(0, 2, 3, 4), keepdims=True)
        v = ((t - m) ** 2).mean(axis=(0, 2, 3, 4), keepdims=True)
        g = g.reshape(1, -1, 1, 1, 1)
        b = b.reshape(1, -1, 1, 1, 1)
        return jnp.maximum((t - m) * jax.lax.rsqrt(v + EPS) * g + b, 0.0)

    def conv3d(t, w, b):
        y = jax.lax.conv_general_dilated(
            t, w, window_strides=(1, 1, 1), padding="SAME",
            dimension_numbers=("NCDHW", "DHWIO", "NCDHW"))
        return y + b.reshape(1, -1, 1, 1, 1)

    h = bn_relu_ref(x, params["g1"], params["be1"])
    h = conv3d(h, params["w1"], params["b1"])
    h = bn_relu_ref(h, params["g2"], params["be2"])
    h = conv3d(h, params["w2"], params["b2"])
    skip = (jnp.einsum("ncdhw,co->nodhw", x, params["ws"])
            + params["bs"].reshape(1, -1, 1, 1, 1))
    return h + skip


if __name__ == "__main__":
    # ResBlock3d(in_channels=4, out_channels=8, hidden_channels_conv=8,
    #            kernel_size=3, padding=1)
    N, D, H, W = 2, 8, 8, 8
    Cin, Ch, Cout = 4, 8, 8

    key = jax.random.PRNGKey(0)
    ks = jax.random.split(key, 8)
    x = jax.random.normal(ks[0], (N, Cin, D, H, W), dtype=jnp.float32)

    params = dict(
        # BatchNorm3d defaults: weight=1, bias=0
        g1=jnp.ones((Cin,), jnp.float32),
        be1=jnp.zeros((Cin,), jnp.float32),
        g2=jnp.ones((Ch,), jnp.float32),
        be2=jnp.zeros((Ch,), jnp.float32),
        # Conv3d weights in DHWIO layout (PyTorch OIDHW maps via transpose(2,3,4,1,0))
        w1=jax.random.normal(ks[1], (3, 3, 3, Cin, Ch), jnp.float32) * 0.1,
        b1=jax.random.normal(ks[2], (Ch,), jnp.float32) * 0.1,
        w2=jax.random.normal(ks[3], (3, 3, 3, Ch, Cout), jnp.float32) * 0.1,
        b2=jax.random.normal(ks[4], (Cout,), jnp.float32) * 0.1,
        # skip: in_channels != out_channels -> Conv3d(kernel_size=1); for the
        # identity branch (in==out) use ws=jnp.eye(Cin), bs=zeros.
        ws=jax.random.normal(ks[5], (Cin, Cout), jnp.float32) * 0.1,
        bs=jax.random.normal(ks[6], (Cout,), jnp.float32) * 0.1,
    )

    out = jax.jit(resblock3d_forward)(x, params)
    out = jax.block_until_ready(out)

    ref = ref_forward(x, params)
    assert out.shape == (N, Cout, D, H, W)
    max_err = float(jnp.max(jnp.abs(out - ref)))
    # bf16 MXU operands + bf16 c1 intermediate (f32 accumulate) -> bf16 tolerance.
    assert jnp.allclose(out, ref, atol=3e-2, rtol=3e-2), max_err
    print("KERNEL_OK")
</pallas_src>

<mosaic_0001>
module attributes {stable_mosaic.version = 11 : i64} {
  func.func @kernel(%arg0: i32, %arg1: memref<1x8x512xf32, #tpu.memory_space<vmem>>, %arg2: memref<8x1xf32, #tpu.memory_space<vmem>>, %arg3: memref<8x1xf32, #tpu.memory_space<vmem>>, %arg4: memref<8x216xbf16, #tpu.memory_space<vmem>>, %arg5: memref<8x1xf32, #tpu.memory_space<vmem>>, %arg6: memref<27x512xf32, #tpu.memory_space<vmem>>, %arg7: memref<1x8x512xbf16, #tpu.memory_space<vmem>>, %arg8: memref<1x8x2xf32, #tpu.memory_space<vmem>>, %arg9: memref<8x768xf32, #tpu.memory_space<vmem>>, %arg10: memref<216x512xbf16, #tpu.memory_space<vmem>>) attributes {dimension_semantics = [#tpu.dimension_semantics<parallel>], iteration_bounds = array<i64: 2>, scalar_prefetch = 0 : i64, scratch_operands = 2 : i64, tpu.core_type = #tpu.core_type<tc>, window_params = [{transform_indices = @transform_0, window_bounds = array<i64: 1, 8, 512>}, {pipeline_mode = #tpu.pipeline_mode<synchronous>, transform_indices = @transform_1, window_bounds = array<i64: 8, 1>}, {pipeline_mode = #tpu.pipeline_mode<synchronous>, transform_indices = @transform_2, window_bounds = array<i64: 8, 1>}, {pipeline_mode = #tpu.pipeline_mode<synchronous>, transform_indices = @transform_3, window_bounds = array<i64: 8, 216>}, {pipeline_mode = #tpu.pipeline_mode<synchronous>, transform_indices = @transform_4, window_bounds = array<i64: 8, 1>}, {pipeline_mode = #tpu.pipeline_mode<synchronous>, transform_indices = @transform_5, window_bounds = array<i64: 27, 512>}, {transform_indices = @transform_6, window_bounds = array<i64: 1, 8, 512>}, {transform_indices = @transform_7, window_bounds = array<i64: 1, 8, 2>}]} {
    %c0 = arith.constant 0 : index
    %c0_0 = arith.constant 0 : index
    %c0_1 = arith.constant 0 : index
    %0 = vector.load %arg1[%c0, %c0_0, %c0_1] : memref<1x8x512xf32, #tpu.memory_space<vmem>>, vector<1x8x512xf32>
    %1 = vector.shape_cast %0 : vector<1x8x512xf32> to vector<8x512xf32>
    %c0_2 = arith.constant 0 : index
    %c0_3 = arith.constant 0 : index
    %2 = vector.load %arg2[%c0_2, %c0_3] : memref<8x1xf32, #tpu.memory_space<vmem>>, vector<8x1xf32>
    %3 = vector.broadcast %2 : vector<8x1xf32> to vector<8x512xf32>
    %4 = arith.mulf %1, %3 : vector<8x512xf32>
    %c0_4 = arith.constant 0 : index
    %c0_5 = arith.constant 0 : index
    %5 = vector.load %arg3[%c0_4, %c0_5] : memref<8x1xf32, #tpu.memory_space<vmem>>, vector<8x1xf32>
    %6 = vector.broadcast %5 : vector<8x1xf32> to vector<8x512xf32>
    %7 = arith.addf %4, %6 : vector<8x512xf32>
    %cst = arith.constant 0.000000e+00 : f32
    %8 = vector.broadcast %cst : f32 to vector<8x512xf32>
    %9 = arith.maximumf %7, %8 : vector<8x512xf32>
    %cst_6 = arith.constant 0.000000e+00 : f32
    %10 = vector.broadcast %cst_6 : f32 to vector<8x128xf32>
    %c0_7 = arith.constant 0 : index
    %c0_8 = arith.constant 0 : index
    %11 = vector.load %arg9[%c0_7, %c0_8] : memref<8x768xf32, #tpu.memory_space<vmem>>, vector<8x128xf32>
    tpu.vector_store %arg9[%c0_7, %c0_8], %10 {strides = array<i32>} : memref<8x768xf32, #tpu.memory_space<vmem>>, vector<8x128xf32>,
    %cst_9 = arith.constant 0.000000e+00 : f32
    %12 = vector.broadcast %cst_9 : f32 to vector<8x128xf32>
    %c0_10 = arith.constant 0 : index
    %c640 = arith.constant 640 : index
    %13 = vector.load %arg9[%c0_10, %c640] : memref<8x768xf32, #tpu.memory_space<vmem>>, vector<8x128xf32>
    tpu.vector_store %arg9[%c0_10, %c640], %12 {strides = array<i32>} : memref<8x768xf32, #tpu.memory_space<vmem>>, vector<8x128xf32>,
    %c0_11 = arith.constant 0 : index
    %c128 = arith.constant 128 : index
    %14 = vector.load %arg9[%c0_11, %c128] : memref<8x768xf32, #tpu.memory_space<vmem>>, vector<8x512xf32>
    tpu.vector_store %arg9[%c0_11, %c128], %9 {strides = array<i32>} : memref<8x768xf32, #tpu.memory_space<vmem>>, vector<8x512xf32>,
    %c0_12 = arith.constant 0 : index
    %c55 = arith.constant 55 : index
    %15 = vector.load %arg9[%c0_12, %c55] : memref<8x768xf32, #tpu.memory_space<vmem>>, vector<8x512xf32>
    %c0_13 = arith.constant 0 : index
    %c0_14 = arith.constant 0 : index
    %16 = vector.load %arg6[%c0_13, %c0_14] : memref<27x512xf32, #tpu.memory_space<vmem>>, vector<1x512xf32>
    %17 = vector.broadcast %16 : vector<1x512xf32> to vector<8x512xf32>
    %18 = arith.mulf %15, %17 : vector<8x512xf32>
    %19 = arith.truncf %18 : vector<8x512xf32> to vector<8x512xbf16>
    %c0_15 = arith.constant 0 : index
    %c0_16 = arith.constant 0 : index
    %20 = vector.load %arg10[%c0_15, %c0_16] : memref<216x512xbf16, #tpu.memory_space<vmem>>, vector<8x512xbf16>
    tpu.vector_store %arg10[%c0_15, %c0_16], %19 {strides = array<i32>} : memref<216x512xbf16, #tpu.memory_space<vmem>>, vector<8x512xbf16>,
    %c0_17 = arith.constant 0 : index
    %c56 = arith.constant 56 : index
    %21 = vector.load %arg9[%c0_17, %c56] : memref<8x768xf32, #tpu.memory_space<vmem>>, vector<8x512xf32>
    %c1 = arith.constant 1 : index
    %c0_18 = arith.constant 0 : index
    %22 = vector.load %arg6[%c1, %c0_18] : memref<27x512xf32, #tpu.memory_space<vmem>>, vector<1x512xf32>
    %23 = vector.broadcast %22 : vector<1x512xf32> to vector<8x512xf32>
    %24 = arith.mulf %21, %23 : vector<8x512xf32>
    %25 = arith.truncf %24 : vector<8x512xf32> to vector<8x512xbf16>
    %c8 = arith.constant 8 : index
    %c0_19 = arith.constant 0 : index
    %26 = vector.load %arg10[%c8, %c0_19] : memref<216x512xbf16, #tpu.memory_space<vmem>>, vector<8x512xbf16>
    tpu.vector_store %arg10[%c8, %c0_19], %25 {strides = array<i32>} : memref<216x512xbf16, #tpu.memory_space<vmem>>, vector<8x512xbf16>,
    %c0_20 = arith.constant 0 : index
    %c57 = arith.constant 57 : index
    %27 = vector.load %arg9[%c0_20, %c57] : memref<8x768xf32, #tpu.memory_space<vmem>>, vector<8x512xf32>
    %c2 = arith.constant 2 : index
    %c0_21 = arith.constant 0 : index
    %28 = vector.load %arg6[%c2, %c0_21] : memref<27x512xf32, #tpu.memory_space<vmem>>, vector<1x512xf32>
    %29 = vector.broadcast %28 : vector<1x512xf32> to vector<8x512xf32>
    %30 = arith.mulf %27, %29 : vector<8x512xf32>
    %31 = arith.truncf %30 : vector<8x512xf32> to vector<8x512xbf16>
    %c16 = arith.constant 16 : index
    %c0_22 = arith.constant 0 : index
    %32 = vector.load %arg10[%c16, %c0_22] : memref<216x512xbf16, #tpu.memory_space<vmem>>, vector<8x512xbf16>
    tpu.vector_store %arg10[%c16, %c0_22], %31 {strides = array<i32>} : memref<216x512xbf16, #tpu.memory_space<vmem>>, vector<8x512xbf16>,
    %c0_23 = arith.constant 0 : index
    %c63 = arith.constant 63 : index
    %33 = vector.load %arg9[%c0_23, %c63] : memref<8x768xf32, #tpu.memory_space<vmem>>, vector<8x512xf32>
    %c3 = arith.constant 3 : index
    %c0_24 = arith.constant 0 : index
    %34 = vector.load %arg6[%c3, %c0_24] : memref<27x512xf32, #tpu.memory_space<vmem>>, vector<1x512xf32>
    %35 = vector.broadcast %34 : vector<1x512xf32> to vector<8x512xf32>
    %36 = arith.mulf %33, %35 : vector<8x512xf32>
    %37 = arith.truncf %36 : vector<8x512xf32> to vector<8x512xbf16>
    %c24 = arith.constant 24 : index
    %c0_25 = arith.constant 0 : index
    %38 = vector.load %arg10[%c24, %c0_25] : memref<216x512xbf16, #tpu.memory_space<vmem>>, vector<8x512xbf16>
    tpu.vector_store %arg10[%c24, %c0_25], %37 {strides = array<i32>} : memref<216x512xbf16, #tpu.memory_space<vmem>>, vector<8x512xbf16>,
    %c0_26 = arith.constant 0 : index
    %c64 = arith.constant 64 : index
    %39 = vector.load %arg9[%c0_26, %c64] : memref<8x768xf32, #tpu.memory_space<vmem>>, vector<8x512xf32>
    %c4 = arith.constant 4 : index
    %c0_27 = arith.constant 0 : index
    %40 = vector.load %arg6[%c4, %c0_27] : memref<27x512xf32, #tpu.memory_space<vmem>>, vector<1x512xf32>
    %41 = vector.broadcast %40 : vector<1x512xf32> to vector<8x512xf32>
    %42 = arith.mulf %39, %41 : vector<8x512xf32>
    %43 = arith.truncf %42 : vector<8x512xf32> to vector<8x512xbf16>
    %c32 = arith.constant 32 : index
    %c0_28 = arith.constant 0 : index
    %44 = vector.load %arg10[%c32, %c0_28] : memref<216x512xbf16, #tpu.memory_space<vmem>>, vector<8x512xbf16>
    tpu.vector_store %arg10[%c32, %c0_28], %43 {strides = array<i32>} : memref<216x512xbf16, #tpu.memory_space<vmem>>, vector<8x512xbf16>,
    %c0_29 = arith.constant 0 : index
    %c65 = arith.constant 65 : index
    %45 = vector.load %arg9[%c0_29, %c65] : memref<8x768xf32, #tpu.memory_space<vmem>>, vector<8x512xf32>
    %c5 = arith.constant 5 : index
    %c0_30 = arith.constant 0 : index
    %46 = vector.load %arg6[%c5, %c0_30] : memref<27x512xf32, #tpu.memory_space<vmem>>, vector<1x512xf32>
    %47 = vector.broadcast %46 : vector<1x512xf32> to vector<8x512xf32>
    %48 = arith.mulf %45, %47 : vector<8x512xf32>
    %49 = arith.truncf %48 : vector<8x512xf32> to vector<8x512xbf16>
    %c40 = arith.constant 40 : index
    %c0_31 = arith.constant 0 : index
    %50 = vector.load %arg10[%c40, %c0_31] : memref<216x512xbf16, #tpu.memory_space<vmem>>, vector<8x512xbf16>
    tpu.vector_store %arg10[%c40, %c0_31], %49 {strides = array<i32>} : memref<216x512xbf16, #tpu.memory_space<vmem>>, vector<8x512xbf16>,
    %c0_32 = arith.constant 0 : index
    %c71 = arith.constant 71 : index
    %51 = vector.load %arg9[%c0_32, %c71] : memref<8x768xf32, #tpu.memory_space<vmem>>, vector<8x512xf32>
    %c6 = arith.constant 6 : index
    %c0_33 = arith.constant 0 : index
    %52 = vector.load %arg6[%c6, %c0_33] : memref<27x512xf32, #tpu.memory_space<vmem>>, vector<1x512xf32>
    %53 = vector.broadcast %52 : vector<1x512xf32> to vector<8x512xf32>
    %54 = arith.mulf %51, %53 : vector<8x512xf32>
    %55 = arith.truncf %54 : vector<8x512xf32> to vector<8x512xbf16>
    %c48 = arith.constant 48 : index
    %c0_34 = arith.constant 0 : index
    %56 = vector.load %arg10[%c48, %c0_34] : memref<216x512xbf16, #tpu.memory_space<vmem>>, vector<8x512xbf16>
    tpu.vector_store %arg10[%c48, %c0_34], %55 {strides = array<i32>} : memref<216x512xbf16, #tpu.memory_space<vmem>>, vector<8x512xbf16>,
    %c0_35 = arith.constant 0 : index
    %c72 = arith.constant 72 : index
    %57 = vector.load %arg9[%c0_35, %c72] : memref<8x768xf32, #tpu.memory_space<vmem>>, vector<8x512xf32>
    %c7 = arith.constant 7 : index
    %c0_36 = arith.constant 0 : index
    %58 = vector.load %arg6[%c7, %c0_36] : memref<27x512xf32, #tpu.memory_space<vmem>>, vector<1x512xf32>
    %59 = vector.broadcast %58 : vector<1x512xf32> to vector<8x512xf32>
    %60 = arith.mulf %57, %59 : vector<8x512xf32>
    %61 = arith.truncf %60 : vector<8x512xf32> to vector<8x512xbf16>
    %c56_37 = arith.constant 56 : index
    %c0_38 = arith.constant 0 : index
    %62 = vector.load %arg10[%c56_37, %c0_38] : memref<216x512xbf16, #tpu.memory_space<vmem>>, vector<8x512xbf16>
    tpu.vector_store %arg10[%c56_37, %c0_38], %61 {strides = array<i32>} : memref<216x512xbf16, #tpu.memory_space<vmem>>, vector<8x512xbf16>,
    %c0_39 = arith.constant 0 : index
    %c73 = arith.constant 73 : index
    %63 = vector.load %arg9[%c0_39, %c73] : memref<8x768xf32, #tpu.memory_space<vmem>>, vector<8x512xf32>
    %c8_40 = arith.constant 8 : index
    %c0_41 = arith.constant 0 : index
    %64 = vector.load %arg6[%c8_40, %c0_41] : memref<27x512xf32, #tpu.memory_space<vmem>>, vector<1x512xf32>
    %65 = vector.broadcast %64 : vector<1x512xf32> to vector<8x512xf32>
    %66 = arith.mulf %63, %65 : vector<8x512xf32>
    %67 = arith.truncf %66 : vector<8x512xf32> to vector<8x512xbf16>
    %c64_42 = arith.constant 64 : index
    %c0_43 = arith.constant 0 : index
    %68 = vector.load %arg10[%c64_42, %c0_43] : memref<216x512xbf16, #tpu.memory_space<vmem>>, vector<8x512xbf16>
    tpu.vector_store %arg10[%c64_42, %c0_43], %67 {strides = array<i32>} : memref<216x512xbf16, #tpu.memory_space<vmem>>, vector<8x512xbf16>,
    %c0_44 = arith.constant 0 : index
    %c119 = arith.constant 119 : index
    %69 = vector.load %arg9[%c0_44, %c119] : memref<8x768xf32, #tpu.memory_space<vmem>>, vector<8x512xf32>
    %c9 = arith.constant 9 : index
    %c0_45 = arith.constant 0 : index
    %70 = vector.load %arg6[%c9, %c0_45] : memref<27x512xf32, #tpu.memory_space<vmem>>, vector<1x512xf32>
    %71 = vector.broadcast %70 : vector<1x512xf32> to vector<8x512xf32>
    %72 = arith.mulf %69, %71 : vector<8x512xf32>
    %73 = arith.truncf %72 : vector<8x512xf32> to vector<8x512xbf16>
    %c72_46 = arith.constant 72 : index
    %c0_47 = arith.constant 0 : index
    %74 = vector.load %arg10[%c72_46, %c0_47] : memref<216x512xbf16, #tpu.memory_space<vmem>>, vector<8x512xbf16>
    tpu.vector_store %arg10[%c72_46, %c0_47], %73 {strides = array<i32>} : memref<216x512xbf16, #tpu.memory_space<vmem>>, vector<8x512xbf16>,
    %c0_48 = arith.constant 0 : index
    %c120 = arith.constant 120 : index
    %75 = vector.load %arg9[%c0_48, %c120] : memref<8x768xf32, #tpu.memory_space<vmem>>, vector<8x512xf32>
    %c10 = arith.constant 10 : index
    %c0_49 = arith.constant 0 : index
    %76 = vector.load %arg6[%c10, %c0_49] : memref<27x512xf32, #tpu.memory_space<vmem>>, vector<1x512xf32>
    %77 = vector.broadcast %76 : vector<1x512xf32> to vector<8x512xf32>
    %78 = arith.mulf %75, %77 : vector<8x512xf32>
    %79 = arith.truncf %78 : vector<8x512xf32> to vector<8x512xbf16>
    %c80 = arith.constant 80 : index
    %c0_50 = arith.constant 0 : index
    %80 = vector.load %arg10[%c80, %c0_50] : memref<216x512xbf16, #tpu.memory_space<vmem>>, vector<8x512xbf16>
    tpu.vector_store %arg10[%c80, %c0_50], %79 {strides = array<i32>} : memref<216x512xbf16, #tpu.memory_space<vmem>>, vector<8x512xbf16>,
    %c0_51 = arith.constant 0 : index
    %c121 = arith.constant 121 : index
    %81 = vector.load %arg9[%c0_51, %c121] : memref<8x768xf32, #tpu.memory_space<vmem>>, vector<8x512xf32>
    %c11 = arith.constant 11 : index
    %c0_52 = arith.constant 0 : index
    %82 = vector.load %arg6[%c11, %c0_52] : memref<27x512xf32, #tpu.memory_space<vmem>>, vector<1x512xf32>
    %83 = vector.broadcast %82 : vector<1x512xf32> to vector<8x512xf32>
    %84 = arith.mulf %81, %83 : vector<8x512xf32>
    %85 = arith.truncf %84 : vector<8x512xf32> to vector<8x512xbf16>
    %c88 = arith.constant 88 : index
    %c0_53 = arith.constant 0 : index
    %86 = vector.load %arg10[%c88, %c0_53] : memref<216x512xbf16, #tpu.memory_space<vmem>>, vector<8x512xbf16>
    tpu.vector_store %arg10[%c88, %c0_53], %85 {strides = array<i32>} : memref<216x512xbf16, #tpu.memory_space<vmem>>, vector<8x512xbf16>,
    %c0_54 = arith.constant 0 : index
    %c127 = arith.constant 127 : index
    %87 = vector.load %arg9[%c0_54, %c127] : memref<8x768xf32, #tpu.memory_space<vmem>>, vector<8x512xf32>
    %c12 = arith.constant 12 : index
    %c0_55 = arith.constant 0 : index
    %88 = vector.load %arg6[%c12, %c0_55] : memref<27x512xf32, #tpu.memory_space<vmem>>, vector<1x512xf32>
    %89 = vector.broadcast %88 : vector<1x512xf32> to vector<8x512xf32>
    %90 = arith.mulf %87, %89 : vector<8x512xf32>
    %91 = arith.truncf %90 : vector<8x512xf32> to vector<8x512xbf16>
    %c96 = arith.constant 96 : index
    %c0_56 = arith.constant 0 : index
    %92 = vector.load %arg10[%c96, %c0_56] : memref<216x512xbf16, #tpu.memory_space<vmem>>, vector<8x512xbf16>
    tpu.vector_store %arg10[%c96, %c0_56], %91 {strides = array<i32>} : memref<216x512xbf16, #tpu.memory_space<vmem>>, vector<8x512xbf16>,
    %c0_57 = arith.constant 0 : index
    %c128_58 = arith.constant 128 : index
    %93 = vector.load %arg9[%c0_57, %c128_58] : memref<8x768xf32, #tpu.memory_space<vmem>>, vector<8x512xf32>
    %c13 = arith.constant 13 : index
    %c0_59 = arith.constant 0 : index
    %94 = vector.load %arg6[%c13, %c0_59] : memref<27x512xf32, #tpu.memory_space<vmem>>, vector<1x512xf32>
    %95 = vector.broadcast %94 : vector<1x512xf32> to vector<8x512xf32>
    %96 = arith.mulf %93, %95 : vector<8x512xf32>
    %97 = arith.truncf %96 : vector<8x512xf32> to vector<8x512xbf16>
    %c104 = arith.constant 104 : index
    %c0_60 = arith.constant 0 : index
    %98 = vector.load %arg10[%c104, %c0_60] : memref<216x512xbf16, #tpu.memory_space<vmem>>, vector<8x512xbf16>
    tpu.vector_store %arg10[%c104, %c0_60], %97 {strides = array<i32>} : memref<216x512xbf16, #tpu.memory_space<vmem>>, vector<8x512xbf16>,
    %c0_61 = arith.constant 0 : index
    %c129 = arith.constant 129 : index
    %99 = vector.load %arg9[%c0_61, %c129] : memref<8x768xf32, #tpu.memory_space<vmem>>, vector<8x512xf32>
    %c14 = arith.constant 14 : index
    %c0_62 = arith.constant 0 : index
    %100 = vector.load %arg6[%c14, %c0_62] : memref<27x512xf32, #tpu.memory_space<vmem>>, vector<1x512xf32>
    %101 = vector.broadcast %100 : vector<1x512xf32> to vector<8x512xf32>
    %102 = arith.mulf %99, %101 : vector<8x512xf32>
    %103 = arith.truncf %102 : vector<8x512xf32> to vector<8x512xbf16>
    %c112 = arith.constant 112 : index
    %c0_63 = arith.constant 0 : index
    %104 = vector.load %arg10[%c112, %c0_63] : memref<216x512xbf16, #tpu.memory_space<vmem>>, vector<8x512xbf16>
    tpu.vector_store %arg10[%c112, %c0_63], %103 {strides = array<i32>} : memref<216x512xbf16, #tpu.memory_space<vmem>>, vector<8x512xbf16>,
    %c0_64 = arith.constant 0 : index
    %c135 = arith.constant 135 : index
    %105 = vector.load %arg9[%c0_64, %c135] : memref<8x768xf32, #tpu.memory_space<vmem>>, vector<8x512xf32>
    %c15 = arith.constant 15 : index
    %c0_65 = arith.constant 0 : index
    %106 = vector.load %arg6[%c15, %c0_65] : memref<27x512xf32, #tpu.memory_space<vmem>>, vector<1x512xf32>
    %107 = vector.broadcast %106 : vector<1x512xf32> to vector<8x512xf32>
    %108 = arith.mulf %105, %107 : vector<8x512xf32>
    %109 = arith.truncf %108 : vector<8x512xf32> to vector<8x512xbf16>
    %c120_66 = arith.constant 120 : index
    %c0_67 = arith.constant 0 : index
    %110 = vector.load %arg10[%c120_66, %c0_67] : memref<216x512xbf16, #tpu.memory_space<vmem>>, vector<8x512xbf16>
    tpu.vector_store %arg10[%c120_66, %c0_67], %109 {strides = array<i32>} : memref<216x512xbf16, #tpu.memory_space<vmem>>, vector<8x512xbf16>,
    %c0_68 = arith.constant 0 : index
    %c136 = arith.constant 136 : index
    %111 = vector.load %arg9[%c0_68, %c136] : memref<8x768xf32, #tpu.memory_space<vmem>>, vector<8x512xf32>
    %c16_69 = arith.constant 16 : index
    %c0_70 = arith.constant 0 : index
    %112 = vector.load %arg6[%c16_69, %c0_70] : memref<27x512xf32, #tpu.memory_space<vmem>>, vector<1x512xf32>
    %113 = vector.broadcast %112 : vector<1x512xf32> to vector<8x512xf32>
    %114 = arith.mulf %111, %113 : vector<8x512xf32>
    %115 = arith.truncf %114 : vector<8x512xf32> to vector<8x512xbf16>
    %c128_71 = arith.constant 128 : index
    %c0_72 = arith.constant 0 : index
    %116 = vector.load %arg10[%c128_71, %c0_72] : memref<216x512xbf16, #tpu.memory_space<vmem>>, vector<8x512xbf16>
    tpu.vector_store %arg10[%c128_71, %c0_72], %115 {strides = array<i32>} : memref<216x512xbf16, #tpu.memory_space<vmem>>, vector<8x512xbf16>,
    %c0_73 = arith.constant 0 : index
    %c137 = arith.constant 137 : index
    %117 = vector.load %arg9[%c0_73, %c137] : memref<8x768xf32, #tpu.memory_space<vmem>>, vector<8x512xf32>
    %c17 = arith.constant 17 : index
    %c0_74 = arith.constant 0 : index
    %118 = vector.load %arg6[%c17, %c0_74] : memref<27x512xf32, #tpu.memory_space<vmem>>, vector<1x512xf32>
    %119 = vector.broadcast %118 : vector<1x512xf32> to vector<8x512xf32>
    %120 = arith.mulf %117, %119 : vector<8x512xf32>
    %121 = arith.truncf %120 : vector<8x512xf32> to vector<8x512xbf16>
    %c136_75 = arith.constant 136 : index
    %c0_76 = arith.constant 0 : index
    %122 = vector.load %arg10[%c136_75, %c0_76] : memref<216x512xbf16, #tpu.memory_space<vmem>>, vector<8x512xbf16>
    tpu.vector_store %arg10[%c136_75, %c0_76], %121 {strides = array<i32>} : memref<216x512xbf16, #tpu.memory_space<vmem>>, vector<8x512xbf16>,
    %c0_77 = arith.constant 0 : index
    %c183 = arith.constant 183 : index
    %123 = vector.load %arg9[%c0_77, %c183] : memref<8x768xf32, #tpu.memory_space<vmem>>, vector<8x512xf32>
    %c18 = arith.constant 18 : index
    %c0_78 = arith.constant 0 : index
    %124 = vector.load %arg6[%c18, %c0_78] : memref<27x512xf32, #tpu.memory_space<vmem>>, vector<1x512xf32>
    %125 = vector.broadcast %124 : vector<1x512xf32> to vector<8x512xf32>
    %126 = arith.mulf %123, %125 : vector<8x512xf32>
    %127 = arith.truncf %126 : vector<8x512xf32> to vector<8x512xbf16>
    %c144 = arith.constant 144 : index
    %c0_79 = arith.constant 0 : index
    %128 = vector.load %arg10[%c144, %c0_79] : memref<216x512xbf16, #tpu.memory_space<vmem>>, vector<8x512xbf16>
    tpu.vector_store %arg10[%c144, %c0_79], %127 {strides = array<i32>} : memref<216x512xbf16, #tpu.memory_space<vmem>>, vector<8x512xbf16>,
    %c0_80 = arith.constant 0 : index
    %c184 = arith.constant 184 : index
    %129 = vector.load %arg9[%c0_80, %c184] : memref<8x768xf32, #tpu.memory_space<vmem>>, vector<8x512xf32>
    %c19 = arith.constant 19 : index
    %c0_81 = arith.constant 0 : index
    %130 = vector.load %arg6[%c19, %c0_81] : memref<27x512xf32, #tpu.memory_space<vmem>>, vector<1x512xf32>
    %131 = vector.broadcast %130 : vector<1x512xf32> to vector<8x512xf32>
    %132 = arith.mulf %129, %131 : vector<8x512xf32>
    %133 = arith.truncf %132 : vector<8x512xf32> to vector<8x512xbf16>
    %c152 = arith.constant 152 : index
    %c0_82 = arith.constant 0 : index
    %134 = vector.load %arg10[%c152, %c0_82] : memref<216x512xbf16, #tpu.memory_space<vmem>>, vector<8x512xbf16>
    tpu.vector_store %arg10[%c152, %c0_82], %133 {strides = array<i32>} : memref<216x512xbf16, #tpu.memory_space<vmem>>, vector<8x512xbf16>,
    %c0_83 = arith.constant 0 : index
    %c185 = arith.constant 185 : index
    %135 = vector.load %arg9[%c0_83, %c185] : memref<8x768xf32, #tpu.memory_space<vmem>>, vector<8x512xf32>
    %c20 = arith.constant 20 : index
    %c0_84 = arith.constant 0 : index
    %136 = vector.load %arg6[%c20, %c0_84] : memref<27x512xf32, #tpu.memory_space<vmem>>, vector<1x512xf32>
    %137 = vector.broadcast %136 : vector<1x512xf32> to vector<8x512xf32>
    %138 = arith.mulf %135, %137 : vector<8x512xf32>
    %139 = arith.truncf %138 : vector<8x512xf32> to vector<8x512xbf16>
    %c160 = arith.constant 160 : index
    %c0_85 = arith.constant 0 : index
    %140 = vector.load %arg10[%c160, %c0_85] : memref<216x512xbf16, #tpu.memory_space<vmem>>, vector<8x512xbf16>
    tpu.vector_store %arg10[%c160, %c0_85], %139 {strides = array<i32>} : memref<216x512xbf16, #tpu.memory_space<vmem>>, vector<8x512xbf16>,
    %c0_86 = arith.constant 0 : index
    %c191 = arith.constant 191 : index
    %141 = vector.load %arg9[%c0_86, %c191] : memref<8x768xf32, #tpu.memory_space<vmem>>, vector<8x512xf32>
    %c21 = arith.constant 21 : index
    %c0_87 = arith.constant 0 : index
    %142 = vector.load %arg6[%c21, %c0_87] : memref<27x512xf32, #tpu.memory_space<vmem>>, vector<1x512xf32>
    %143 = vector.broadcast %142 : vector<1x512xf32> to vector<8x512xf32>
    %144 = arith.mulf %141, %143 : vector<8x512xf32>
    %145 = arith.truncf %144 : vector<8x512xf32> to vector<8x512xbf16>
    %c168 = arith.constant 168 : index
    %c0_88 = arith.constant 0 : index
    %146 = vector.load %arg10[%c168, %c0_88] : memref<216x512xbf16, #tpu.memory_space<vmem>>, vector<8x512xbf16>
    tpu.vector_store %arg10[%c168, %c0_88], %145 {strides = array<i32>} : memref<216x512xbf16, #tpu.memory_space<vmem>>, vector<8x512xbf16>,
    %c0_89 = arith.constant 0 : index
    %c192 = arith.constant 192 : index
    %147 = vector.load %arg9[%c0_89, %c192] : memref<8x768xf32, #tpu.memory_space<vmem>>, vector<8x512xf32>
    %c22 = arith.constant 22 : index
    %c0_90 = arith.constant 0 : index
    %148 = vector.load %arg6[%c22, %c0_90] : memref<27x512xf32, #tpu.memory_space<vmem>>, vector<1x512xf32>
    %149 = vector.broadcast %148 : vector<1x512xf32> to vector<8x512xf32>
    %150 = arith.mulf %147, %149 : vector<8x512xf32>
    %151 = arith.truncf %150 : vector<8x512xf32> to vector<8x512xbf16>
    %c176 = arith.constant 176 : index
    %c0_91 = arith.constant 0 : index
    %152 = vector.load %arg10[%c176, %c0_91] : memref<216x512xbf16, #tpu.memory_space<vmem>>, vector<8x512xbf16>
    tpu.vector_store %arg10[%c176, %c0_91], %151 {strides = array<i32>} : memref<216x512xbf16, #tpu.memory_space<vmem>>, vector<8x512xbf16>,
    %c0_92 = arith.constant 0 : index
    %c193 = arith.constant 193 : index
    %153 = vector.load %arg9[%c0_92, %c193] : memref<8x768xf32, #tpu.memory_space<vmem>>, vector<8x512xf32>
    %c23 = arith.constant 23 : index
    %c0_93 = arith.constant 0 : index
    %154 = vector.load %arg6[%c23, %c0_93] : memref<27x512xf32, #tpu.memory_space<vmem>>, vector<1x512xf32>
    %155 = vector.broadcast %154 : vector<1x512xf32> to vector<8x512xf32>
    %156 = arith.mulf %153, %155 : vector<8x512xf32>
    %157 = arith.truncf %156 : vector<8x512xf32> to vector<8x512xbf16>
    %c184_94 = arith.constant 184 : index
    %c0_95 = arith.constant 0 : index
    %158 = vector.load %arg10[%c184_94, %c0_95] : memref<216x512xbf16, #tpu.memory_space<vmem>>, vector<8x512xbf16>
    tpu.vector_store %arg10[%c184_94, %c0_95], %157 {strides = array<i32>} : memref<216x512xbf16, #tpu.memory_space<vmem>>, vector<8x512xbf16>,
    %c0_96 = arith.constant 0 : index
    %c199 = arith.constant 199 : index
    %159 = vector.load %arg9[%c0_96, %c199] : memref<8x768xf32, #tpu.memory_space<vmem>>, vector<8x512xf32>
    %c24_97 = arith.constant 24 : index
    %c0_98 = arith.constant 0 : index
    %160 = vector.load %arg6[%c24_97, %c0_98] : memref<27x512xf32, #tpu.memory_space<vmem>>, vector<1x512xf32>
    %161 = vector.broadcast %160 : vector<1x512xf32> to vector<8x512xf32>
    %162 = arith.mulf %159, %161 : vector<8x512xf32>
    %163 = arith.truncf %162 : vector<8x512xf32> to vector<8x512xbf16>
    %c192_99 = arith.constant 192 : index
    %c0_100 = arith.constant 0 : index
    %164 = vector.load %arg10[%c192_99, %c0_100] : memref<216x512xbf16, #tpu.memory_space<vmem>>, vector<8x512xbf16>
    tpu.vector_store %arg10[%c192_99, %c0_100], %163 {strides = array<i32>} : memref<216x512xbf16, #tpu.memory_space<vmem>>, vector<8x512xbf16>,
    %c0_101 = arith.constant 0 : index
    %c200 = arith.constant 200 : index
    %165 = vector.load %arg9[%c0_101, %c200] : memref<8x768xf32, #tpu.memory_space<vmem>>, vector<8x512xf32>
    %c25 = arith.constant 25 : index
    %c0_102 = arith.constant 0 : index
    %166 = vector.load %arg6[%c25, %c0_102] : memref<27x512xf32, #tpu.memory_space<vmem>>, vector<1x512xf32>
    %167 = vector.broadcast %166 : vector<1x512xf32> to vector<8x512xf32>
    %168 = arith.mulf %165, %167 : vector<8x512xf32>
    %169 = arith.truncf %168 : vector<8x512xf32> to vector<8x512xbf16>
    %c200_103 = arith.constant 200 : index
    %c0_104 = arith.constant 0 : index
    %170 = vector.load %arg10[%c200_103, %c0_104] : memref<216x512xbf16, #tpu.memory_space<vmem>>, vector<8x512xbf16>
    tpu.vector_store %arg10[%c200_103, %c0_104], %169 {strides = array<i32>} : memref<216x512xbf16, #tpu.memory_space<vmem>>, vector<8x512xbf16>,
    %c0_105 = arith.constant 0 : index
    %c201 = arith.constant 201 : index
    %171 = vector.load %arg9[%c0_105, %c201] : memref<8x768xf32, #tpu.memory_space<vmem>>, vector<8x512xf32>
    %c26 = arith.constant 26 : index
    %c0_106 = arith.constant 0 : index
    %172 = vector.load %arg6[%c26, %c0_106] : memref<27x512xf32, #tpu.memory_space<vmem>>, vector<1x512xf32>
    %173 = vector.broadcast %172 : vector<1x512xf32> to vector<8x512xf32>
    %174 = arith.mulf %171, %173 : vector<8x512xf32>
    %175 = arith.truncf %174 : vector<8x512xf32> to vector<8x512xbf16>
    %c208 = arith.constant 208 : index
    %c0_107 = arith.constant 0 : index
    %176 = vector.load %arg10[%c208, %c0_107] : memref<216x512xbf16, #tpu.memory_space<vmem>>, vector<8x512xbf16>
    tpu.vector_store %arg10[%c208, %c0_107], %175 {strides = array<i32>} : memref<216x512xbf16, #tpu.memory_space<vmem>>, vector<8x512xbf16>,
    %c0_108 = arith.constant 0 : index
    %c0_109 = arith.constant 0 : index
    %177 = vector.load %arg4[%c0_108, %c0_109] : memref<8x216xbf16, #tpu.memory_space<vmem>>, vector<8x216xbf16>
    %c0_110 = arith.constant 0 : index
    %c0_111 = arith.constant 0 : index
    %178 = vector.load %arg10[%c0_110, %c0_111] : memref<216x512xbf16, #tpu.memory_space<vmem>>, vector<216x512xbf16>
    %cst_112 = arith.constant dense<0.000000e+00> : vector<8x512xf32>
    %179 = tpu.matmul %177, %178, %cst_112 {dimension_numbers = #tpu.dot_dimension_numbers<[1], [0], [0], [1], [0, 0, 1, 1], [], []>} : vector<8x216xbf16>, vector<216x512xbf16>, vector<8x512xf32> -> vector<8x512xf32>
    %c0_113 = arith.constant 0 : index
    %c0_114 = arith.constant 0 : index
    %180 = vector.load %arg5[%c0_113, %c0_114] : memref<8x1xf32, #tpu.memory_space<vmem>>, vector<8x1xf32>
    %181 = vector.broadcast %180 : vector<8x1xf32> to vector<8x512xf32>
    %182 = arith.addf %179, %181 : vector<8x512xf32>
    %183 = arith.truncf %182 : vector<8x512xf32> to vector<8x512xbf16>
    %c0_115 = arith.constant 0 : index
    %c0_116 = arith.constant 0 : index
    %c0_117 = arith.constant 0 : index
    %184 = vector.load %arg7[%c0_115, %c0_116, %c0_117] : memref<1x8x512xbf16, #tpu.memory_space<vmem>>, vector<1x8x512xbf16>
    %185 = vector.shape_cast %184 : vector<1x8x512xbf16> to vector<8x512xbf16>
    %186 = vector.shape_cast %183 : vector<8x512xbf16> to vector<1x8x512xbf16>
    tpu.vector_store %arg7[%c0_115, %c0_116, %c0_117], %186 {strides = array<i32>} : memref<1x8x512xbf16, #tpu.memory_space<vmem>>, vector<1x8x512xbf16>,
    %cst_118 = arith.constant dense<0.000000e+00> : vector<8xf32>
    %187 = vector.multi_reduction <add>, %182, %cst_118 [1] : vector<8x512xf32> to vector<8xf32>
    %188 = vector.shape_cast %187 : vector<8xf32> to vector<8x1xf32>
    %c0_119 = arith.constant 0 : index
    %c0_120 = arith.constant 0 : index
    %c0_121 = arith.constant 0 : index
    %189 = vector.load %arg8[%c0_119, %c0_120, %c0_121] : memref<1x8x2xf32, #tpu.memory_space<vmem>>, vector<1x8x1xf32>
    %190 = vector.shape_cast %189 : vector<1x8x1xf32> to vector<8x1xf32>
    %191 = vector.shape_cast %188 : vector<8x1xf32> to vector<1x8x1xf32>
    tpu.vector_store %arg8[%c0_119, %c0_120, %c0_121], %191 {strides = array<i32>} : memref<1x8x2xf32, #tpu.memory_space<vmem>>, vector<1x8x1xf32>,
    %192 = arith.mulf %182, %182 : vector<8x512xf32>
    %cst_122 = arith.constant dense<0.000000e+00> : vector<8xf32>
    %193 = vector.multi_reduction <add>, %192, %cst_122 [1] : vector<8x512xf32> to vector<8xf32>
    %194 = vector.shape_cast %193 : vector<8xf32> to vector<8x1xf32>
    %c0_123 = arith.constant 0 : index
    %c0_124 = arith.constant 0 : index
    %c1_125 = arith.constant 1 : index
    %195 = vector.load %arg8[%c0_123, %c0_124, %c1_125] : memref<1x8x2xf32, #tpu.memory_space<vmem>>, vector<1x8x1xf32>
    %196 = vector.shape_cast %195 : vector<1x8x1xf32> to vector<8x1xf32>
    %197 = vector.shape_cast %194 : vector<8x1xf32> to vector<1x8x1xf32>
    tpu.vector_store %arg8[%c0_123, %c0_124, %c1_125], %197 {strides = array<i32>} : memref<1x8x2xf32, #tpu.memory_space<vmem>>, vector<1x8x1xf32>,
    return
  }
  func.func @transform_0(%arg0: i32) -> (i32, i32, i32) {
    %c0_i32 = arith.constant 0 : i32
    %c0_i32_0 = arith.constant 0 : i32
    %c0_i32_1 = arith.constant 0 : i32
    return %arg0, %c0_i32, %c0_i32_0 : i32, i32, i32
  }
  func.func @transform_1(%arg0: i32) -> (i32, i32) {
    %c0_i32 = arith.constant 0 : i32
    %c0_i32_0 = arith.constant 0 : i32
    %c0_i32_1 = arith.constant 0 : i32
    return %c0_i32, %c0_i32_0 : i32, i32
  }
  func.func @transform_2(%arg0: i32) -> (i32, i32) {
    %c0_i32 = arith.constant 0 : i32
    %c0_i32_0 = arith.constant 0 : i32
    %c0_i32_1 = arith.constant 0 : i32
    return %c0_i32, %c0_i32_0 : i32, i32
  }
  func.func @transform_3(%arg0: i32) -> (i32, i32) {
    %c0_i32 = arith.constant 0 : i32
    %c0_i32_0 = arith.constant 0 : i32
    %c0_i32_1 = arith.constant 0 : i32
    return %c0_i32, %c0_i32_0 : i32, i32
  }
  func.func @transform_4(%arg0: i32) -> (i32, i32) {
    %c0_i32 = arith.constant 0 : i32
    %c0_i32_0 = arith.constant 0 : i32
    %c0_i32_1 = arith.constant 0 : i32
    return %c0_i32, %c0_i32_0 : i32, i32
  }
  func.func @transform_5(%arg0: i32) -> (i32, i32) {
    %c0_i32 = arith.constant 0 : i32
    %c0_i32_0 = arith.constant 0 : i32
    %c0_i32_1 = arith.constant 0 : i32
    return %c0_i32, %c0_i32_0 : i32, i32
  }
  func.func @transform_6(%arg0: i32) -> (i32, i32, i32) {
    %c0_i32 = arith.constant 0 : i32
    %c0_i32_0 = arith.constant 0 : i32
    %c0_i32_1 = arith.constant 0 : i32
    return %arg0, %c0_i32, %c0_i32_0 : i32, i32, i32
  }
  func.func @transform_7(%arg0: i32) -> (i32, i32, i32) {
    %c0_i32 = arith.constant 0 : i32
    %c0_i32_0 = arith.constant 0 : i32
    %c0_i32_1 = arith.constant 0 : i32
    return %arg0, %c0_i32, %c0_i32_0 : i32, i32, i32
  }
}

module attributes {stable_mosaic.version = 11 : i64} {
  func.func @kernel(%arg0: i32, %arg1: memref<1x8x512xbf16, #tpu.memory_space<vmem>>, %arg2: memref<8x1xf32, #tpu.memory_space<vmem>>, %arg3: memref<8x1xf32, #tpu.memory_space<vmem>>, %arg4: memref<8x224xbf16, #tpu.memory_space<vmem>>, %arg5: memref<8x1xf32, #tpu.memory_space<vmem>>, %arg6: memref<27x512xf32, #tpu.memory_space<vmem>>, %arg7: memref<1x8x512xf32, #tpu.memory_space<vmem>>, %arg8: memref<1x8x512xf32, #tpu.memory_space<vmem>>, %arg9: memref<8x768xf32, #tpu.memory_space<vmem>>, %arg10: memref<224x512xbf16, #tpu.memory_space<vmem>>) attributes {dimension_semantics = [#tpu.dimension_semantics<parallel>], iteration_bounds = array<i64: 2>, scalar_prefetch = 0 : i64, scratch_operands = 2 : i64, tpu.core_type = #tpu.core_type<tc>, window_params = [{transform_indices = @transform_0, window_bounds = array<i64: 1, 8, 512>}, {pipeline_mode = #tpu.pipeline_mode<synchronous>, transform_indices = @transform_1, window_bounds = array<i64: 8, 1>}, {pipeline_mode = #tpu.pipeline_mode<synchronous>, transform_indices = @transform_2, window_bounds = array<i64: 8, 1>}, {pipeline_mode = #tpu.pipeline_mode<synchronous>, transform_indices = @transform_3, window_bounds = array<i64: 8, 224>}, {pipeline_mode = #tpu.pipeline_mode<synchronous>, transform_indices = @transform_4, window_bounds = array<i64: 8, 1>}, {pipeline_mode = #tpu.pipeline_mode<synchronous>, transform_indices = @transform_5, window_bounds = array<i64: 27, 512>}, {transform_indices = @transform_6, window_bounds = array<i64: 1, 8, 512>}, {transform_indices = @transform_7, window_bounds = array<i64: 1, 8, 512>}]} {
    %c0 = arith.constant 0 : index
    %c0_0 = arith.constant 0 : index
    %c0_1 = arith.constant 0 : index
    %0 = vector.load %arg1[%c0, %c0_0, %c0_1] : memref<1x8x512xbf16, #tpu.memory_space<vmem>>, vector<1x8x512xbf16>
    %1 = vector.shape_cast %0 : vector<1x8x512xbf16> to vector<8x512xbf16>
    %2 = arith.extf %1 : vector<8x512xbf16> to vector<8x512xf32>
    %c0_2 = arith.constant 0 : index
    %c0_3 = arith.constant 0 : index
    %3 = vector.load %arg2[%c0_2, %c0_3] : memref<8x1xf32, #tpu.memory_space<vmem>>, vector<8x1xf32>
    %4 = vector.broadcast %3 : vector<8x1xf32> to vector<8x512xf32>
    %5 = arith.mulf %2, %4 : vector<8x512xf32>
    %c0_4 = arith.constant 0 : index
    %c0_5 = arith.constant 0 : index
    %6 = vector.load %arg3[%c0_4, %c0_5] : memref<8x1xf32, #tpu.memory_space<vmem>>, vector<8x1xf32>
    %7 = vector.broadcast %6 : vector<8x1xf32> to vector<8x512xf32>
    %8 = arith.addf %5, %7 : vector<8x512xf32>
    %cst = arith.constant 0.000000e+00 : f32
    %9 = vector.broadcast %cst : f32 to vector<8x512xf32>
    %10 = arith.maximumf %8, %9 : vector<8x512xf32>
    %cst_6 = arith.constant 0.000000e+00 : f32
    %11 = vector.broadcast %cst_6 : f32 to vector<8x128xf32>
    %c0_7 = arith.constant 0 : index
    %c0_8 = arith.constant 0 : index
    %12 = vector.load %arg9[%c0_7, %c0_8] : memref<8x768xf32, #tpu.memory_space<vmem>>, vector<8x128xf32>
    tpu.vector_store %arg9[%c0_7, %c0_8], %11 {strides = array<i32>} : memref<8x768xf32, #tpu.memory_space<vmem>>, vector<8x128xf32>,
    %cst_9 = arith.constant 0.000000e+00 : f32
    %13 = vector.broadcast %cst_9 : f32 to vector<8x128xf32>
    %c0_10 = arith.constant 0 : index
    %c640 = arith.constant 640 : index
    %14 = vector.load %arg9[%c0_10, %c640] : memref<8x768xf32, #tpu.memory_space<vmem>>, vector<8x128xf32>
    tpu.vector_store %arg9[%c0_10, %c640], %13 {strides = array<i32>} : memref<8x768xf32, #tpu.memory_space<vmem>>, vector<8x128xf32>,
    %c0_11 = arith.constant 0 : index
    %c128 = arith.constant 128 : index
    %15 = vector.load %arg9[%c0_11, %c128] : memref<8x768xf32, #tpu.memory_space<vmem>>, vector<8x512xf32>
    tpu.vector_store %arg9[%c0_11, %c128], %10 {strides = array<i32>} : memref<8x768xf32, #tpu.memory_space<vmem>>, vector<8x512xf32>,
    %c0_12 = arith.constant 0 : index
    %c55 = arith.constant 55 : index
    %16 = vector.load %arg9[%c0_12, %c55] : memref<8x768xf32, #tpu.memory_space<vmem>>, vector<8x512xf32>
    %c0_13 = arith.constant 0 : index
    %c0_14 = arith.constant 0 : index
    %17 = vector.load %arg6[%c0_13, %c0_14] : memref<27x512xf32, #tpu.memory_space<vmem>>, vector<1x512xf32>
    %18 = vector.broadcast %17 : vector<1x512xf32> to vector<8x512xf32>
    %19 = arith.mulf %16, %18 : vector<8x512xf32>
    %20 = arith.truncf %19 : vector<8x512xf32> to vector<8x512xbf16>
    %c0_15 = arith.constant 0 : index
    %c0_16 = arith.constant 0 : index
    %21 = vector.load %arg10[%c0_15, %c0_16] : memref<224x512xbf16, #tpu.memory_space<vmem>>, vector<8x512xbf16>
    tpu.vector_store %arg10[%c0_15, %c0_16], %20 {strides = array<i32>} : memref<224x512xbf16, #tpu.memory_space<vmem>>, vector<8x512xbf16>,
    %c0_17 = arith.constant 0 : index
    %c56 = arith.constant 56 : index
    %22 = vector.load %arg9[%c0_17, %c56] : memref<8x768xf32, #tpu.memory_space<vmem>>, vector<8x512xf32>
    %c1 = arith.constant 1 : index
    %c0_18 = arith.constant 0 : index
    %23 = vector.load %arg6[%c1, %c0_18] : memref<27x512xf32, #tpu.memory_space<vmem>>, vector<1x512xf32>
    %24 = vector.broadcast %23 : vector<1x512xf32> to vector<8x512xf32>
    %25 = arith.mulf %22, %24 : vector<8x512xf32>
    %26 = arith.truncf %25 : vector<8x512xf32> to vector<8x512xbf16>
    %c8 = arith.constant 8 : index
    %c0_19 = arith.constant 0 : index
    %27 = vector.load %arg10[%c8, %c0_19] : memref<224x512xbf16, #tpu.memory_space<vmem>>, vector<8x512xbf16>
    tpu.vector_store %arg10[%c8, %c0_19], %26 {strides = array<i32>} : memref<224x512xbf16, #tpu.memory_space<vmem>>, vector<8x512xbf16>,
    %c0_20 = arith.constant 0 : index
    %c57 = arith.constant 57 : index
    %28 = vector.load %arg9[%c0_20, %c57] : memref<8x768xf32, #tpu.memory_space<vmem>>, vector<8x512xf32>
    %c2 = arith.constant 2 : index
    %c0_21 = arith.constant 0 : index
    %29 = vector.load %arg6[%c2, %c0_21] : memref<27x512xf32, #tpu.memory_space<vmem>>, vector<1x512xf32>
    %30 = vector.broadcast %29 : vector<1x512xf32> to vector<8x512xf32>
    %31 = arith.mulf %28, %30 : vector<8x512xf32>
    %32 = arith.truncf %31 : vector<8x512xf32> to vector<8x512xbf16>
    %c16 = arith.constant 16 : index
    %c0_22 = arith.constant 0 : index
    %33 = vector.load %arg10[%c16, %c0_22] : memref<224x512xbf16, #tpu.memory_space<vmem>>, vector<8x512xbf16>
    tpu.vector_store %arg10[%c16, %c0_22], %32 {strides = array<i32>} : memref<224x512xbf16, #tpu.memory_space<vmem>>, vector<8x512xbf16>,
    %c0_23 = arith.constant 0 : index
    %c63 = arith.constant 63 : index
    %34 = vector.load %arg9[%c0_23, %c63] : memref<8x768xf32, #tpu.memory_space<vmem>>, vector<8x512xf32>
    %c3 = arith.constant 3 : index
    %c0_24 = arith.constant 0 : index
    %35 = vector.load %arg6[%c3, %c0_24] : memref<27x512xf32, #tpu.memory_space<vmem>>, vector<1x512xf32>
    %36 = vector.broadcast %35 : vector<1x512xf32> to vector<8x512xf32>
    %37 = arith.mulf %34, %36 : vector<8x512xf32>
    %38 = arith.truncf %37 : vector<8x512xf32> to vector<8x512xbf16>
    %c24 = arith.constant 24 : index
    %c0_25 = arith.constant 0 : index
    %39 = vector.load %arg10[%c24, %c0_25] : memref<224x512xbf16, #tpu.memory_space<vmem>>, vector<8x512xbf16>
    tpu.vector_store %arg10[%c24, %c0_25], %38 {strides = array<i32>} : memref<224x512xbf16, #tpu.memory_space<vmem>>, vector<8x512xbf16>,
    %c0_26 = arith.constant 0 : index
    %c64 = arith.constant 64 : index
    %40 = vector.load %arg9[%c0_26, %c64] : memref<8x768xf32, #tpu.memory_space<vmem>>, vector<8x512xf32>
    %c4 = arith.constant 4 : index
    %c0_27 = arith.constant 0 : index
    %41 = vector.load %arg6[%c4, %c0_27] : memref<27x512xf32, #tpu.memory_space<vmem>>, vector<1x512xf32>
    %42 = vector.broadcast %41 : vector<1x512xf32> to vector<8x512xf32>
    %43 = arith.mulf %40, %42 : vector<8x512xf32>
    %44 = arith.truncf %43 : vector<8x512xf32> to vector<8x512xbf16>
    %c32 = arith.constant 32 : index
    %c0_28 = arith.constant 0 : index
    %45 = vector.load %arg10[%c32, %c0_28] : memref<224x512xbf16, #tpu.memory_space<vmem>>, vector<8x512xbf16>
    tpu.vector_store %arg10[%c32, %c0_28], %44 {strides = array<i32>} : memref<224x512xbf16, #tpu.memory_space<vmem>>, vector<8x512xbf16>,
    %c0_29 = arith.constant 0 : index
    %c65 = arith.constant 65 : index
    %46 = vector.load %arg9[%c0_29, %c65] : memref<8x768xf32, #tpu.memory_space<vmem>>, vector<8x512xf32>
    %c5 = arith.constant 5 : index
    %c0_30 = arith.constant 0 : index
    %47 = vector.load %arg6[%c5, %c0_30] : memref<27x512xf32, #tpu.memory_space<vmem>>, vector<1x512xf32>
    %48 = vector.broadcast %47 : vector<1x512xf32> to vector<8x512xf32>
    %49 = arith.mulf %46, %48 : vector<8x512xf32>
    %50 = arith.truncf %49 : vector<8x512xf32> to vector<8x512xbf16>
    %c40 = arith.constant 40 : index
    %c0_31 = arith.constant 0 : index
    %51 = vector.load %arg10[%c40, %c0_31] : memref<224x512xbf16, #tpu.memory_space<vmem>>, vector<8x512xbf16>
    tpu.vector_store %arg10[%c40, %c0_31], %50 {strides = array<i32>} : memref<224x512xbf16, #tpu.memory_space<vmem>>, vector<8x512xbf16>,
    %c0_32 = arith.constant 0 : index
    %c71 = arith.constant 71 : index
    %52 = vector.load %arg9[%c0_32, %c71] : memref<8x768xf32, #tpu.memory_space<vmem>>, vector<8x512xf32>
    %c6 = arith.constant 6 : index
    %c0_33 = arith.constant 0 : index
    %53 = vector.load %arg6[%c6, %c0_33] : memref<27x512xf32, #tpu.memory_space<vmem>>, vector<1x512xf32>
    %54 = vector.broadcast %53 : vector<1x512xf32> to vector<8x512xf32>
    %55 = arith.mulf %52, %54 : vector<8x512xf32>
    %56 = arith.truncf %55 : vector<8x512xf32> to vector<8x512xbf16>
    %c48 = arith.constant 48 : index
    %c0_34 = arith.constant 0 : index
    %57 = vector.load %arg10[%c48, %c0_34] : memref<224x512xbf16, #tpu.memory_space<vmem>>, vector<8x512xbf16>
    tpu.vector_store %arg10[%c48, %c0_34], %56 {strides = array<i32>} : memref<224x512xbf16, #tpu.memory_space<vmem>>, vector<8x512xbf16>,
    %c0_35 = arith.constant 0 : index
    %c72 = arith.constant 72 : index
    %58 = vector.load %arg9[%c0_35, %c72] : memref<8x768xf32, #tpu.memory_space<vmem>>, vector<8x512xf32>
    %c7 = arith.constant 7 : index
    %c0_36 = arith.constant 0 : index
    %59 = vector.load %arg6[%c7, %c0_36] : memref<27x512xf32, #tpu.memory_space<vmem>>, vector<1x512xf32>
    %60 = vector.broadcast %59 : vector<1x512xf32> to vector<8x512xf32>
    %61 = arith.mulf %58, %60 : vector<8x512xf32>
    %62 = arith.truncf %61 : vector<8x512xf32> to vector<8x512xbf16>
    %c56_37 = arith.constant 56 : index
    %c0_38 = arith.constant 0 : index
    %63 = vector.load %arg10[%c56_37, %c0_38] : memref<224x512xbf16, #tpu.memory_space<vmem>>, vector<8x512xbf16>
    tpu.vector_store %arg10[%c56_37, %c0_38], %62 {strides = array<i32>} : memref<224x512xbf16, #tpu.memory_space<vmem>>, vector<8x512xbf16>,
    %c0_39 = arith.constant 0 : index
    %c73 = arith.constant 73 : index
    %64 = vector.load %arg9[%c0_39, %c73] : memref<8x768xf32, #tpu.memory_space<vmem>>, vector<8x512xf32>
    %c8_40 = arith.constant 8 : index
    %c0_41 = arith.constant 0 : index
    %65 = vector.load %arg6[%c8_40, %c0_41] : memref<27x512xf32, #tpu.memory_space<vmem>>, vector<1x512xf32>
    %66 = vector.broadcast %65 : vector<1x512xf32> to vector<8x512xf32>
    %67 = arith.mulf %64, %66 : vector<8x512xf32>
    %68 = arith.truncf %67 : vector<8x512xf32> to vector<8x512xbf16>
    %c64_42 = arith.constant 64 : index
    %c0_43 = arith.constant 0 : index
    %69 = vector.load %arg10[%c64_42, %c0_43] : memref<224x512xbf16, #tpu.memory_space<vmem>>, vector<8x512xbf16>
    tpu.vector_store %arg10[%c64_42, %c0_43], %68 {strides = array<i32>} : memref<224x512xbf16, #tpu.memory_space<vmem>>, vector<8x512xbf16>,
    %c0_44 = arith.constant 0 : index
    %c119 = arith.constant 119 : index
    %70 = vector.load %arg9[%c0_44, %c119] : memref<8x768xf32, #tpu.memory_space<vmem>>, vector<8x512xf32>
    %c9 = arith.constant 9 : index
    %c0_45 = arith.constant 0 : index
    %71 = vector.load %arg6[%c9, %c0_45] : memref<27x512xf32, #tpu.memory_space<vmem>>, vector<1x512xf32>
    %72 = vector.broadcast %71 : vector<1x512xf32> to vector<8x512xf32>
    %73 = arith.mulf %70, %72 : vector<8x512xf32>
    %74 = arith.truncf %73 : vector<8x512xf32> to vector<8x512xbf16>
    %c72_46 = arith.constant 72 : index
    %c0_47 = arith.constant 0 : index
    %75 = vector.load %arg10[%c72_46, %c0_47] : memref<224x512xbf16, #tpu.memory_space<vmem>>, vector<8x512xbf16>
    tpu.vector_store %arg10[%c72_46, %c0_47], %74 {strides = array<i32>} : memref<224x512xbf16, #tpu.memory_space<vmem>>, vector<8x512xbf16>,
    %c0_48 = arith.constant 0 : index
    %c120 = arith.constant 120 : index
    %76 = vector.load %arg9[%c0_48, %c120] : memref<8x768xf32, #tpu.memory_space<vmem>>, vector<8x512xf32>
    %c10 = arith.constant 10 : index
    %c0_49 = arith.constant 0 : index
    %77 = vector.load %arg6[%c10, %c0_49] : memref<27x512xf32, #tpu.memory_space<vmem>>, vector<1x512xf32>
    %78 = vector.broadcast %77 : vector<1x512xf32> to vector<8x512xf32>
    %79 = arith.mulf %76, %78 : vector<8x512xf32>
    %80 = arith.truncf %79 : vector<8x512xf32> to vector<8x512xbf16>
    %c80 = arith.constant 80 : index
    %c0_50 = arith.constant 0 : index
    %81 = vector.load %arg10[%c80, %c0_50] : memref<224x512xbf16, #tpu.memory_space<vmem>>, vector<8x512xbf16>
    tpu.vector_store %arg10[%c80, %c0_50], %80 {strides = array<i32>} : memref<224x512xbf16, #tpu.memory_space<vmem>>, vector<8x512xbf16>,
    %c0_51 = arith.constant 0 : index
    %c121 = arith.constant 121 : index
    %82 = vector.load %arg9[%c0_51, %c121] : memref<8x768xf32, #tpu.memory_space<vmem>>, vector<8x512xf32>
    %c11 = arith.constant 11 : index
    %c0_52 = arith.constant 0 : index
    %83 = vector.load %arg6[%c11, %c0_52] : memref<27x512xf32, #tpu.memory_space<vmem>>, vector<1x512xf32>
    %84 = vector.broadcast %83 : vector<1x512xf32> to vector<8x512xf32>
    %85 = arith.mulf %82, %84 : vector<8x512xf32>
    %86 = arith.truncf %85 : vector<8x512xf32> to vector<8x512xbf16>
    %c88 = arith.constant 88 : index
    %c0_53 = arith.constant 0 : index
    %87 = vector.load %arg10[%c88, %c0_53] : memref<224x512xbf16, #tpu.memory_space<vmem>>, vector<8x512xbf16>
    tpu.vector_store %arg10[%c88, %c0_53], %86 {strides = array<i32>} : memref<224x512xbf16, #tpu.memory_space<vmem>>, vector<8x512xbf16>,
    %c0_54 = arith.constant 0 : index
    %c127 = arith.constant 127 : index
    %88 = vector.load %arg9[%c0_54, %c127] : memref<8x768xf32, #tpu.memory_space<vmem>>, vector<8x512xf32>
    %c12 = arith.constant 12 : index
    %c0_55 = arith.constant 0 : index
    %89 = vector.load %arg6[%c12, %c0_55] : memref<27x512xf32, #tpu.memory_space<vmem>>, vector<1x512xf32>
    %90 = vector.broadcast %89 : vector<1x512xf32> to vector<8x512xf32>
    %91 = arith.mulf %88, %90 : vector<8x512xf32>
    %92 = arith.truncf %91 : vector<8x512xf32> to vector<8x512xbf16>
    %c96 = arith.constant 96 : index
    %c0_56 = arith.constant 0 : index
    %93 = vector.load %arg10[%c96, %c0_56] : memref<224x512xbf16, #tpu.memory_space<vmem>>, vector<8x512xbf16>
    tpu.vector_store %arg10[%c96, %c0_56], %92 {strides = array<i32>} : memref<224x512xbf16, #tpu.memory_space<vmem>>, vector<8x512xbf16>,
    %c0_57 = arith.constant 0 : index
    %c128_58 = arith.constant 128 : index
    %94 = vector.load %arg9[%c0_57, %c128_58] : memref<8x768xf32, #tpu.memory_space<vmem>>, vector<8x512xf32>
    %c13 = arith.constant 13 : index
    %c0_59 = arith.constant 0 : index
    %95 = vector.load %arg6[%c13, %c0_59] : memref<27x512xf32, #tpu.memory_space<vmem>>, vector<1x512xf32>
    %96 = vector.broadcast %95 : vector<1x512xf32> to vector<8x512xf32>
    %97 = arith.mulf %94, %96 : vector<8x512xf32>
    %98 = arith.truncf %97 : vector<8x512xf32> to vector<8x512xbf16>
    %c104 = arith.constant 104 : index
    %c0_60 = arith.constant 0 : index
    %99 = vector.load %arg10[%c104, %c0_60] : memref<224x512xbf16, #tpu.memory_space<vmem>>, vector<8x512xbf16>
    tpu.vector_store %arg10[%c104, %c0_60], %98 {strides = array<i32>} : memref<224x512xbf16, #tpu.memory_space<vmem>>, vector<8x512xbf16>,
    %c0_61 = arith.constant 0 : index
    %c129 = arith.constant 129 : index
    %100 = vector.load %arg9[%c0_61, %c129] : memref<8x768xf32, #tpu.memory_space<vmem>>, vector<8x512xf32>
    %c14 = arith.constant 14 : index
    %c0_62 = arith.constant 0 : index
    %101 = vector.load %arg6[%c14, %c0_62] : memref<27x512xf32, #tpu.memory_space<vmem>>, vector<1x512xf32>
    %102 = vector.broadcast %101 : vector<1x512xf32> to vector<8x512xf32>
    %103 = arith.mulf %100, %102 : vector<8x512xf32>
    %104 = arith.truncf %103 : vector<8x512xf32> to vector<8x512xbf16>
    %c112 = arith.constant 112 : index
    %c0_63 = arith.constant 0 : index
    %105 = vector.load %arg10[%c112, %c0_63] : memref<224x512xbf16, #tpu.memory_space<vmem>>, vector<8x512xbf16>
    tpu.vector_store %arg10[%c112, %c0_63], %104 {strides = array<i32>} : memref<224x512xbf16, #tpu.memory_space<vmem>>, vector<8x512xbf16>,
    %c0_64 = arith.constant 0 : index
    %c135 = arith.constant 135 : index
    %106 = vector.load %arg9[%c0_64, %c135] : memref<8x768xf32, #tpu.memory_space<vmem>>, vector<8x512xf32>
    %c15 = arith.constant 15 : index
    %c0_65 = arith.constant 0 : index
    %107 = vector.load %arg6[%c15, %c0_65] : memref<27x512xf32, #tpu.memory_space<vmem>>, vector<1x512xf32>
    %108 = vector.broadcast %107 : vector<1x512xf32> to vector<8x512xf32>
    %109 = arith.mulf %106, %108 : vector<8x512xf32>
    %110 = arith.truncf %109 : vector<8x512xf32> to vector<8x512xbf16>
    %c120_66 = arith.constant 120 : index
    %c0_67 = arith.constant 0 : index
    %111 = vector.load %arg10[%c120_66, %c0_67] : memref<224x512xbf16, #tpu.memory_space<vmem>>, vector<8x512xbf16>
    tpu.vector_store %arg10[%c120_66, %c0_67], %110 {strides = array<i32>} : memref<224x512xbf16, #tpu.memory_space<vmem>>, vector<8x512xbf16>,
    %c0_68 = arith.constant 0 : index
    %c136 = arith.constant 136 : index
    %112 = vector.load %arg9[%c0_68, %c136] : memref<8x768xf32, #tpu.memory_space<vmem>>, vector<8x512xf32>
    %c16_69 = arith.constant 16 : index
    %c0_70 = arith.constant 0 : index
    %113 = vector.load %arg6[%c16_69, %c0_70] : memref<27x512xf32, #tpu.memory_space<vmem>>, vector<1x512xf32>
    %114 = vector.broadcast %113 : vector<1x512xf32> to vector<8x512xf32>
    %115 = arith.mulf %112, %114 : vector<8x512xf32>
    %116 = arith.truncf %115 : vector<8x512xf32> to vector<8x512xbf16>
    %c128_71 = arith.constant 128 : index
    %c0_72 = arith.constant 0 : index
    %117 = vector.load %arg10[%c128_71, %c0_72] : memref<224x512xbf16, #tpu.memory_space<vmem>>, vector<8x512xbf16>
    tpu.vector_store %arg10[%c128_71, %c0_72], %116 {strides = array<i32>} : memref<224x512xbf16, #tpu.memory_space<vmem>>, vector<8x512xbf16>,
    %c0_73 = arith.constant 0 : index
    %c137 = arith.constant 137 : index
    %118 = vector.load %arg9[%c0_73, %c137] : memref<8x768xf32, #tpu.memory_space<vmem>>, vector<8x512xf32>
    %c17 = arith.constant 17 : index
    %c0_74 = arith.constant 0 : index
    %119 = vector.load %arg6[%c17, %c0_74] : memref<27x512xf32, #tpu.memory_space<vmem>>, vector<1x512xf32>
    %120 = vector.broadcast %119 : vector<1x512xf32> to vector<8x512xf32>
    %121 = arith.mulf %118, %120 : vector<8x512xf32>
    %122 = arith.truncf %121 : vector<8x512xf32> to vector<8x512xbf16>
    %c136_75 = arith.constant 136 : index
    %c0_76 = arith.constant 0 : index
    %123 = vector.load %arg10[%c136_75, %c0_76] : memref<224x512xbf16, #tpu.memory_space<vmem>>, vector<8x512xbf16>
    tpu.vector_store %arg10[%c136_75, %c0_76], %122 {strides = array<i32>} : memref<224x512xbf16, #tpu.memory_space<vmem>>, vector<8x512xbf16>,
    %c0_77 = arith.constant 0 : index
    %c183 = arith.constant 183 : index
    %124 = vector.load %arg9[%c0_77, %c183] : memref<8x768xf32, #tpu.memory_space<vmem>>, vector<8x512xf32>
    %c18 = arith.constant 18 : index
    %c0_78 = arith.constant 0 : index
    %125 = vector.load %arg6[%c18, %c0_78] : memref<27x512xf32, #tpu.memory_space<vmem>>, vector<1x512xf32>
    %126 = vector.broadcast %125 : vector<1x512xf32> to vector<8x512xf32>
    %127 = arith.mulf %124, %126 : vector<8x512xf32>
    %128 = arith.truncf %127 : vector<8x512xf32> to vector<8x512xbf16>
    %c144 = arith.constant 144 : index
    %c0_79 = arith.constant 0 : index
    %129 = vector.load %arg10[%c144, %c0_79] : memref<224x512xbf16, #tpu.memory_space<vmem>>, vector<8x512xbf16>
    tpu.vector_store %arg10[%c144, %c0_79], %128 {strides = array<i32>} : memref<224x512xbf16, #tpu.memory_space<vmem>>, vector<8x512xbf16>,
    %c0_80 = arith.constant 0 : index
    %c184 = arith.constant 184 : index
    %130 = vector.load %arg9[%c0_80, %c184] : memref<8x768xf32, #tpu.memory_space<vmem>>, vector<8x512xf32>
    %c19 = arith.constant 19 : index
    %c0_81 = arith.constant 0 : index
    %131 = vector.load %arg6[%c19, %c0_81] : memref<27x512xf32, #tpu.memory_space<vmem>>, vector<1x512xf32>
    %132 = vector.broadcast %131 : vector<1x512xf32> to vector<8x512xf32>
    %133 = arith.mulf %130, %132 : vector<8x512xf32>
    %134 = arith.truncf %133 : vector<8x512xf32> to vector<8x512xbf16>
    %c152 = arith.constant 152 : index
    %c0_82 = arith.constant 0 : index
    %135 = vector.load %arg10[%c152, %c0_82] : memref<224x512xbf16, #tpu.memory_space<vmem>>, vector<8x512xbf16>
    tpu.vector_store %arg10[%c152, %c0_82], %134 {strides = array<i32>} : memref<224x512xbf16, #tpu.memory_space<vmem>>, vector<8x512xbf16>,
    %c0_83 = arith.constant 0 : index
    %c185 = arith.constant 185 : index
    %136 = vector.load %arg9[%c0_83, %c185] : memref<8x768xf32, #tpu.memory_space<vmem>>, vector<8x512xf32>
    %c20 = arith.constant 20 : index
    %c0_84 = arith.constant 0 : index
    %137 = vector.load %arg6[%c20, %c0_84] : memref<27x512xf32, #tpu.memory_space<vmem>>, vector<1x512xf32>
    %138 = vector.broadcast %137 : vector<1x512xf32> to vector<8x512xf32>
    %139 = arith.mulf %136, %138 : vector<8x512xf32>
    %140 = arith.truncf %139 : vector<8x512xf32> to vector<8x512xbf16>
    %c160 = arith.constant 160 : index
    %c0_85 = arith.constant 0 : index
    %141 = vector.load %arg10[%c160, %c0_85] : memref<224x512xbf16, #tpu.memory_space<vmem>>, vector<8x512xbf16>
    tpu.vector_store %arg10[%c160, %c0_85], %140 {strides = array<i32>} : memref<224x512xbf16, #tpu.memory_space<vmem>>, vector<8x512xbf16>,
    %c0_86 = arith.constant 0 : index
    %c191 = arith.constant 191 : index
    %142 = vector.load %arg9[%c0_86, %c191] : memref<8x768xf32, #tpu.memory_space<vmem>>, vector<8x512xf32>
    %c21 = arith.constant 21 : index
    %c0_87 = arith.constant 0 : index
    %143 = vector.load %arg6[%c21, %c0_87] : memref<27x512xf32, #tpu.memory_space<vmem>>, vector<1x512xf32>
    %144 = vector.broadcast %143 : vector<1x512xf32> to vector<8x512xf32>
    %145 = arith.mulf %142, %144 : vector<8x512xf32>
    %146 = arith.truncf %145 : vector<8x512xf32> to vector<8x512xbf16>
    %c168 = arith.constant 168 : index
    %c0_88 = arith.constant 0 : index
    %147 = vector.load %arg10[%c168, %c0_88] : memref<224x512xbf16, #tpu.memory_space<vmem>>, vector<8x512xbf16>
    tpu.vector_store %arg10[%c168, %c0_88], %146 {strides = array<i32>} : memref<224x512xbf16, #tpu.memory_space<vmem>>, vector<8x512xbf16>,
    %c0_89 = arith.constant 0 : index
    %c192 = arith.constant 192 : index
    %148 = vector.load %arg9[%c0_89, %c192] : memref<8x768xf32, #tpu.memory_space<vmem>>, vector<8x512xf32>
    %c22 = arith.constant 22 : index
    %c0_90 = arith.constant 0 : index
    %149 = vector.load %arg6[%c22, %c0_90] : memref<27x512xf32, #tpu.memory_space<vmem>>, vector<1x512xf32>
    %150 = vector.broadcast %149 : vector<1x512xf32> to vector<8x512xf32>
    %151 = arith.mulf %148, %150 : vector<8x512xf32>
    %152 = arith.truncf %151 : vector<8x512xf32> to vector<8x512xbf16>
    %c176 = arith.constant 176 : index
    %c0_91 = arith.constant 0 : index
    %153 = vector.load %arg10[%c176, %c0_91] : memref<224x512xbf16, #tpu.memory_space<vmem>>, vector<8x512xbf16>
    tpu.vector_store %arg10[%c176, %c0_91], %152 {strides = array<i32>} : memref<224x512xbf16, #tpu.memory_space<vmem>>, vector<8x512xbf16>,
    %c0_92 = arith.constant 0 : index
    %c193 = arith.constant 193 : index
    %154 = vector.load %arg9[%c0_92, %c193] : memref<8x768xf32, #tpu.memory_space<vmem>>, vector<8x512xf32>
    %c23 = arith.constant 23 : index
    %c0_93 = arith.constant 0 : index
    %155 = vector.load %arg6[%c23, %c0_93] : memref<27x512xf32, #tpu.memory_space<vmem>>, vector<1x512xf32>
    %156 = vector.broadcast %155 : vector<1x512xf32> to vector<8x512xf32>
    %157 = arith.mulf %154, %156 : vector<8x512xf32>
    %158 = arith.truncf %157 : vector<8x512xf32> to vector<8x512xbf16>
    %c184_94 = arith.constant 184 : index
    %c0_95 = arith.constant 0 : index
    %159 = vector.load %arg10[%c184_94, %c0_95] : memref<224x512xbf16, #tpu.memory_space<vmem>>, vector<8x512xbf16>
    tpu.vector_store %arg10[%c184_94, %c0_95], %158 {strides = array<i32>} : memref<224x512xbf16, #tpu.memory_space<vmem>>, vector<8x512xbf16>,
    %c0_96 = arith.constant 0 : index
    %c199 = arith.constant 199 : index
    %160 = vector.load %arg9[%c0_96, %c199] : memref<8x768xf32, #tpu.memory_space<vmem>>, vector<8x512xf32>
    %c24_97 = arith.constant 24 : index
    %c0_98 = arith.constant 0 : index
    %161 = vector.load %arg6[%c24_97, %c0_98] : memref<27x512xf32, #tpu.memory_space<vmem>>, vector<1x512xf32>
    %162 = vector.broadcast %161 : vector<1x512xf32> to vector<8x512xf32>
    %163 = arith.mulf %160, %162 : vector<8x512xf32>
    %164 = arith.truncf %163 : vector<8x512xf32> to vector<8x512xbf16>
    %c192_99 = arith.constant 192 : index
    %c0_100 = arith.constant 0 : index
    %165 = vector.load %arg10[%c192_99, %c0_100] : memref<224x512xbf16, #tpu.memory_space<vmem>>, vector<8x512xbf16>
    tpu.vector_store %arg10[%c192_99, %c0_100], %164 {strides = array<i32>} : memref<224x512xbf16, #tpu.memory_space<vmem>>, vector<8x512xbf16>,
    %c0_101 = arith.constant 0 : index
    %c200 = arith.constant 200 : index
    %166 = vector.load %arg9[%c0_101, %c200] : memref<8x768xf32, #tpu.memory_space<vmem>>, vector<8x512xf32>
    %c25 = arith.constant 25 : index
    %c0_102 = arith.constant 0 : index
    %167 = vector.load %arg6[%c25, %c0_102] : memref<27x512xf32, #tpu.memory_space<vmem>>, vector<1x512xf32>
    %168 = vector.broadcast %167 : vector<1x512xf32> to vector<8x512xf32>
    %169 = arith.mulf %166, %168 : vector<8x512xf32>
    %170 = arith.truncf %169 : vector<8x512xf32> to vector<8x512xbf16>
    %c200_103 = arith.constant 200 : index
    %c0_104 = arith.constant 0 : index
    %171 = vector.load %arg10[%c200_103, %c0_104] : memref<224x512xbf16, #tpu.memory_space<vmem>>, vector<8x512xbf16>
    tpu.vector_store %arg10[%c200_103, %c0_104], %170 {strides = array<i32>} : memref<224x512xbf16, #tpu.memory_space<vmem>>, vector<8x512xbf16>,
    %c0_105 = arith.constant 0 : index
    %c201 = arith.constant 201 : index
    %172 = vector.load %arg9[%c0_105, %c201] : memref<8x768xf32, #tpu.memory_space<vmem>>, vector<8x512xf32>
    %c26 = arith.constant 26 : index
    %c0_106 = arith.constant 0 : index
    %173 = vector.load %arg6[%c26, %c0_106] : memref<27x512xf32, #tpu.memory_space<vmem>>, vector<1x512xf32>
    %174 = vector.broadcast %173 : vector<1x512xf32> to vector<8x512xf32>
    %175 = arith.mulf %172, %174 : vector<8x512xf32>
    %176 = arith.truncf %175 : vector<8x512xf32> to vector<8x512xbf16>
    %c208 = arith.constant 208 : index
    %c0_107 = arith.constant 0 : index
    %177 = vector.load %arg10[%c208, %c0_107] : memref<224x512xbf16, #tpu.memory_space<vmem>>, vector<8x512xbf16>
    tpu.vector_store %arg10[%c208, %c0_107], %176 {strides = array<i32>} : memref<224x512xbf16, #tpu.memory_space<vmem>>, vector<8x512xbf16>,
    %c0_108 = arith.constant 0 : index
    %c0_109 = arith.constant 0 : index
    %c0_110 = arith.constant 0 : index
    %178 = vector.load %arg7[%c0_108, %c0_109, %c0_110] : memref<1x8x512xf32, #tpu.memory_space<vmem>>, vector<1x8x512xf32>
    %179 = vector.shape_cast %178 : vector<1x8x512xf32> to vector<8x512xf32>
    %180 = arith.truncf %179 : vector<8x512xf32> to vector<8x512xbf16>
    %c216 = arith.constant 216 : index
    %c0_111 = arith.constant 0 : index
    %181 = vector.load %arg10[%c216, %c0_111] : memref<224x512xbf16, #tpu.memory_space<vmem>>, vector<8x512xbf16>
    tpu.vector_store %arg10[%c216, %c0_111], %180 {strides = array<i32>} : memref<224x512xbf16, #tpu.memory_space<vmem>>, vector<8x512xbf16>,
    %c0_112 = arith.constant 0 : index
    %c0_113 = arith.constant 0 : index
    %182 = vector.load %arg4[%c0_112, %c0_113] : memref<8x224xbf16, #tpu.memory_space<vmem>>, vector<8x224xbf16>
    %c0_114 = arith.constant 0 : index
    %c0_115 = arith.constant 0 : index
    %183 = vector.load %arg10[%c0_114, %c0_115] : memref<224x512xbf16, #tpu.memory_space<vmem>>, vector<224x512xbf16>
    %cst_116 = arith.constant dense<0.000000e+00> : vector<8x512xf32>
    %184 = tpu.matmul %182, %183, %cst_116 {dimension_numbers = #tpu.dot_dimension_numbers<[1], [0], [0], [1], [0, 0, 1, 1], [], []>} : vector<8x224xbf16>, vector<224x512xbf16>, vector<8x512xf32> -> vector<8x512xf32>
    %c0_117 = arith.constant 0 : index
    %c0_118 = arith.constant 0 : index
    %185 = vector.load %arg5[%c0_117, %c0_118] : memref<8x1xf32, #tpu.memory_space<vmem>>, vector<8x1xf32>
    %186 = vector.broadcast %185 : vector<8x1xf32> to vector<8x512xf32>
    %187 = arith.addf %184, %186 : vector<8x512xf32>
    %c0_119 = arith.constant 0 : index
    %c0_120 = arith.constant 0 : index
    %c0_121 = arith.constant 0 : index
    %188 = vector.load %arg8[%c0_119, %c0_120, %c0_121] : memref<1x8x512xf32, #tpu.memory_space<vmem>>, vector<1x8x512xf32>
    %189 = vector.shape_cast %188 : vector<1x8x512xf32> to vector<8x512xf32>
    %190 = vector.shape_cast %187 : vector<8x512xf32> to vector<1x8x512xf32>
    tpu.vector_store %arg8[%c0_119, %c0_120, %c0_121], %190 {strides = array<i32>} : memref<1x8x512xf32, #tpu.memory_space<vmem>>, vector<1x8x512xf32>,
    return
  }
  func.func @transform_0(%arg0: i32) -> (i32, i32, i32) {
    %c0_i32 = arith.constant 0 : i32
    %c0_i32_0 = arith.constant 0 : i32
    %c0_i32_1 = arith.constant 0 : i32
    return %arg0, %c0_i32, %c0_i32_0 : i32, i32, i32
  }
  func.func @transform_1(%arg0: i32) -> (i32, i32) {
    %c0_i32 = arith.constant 0 : i32
    %c0_i32_0 = arith.constant 0 : i32
    %c0_i32_1 = arith.constant 0 : i32
    return %c0_i32, %c0_i32_0 : i32, i32
  }
  func.func @transform_2(%arg0: i32) -> (i32, i32) {
    %c0_i32 = arith.constant 0 : i32
    %c0_i32_0 = arith.constant 0 : i32
    %c0_i32_1 = arith.constant 0 : i32
    return %c0_i32, %c0_i32_0 : i32, i32
  }
  func.func @transform_3(%arg0: i32) -> (i32, i32) {
    %c0_i32 = arith.constant 0 : i32
    %c0_i32_0 = arith.constant 0 : i32
    %c0_i32_1 = arith.constant 0 : i32
    return %c0_i32, %c0_i32_0 : i32, i32
  }
  func.func @transform_4(%arg0: i32) -> (i32, i32) {
    %c0_i32 = arith.constant 0 : i32
    %c0_i32_0 = arith.constant 0 : i32
    %c0_i32_1 = arith.constant 0 : i32
    return %c0_i32, %c0_i32_0 : i32, i32
  }
  func.func @transform_5(%arg0: i32) -> (i32, i32) {
    %c0_i32 = arith.constant 0 : i32
    %c0_i32_0 = arith.constant 0 : i32
    %c0_i32_1 = arith.constant 0 : i32
    return %c0_i32, %c0_i32_0 : i32, i32
  }
  func.func @transform_6(%arg0: i32) -> (i32, i32, i32) {
    %c0_i32 = arith.constant 0 : i32
    %c0_i32_0 = arith.constant 0 : i32
    %c0_i32_1 = arith.constant 0 : i32
    return %arg0, %c0_i32, %c0_i32_0 : i32, i32, i32
  }
  func.func @transform_7(%arg0: i32) -> (i32, i32, i32) {
    %c0_i32 = arith.constant 0 : i32
    %c0_i32_0 = arith.constant 0 : i32
    %c0_i32_1 = arith.constant 0 : i32
    return %arg0, %c0_i32, %c0_i32_0 : i32, i32, i32
  }
}

</mosaic_0001>

<llo_original>
// kernel: resblock3d_forward.2
$region0: #{resblock3d_forward.2}
  #allocation0 [shape = 'u32[]', space=smem, size = 0x4, offset = 0x4, fixed_abs, tag = 'smem constant byte address 0x4 - core index']
  #allocation1 [shape = 'u32[144,128]{1,0:T(1,128)}', space=vmem, size = 0x12000, scoped, tag = 'internal scratch']
  #allocation2 [shape = 'f32[8,768]{1,0:T(8,128)}', space=vmem, size = 0x6000, scoped, tag = 'scratch operand']
  #allocation3 [shape = 'bf16[216,512]{1,0:T(8,128)(2,1)}', space=vmem, size = 0x36000, scoped, tag = 'scratch operand']
  %s0 = inlined_call_operand.vmem [shape: f32[2,8,512], index: 0, kind: input, shape index: {}]
  %s1 = inlined_call_operand.vmem [shape: f32[8,1], index: 1, kind: input, shape index: {}]
  %s2 = inlined_call_operand.vmem [shape: f32[8,1], index: 2, kind: input, shape index: {}]
  %s3 = inlined_call_operand.vmem [shape: bf16[8,216], index: 3, kind: input, shape index: {}]
  %s4 = inlined_call_operand.vmem [shape: f32[8,1], index: 4, kind: input, shape index: {}]
  %s5 = inlined_call_operand.vmem [shape: f32[27,512], index: 5, kind: input, shape index: {}]
  %s6 = inlined_call_operand.vmem [shape: bf16[2,8,512], index: 6, kind: output, shape index: {0}]
  %s7 = inlined_call_operand.vmem [shape: f32[2,8,2], index: 7, kind: output, shape index: {1}]
  %8 = xla_tuple %s6, %s7
  %s9 = sld [smem:[#allocation0]]
  $region65: #{resblock3d_forward.2} parent=0
    _
  %s11 = ssub.s32 1, %s9
  %s12 = scalar_select 0, %s11, %s9
  loop: start=0, step=1, limit=4
  $region2: #{resblock3d_forward.2} parent=0 // loop_pre_header
    _
  $region3: #{resblock3d_forward.2} parent=0 // loop_header
    %s14 = sphi 0, %s18
    %p15 = scmp.ge.s32.totalorder %s14, 4
    %s24 = sphi 0, %s26
    %s27 = sphi 0, %s24
    %s28 = sphi 0, %s27
    %s44 = sphi 0, %s28
    %s48 = sphi 0, %s48
    %s50 = sphi 0, %s48
    %s51 = sphi 0, %s50
    %s65 = sphi 0, %s51
    %s69 = sphi 0, %s69
    %s71 = sphi 0, %s69
    %s72 = sphi 0, %s71
    %s86 = sphi 0, %s72
    %s90 = sphi 0, %s90
    %s92 = sphi 0, %s90
    %s93 = sphi 0, %s92
    %s107 = sphi 0, %s93
    %s111 = sphi 0, %s111
    %s113 = sphi 0, %s111
    %s114 = sphi 0, %s113
    %s128 = sphi 0, %s114
    %s132 = sphi 0, %s132
    %s134 = sphi 0, %s132
    %s135 = sphi 0, %s134
    %s149 = sphi 0, %s135
    %s155 = sphi 0, %s157
    %s158 = sphi 0, %s155
    %s159 = sphi 0, %s158
    %s175 = sphi 0, %s159
    %s181 = sphi 0, %s183
    %s184 = sphi 0, %s181
    %s185 = sphi 0, %s184
    %s201 = sphi 0, %s185
  $region4: #{resblock3d_forward.2} parent=0 // loop_header_branch
    %17 = sbr.rel (%p15) target = $region8
  $region5: #{resblock3d_forward.2} parent=0 // loop_body
    %s19 = ssub.s32 %s14, 1
    %s20 = ssub.s32 %s14, 2
    %s21 = sadd.s32 %s14, 1
    %s22 = ssub.s32 %s14, %s21
    %p23 = scmp.eq.s32.totalorder %s22, 0
    %s25 = sadd.s32 %s24, 1
    %s26 = scalar_select %p23, %s24, %s25
    %p29 = pneg %p23
    %p30 = scmp.eq.s32.totalorder %s14, 1
    %p31 = por %p29, %p30
    %p32 = scmp.ne.s32.totalorder %s24, %s27
    %p33 = scmp.eq.s32.totalorder %s14, 0
    %p34 = por %p32, %p33
    %p35 = scmp.ne.s32.totalorder %s24, %s27
    %p36 = scmp.eq.s32.totalorder %s19, 1
    %p37 = por %p35, %p36
    %p38 = scmp.ne.s32.totalorder %s27, %s28
    %p39 = scmp.eq.s32.totalorder %s19, 0
    %p40 = por %p38, %p39
    %p41 = scmp.ne.s32.totalorder %s27, %s28
    %p42 = scmp.eq.s32.totalorder %s20, 1
    %p43 = por %p41, %p42
    %p45 = scmp.ne.s32.totalorder %s28, %s44
    %p46 = scmp.eq.s32.totalorder %s20, 0
    %p47 = por %p45, %p46
    %s49 = sadd.s32 %s48, 1
    %p52 = scmp.eq.s32.totalorder %s14, 1
    %p53 = scmp.ne.s32.totalorder %s48, %s50
    %p54 = scmp.eq.s32.totalorder %s14, 0
    %p55 = por %p53, %p54
    %p56 = scmp.ne.s32.totalorder %s48, %s50
    %p57 = scmp.eq.s32.totalorder %s19, 1
    %p58 = por %p56, %p57
    %p59 = scmp.ne.s32.totalorder %s50, %s51
    %p60 = scmp.eq.s32.totalorder %s19, 0
    %p61 = por %p59, %p60
    %p62 = scmp.ne.s32.totalorder %s50, %s51
    %p63 = scmp.eq.s32.totalorder %s20, 1
    %p64 = por %p62, %p63
    %p66 = scmp.ne.s32.totalorder %s51, %s65
    %p67 = scmp.eq.s32.totalorder %s20, 0
    %p68 = por %p66, %p67
    %s70 = sadd.s32 %s69, 1
    %p73 = scmp.eq.s32.totalorder %s14, 1
    %p74 = scmp.ne.s32.totalorder %s69, %s71
    %p75 = scmp.eq.s32.totalorder %s14, 0
    %p76 = por %p74, %p75
    %p77 = scmp.ne.s32.totalorder %s69, %s71
    %p78 = scmp.eq.s32.totalorder %s19, 1
    %p79 = por %p77, %p78
    %p80 = scmp.ne.s32.totalorder %s71, %s72
    %p81 = scmp.eq.s32.totalorder %s19, 0
    %p82 = por %p80, %p81
    %p83 = scmp.ne.s32.totalorder %s71, %s72
    %p84 = scmp.eq.s32.totalorder %s20, 1
    %p85 = por %p83, %p84
    %p87 = scmp.ne.s32.totalorder %s72, %s86
    %p88 = scmp.eq.s32.totalorder %s20, 0
    %p89 = por %p87, %p88
    %s91 = sadd.s32 %s90, 1
    %p94 = scmp.eq.s32.totalorder %s14, 1
    %p95 = scmp.ne.s32.totalorder %s90, %s92
    %p96 = scmp.eq.s32.totalorder %s14, 0
    %p97 = por %p95, %p96
    %p98 = scmp.ne.s32.totalorder %s90, %s92
    %p99 = scmp.eq.s32.totalorder %s19, 1
    %p100 = por %p98, %p99
    %p101 = scmp.ne.s32.totalorder %s92, %s93
    %p102 = scmp.eq.s32.totalorder %s19, 0
    %p103 = por %p101, %p102
    %p104 = scmp.ne.s32.totalorder %s92, %s93
    %p105 = scmp.eq.s32.totalorder %s20, 1
    %p106 = por %p104, %p105
    %p108 = scmp.ne.s32.totalorder %s93, %s107
    %p109 = scmp.eq.s32.totalorder %s20, 0
    %p110 = por %p108, %p109
    %s112 = sadd.s32 %s111, 1
    %p115 = scmp.eq.s32.totalorder %s14, 1
    %p116 = scmp.ne.s32.totalorder %s111, %s113
    %p117 = scmp.eq.s32.totalorder %s14, 0
    %p118 = por %p116, %p117
    %p119 = scmp.ne.s32.totalorder %s111, %s113
    %p120 = scmp.eq.s32.totalorder %s19, 1
    %p121 = por %p119, %p120
    %p122 = scmp.ne.s32.totalorder %s113, %s114
    %p123 = scmp.eq.s32.totalorder %s19, 0
    %p124 = por %p122, %p123
    %p125 = scmp.ne.s32.totalorder %s113, %s114
    %p126 = scmp.eq.s32.totalorder %s20, 1
    %p127 = por %p125, %p126
    %p129 = scmp.ne.s32.totalorder %s114, %s128
    %p130 = scmp.eq.s32.totalorder %s20, 0
    %p131 = por %p129, %p130
    %s133 = sadd.s32 %s132, 1
    %p136 = scmp.eq.s32.totalorder %s14, 1
    %p137 = scmp.ne.s32.totalorder %s132, %s134
    %p138 = scmp.eq.s32.totalorder %s14, 0
    %p139 = por %p137, %p138
    %p140 = scmp.ne.s32.totalorder %s132, %s134
    %p141 = scmp.eq.s32.totalorder %s19, 1
    %p142 = por %p140, %p141
    %p143 = scmp.ne.s32.totalorder %s134, %s135
    %p144 = scmp.eq.s32.totalorder %s19, 0
    %p145 = por %p143, %p144
    %p146 = scmp.ne.s32.totalorder %s134, %s135
    %p147 = scmp.eq.s32.totalorder %s20, 1
    %p148 = por %p146, %p147
    %p150 = scmp.ne.s32.totalorder %s135, %s149
    %p151 = scmp.eq.s32.totalorder %s20, 0
    %p152 = por %p150, %p151
    %s153 = ssub.s32 %s14, %s21
    %p154 = scmp.eq.s32.totalorder %s153, 0
    %s156 = sadd.s32 %s155, 1
    %s157 = scalar_select %p154, %s155, %s156
    %p160 = pneg %p154
    %p161 = scmp.eq.s32.totalorder %s14, 1
    %p162 = por %p160, %p161
    %p163 = scmp.ne.s32.totalorder %s155, %s158
    %p164 = scmp.eq.s32.totalorder %s14, 0
    %p165 = por %p163, %p164
    %p166 = scmp.ne.s32.totalorder %s155, %s158
    %p167 = scmp.eq.s32.totalorder %s19, 1
    %p168 = por %p166, %p167
    %p169 = scmp.ne.s32.totalorder %s158, %s159
    %p170 = scmp.eq.s32.totalorder %s19, 0
    %p171 = por %p169, %p170
    %p172 = scmp.ne.s32.totalorder %s158, %s159
    %p173 = scmp.eq.s32.totalorder %s20, 1
    %p174 = por %p172, %p173
    %p176 = scmp.ne.s32.totalorder %s159, %s175
    %p177 = scmp.eq.s32.totalorder %s20, 0
    %p178 = por %p176, %p177
    %s179 = ssub.s32 %s14, %s21
    %p180 = scmp.eq.s32.totalorder %s179, 0
    %s182 = sadd.s32 %s181, 1
    %s183 = scalar_select %p180, %s181, %s182
    %p186 = pneg %p180
    %p187 = scmp.eq.s32.totalorder %s14, 1
    %p188 = por %p186, %p187
    %p189 = scmp.ne.s32.totalorder %s181, %s184
    %p190 = scmp.eq.s32.totalorder %s14, 0
    %p191 = por %p189, %p190
    %p192 = scmp.ne.s32.totalorder %s181, %s184
    %p193 = scmp.eq.s32.totalorder %s19, 1
    %p194 = por %p192, %p193
    %p195 = scmp.ne.s32.totalorder %s184, %s185
    %p196 = scmp.eq.s32.totalorder %s19, 0
    %p197 = por %p195, %p196
    %p198 = scmp.ne.s32.totalorder %s184, %s185
    %p199 = scmp.eq.s32.totalorder %s20, 1
    %p200 = por %p198, %p199
    %p202 = scmp.ne.s32.totalorder %s185, %s201
    %p203 = scmp.eq.s32.totalorder %s20, 0
    %p204 = por %p202, %p203
    %p205 = scmp.le.s32.totalorder 1, %s14
    %p206 = scmp.lt.s32.totalorder %s14, 3
    %p207 = pnand %p205, %p206
    %p208 = pneg %p207
    // Predicated region
    $region9: #{resblock3d_forward.2} parent=5 // pred_check
      _
    $region10: #{resblock3d_forward.2} parent=5 // pred_check_branch
      %210 = sbr.rel (%p207) target = $region12
    $region11: #{resblock3d_forward.2} parent=5 // pred_region
      %s211 = ssub.s32 %s14, 1
      // Predicated region
      $region13: #{resblock3d_forward.2} parent=11 // pred_check
        %p212 = pneg %p61
      $region14: #{resblock3d_forward.2} parent=11 // pred_check_branch
        %214 = sbr.rel (%p212) target = $region16
      $region15: #{resblock3d_forward.2} parent=11 // pred_region
        _
      $region16: #{resblock3d_forward.2} parent=11 // pred_fallthru
        _
      // Predicated region
      $region17: #{resblock3d_forward.2} parent=11 // pred_check
        %p215 = pneg %p82
      $region18: #{resblock3d_forward.2} parent=11 // pred_check_branch
        %217 = sbr.rel (%p215) target = $region20
      $region19: #{resblock3d_forward.2} parent=11 // pred_region
        _
      $region20: #{resblock3d_forward.2} parent=11 // pred_fallthru
        _
      // Predicated region
      $region21: #{resblock3d_forward.2} parent=11 // pred_check
        %p218 = pneg %p103
      $region22: #{resblock3d_forward.2} parent=11 // pred_check_branch
        %220 = sbr.rel (%p218) target = $region24
      $region23: #{resblock3d_forward.2} parent=11 // pred_region
        _
      $region24: #{resblock3d_forward.2} parent=11 // pred_fallthru
        _
      // Predicated region
      $region25: #{resblock3d_forward.2} parent=11 // pred_check
        %p221 = pneg %p124
      $region26: #{resblock3d_forward.2} parent=11 // pred_check_branch
        %223 = sbr.rel (%p221) target = $region28
      $region27: #{resblock3d_forward.2} parent=11 // pred_region
        _
      $region28: #{resblock3d_forward.2} parent=11 // pred_fallthru
        _
      // Predicated region
      $region29: #{resblock3d_forward.2} parent=11 // pred_check
        %p224 = pneg %p145
      $region30: #{resblock3d_forward.2} parent=11 // pred_check_branch
        %226 = sbr.rel (%p224) target = $region32
      $region31: #{resblock3d_forward.2} parent=11 // pred_region
        _
      $region32: #{resblock3d_forward.2} parent=11 // pred_fallthru
        _
    $region12: #{resblock3d_forward.2} parent=5 // pred_fallthru
      _
    %p227 = scmp.lt.s32.totalorder %s14, 2
    // Predicated region
    $region33: #{resblock3d_forward.2} parent=5 // pred_check
      %p228 = pneg %p227
    $region34: #{resblock3d_forward.2} parent=5 // pred_check_branch
      %230 = sbr.rel (%p228) target = $region36
    $region35: #{resblock3d_forward.2} parent=5 // pred_region
      // Predicated region
      $region37: #{resblock3d_forward.2} parent=35 // pred_check
        %p231 = pneg %p34
      $region38: #{resblock3d_forward.2} parent=35 // pred_check_branch
        %233 = sbr.rel (%p231) target = $region40
      $region39: #{resblock3d_forward.2} parent=35 // pred_region
        %p234 = scmp.lt.s32.totalorder %s14, 1
        %s235 = scalar_select %p234, %s14, 1
        %s236 = smul.addr %s235, 4
        %s237 = smul.addr %s236, 8
        %s238 = scalar_lea.vmem %s0, %s237
      $region40: #{resblock3d_forward.2} parent=35 // pred_fallthru
        _
    $region36: #{resblock3d_forward.2} parent=5 // pred_fallthru
      _
    %p239 = scmp.le.s32.totalorder 1, %s14
    %p240 = scmp.lt.s32.totalorder %s14, 3
    %p241 = pnand %p239, %p240
    %p242 = pneg %p241
    // Predicated region
    $region41: #{resblock3d_forward.2} parent=5 // pred_check
      _
    $region42: #{resblock3d_forward.2} parent=5 // pred_check_branch
      %244 = sbr.rel (%p241) target = $region44
    $region43: #{resblock3d_forward.2} parent=5 // pred_region
      %s245 = ssub.s32 %s14, 1
      %p246 = scmp.lt.s32.totalorder %s19, 1
      %s247 = scalar_select %p246, %s19, 1
      %s248 = smul.addr %s247, 4
      %s249 = smul.addr %s248, 8
      %s250 = scalar_lea.vmem %s0, %s249
      %p251 = pneg %p40
      %p252 = pneg %p37
      %p253 = pneg %p61
      %p254 = pneg %p58
      %p255 = pneg %p82
      %p256 = pneg %p79
      %p257 = pneg %p103
      %p258 = pneg %p100
      %p259 = pneg %p124
      %p260 = pneg %p121
      %p261 = pneg %p145
      %p262 = pneg %p142
      %p263 = pneg %p171
      %p264 = pneg %p168
      %p265 = scmp.lt.s32.totalorder %s19, 1
      %s266 = scalar_select %p265, %s19, 1
      %s267 = smul.addr %s266, 4
      %s268 = smul.addr %s267, 4
      %s269 = scalar_lea.vmem %s6, %s268
      %p270 = pneg %p197
      %p271 = pneg %p194
      %p272 = scmp.lt.s32.totalorder %s19, 1
      %s273 = scalar_select %p272, %s19, 1
      %s274 = smul.addr %s273, 8
      %s275 = scalar_lea.vmem %s7, %s274
      %p276 = scmp.lt.s32.totalorder %s19, 1
      %s277 = scalar_select %p276, %s19, 1
      %s278 = smul.addr %s277, 4
      %s279 = smul.addr %s278, 8
      %s280 = scalar_lea.vmem %s0, %s279
      %p281 = scmp.lt.s32.totalorder %s19, 1
      %s282 = scalar_select %p281, %s19, 1
      %s283 = smul.addr %s282, 4
      %s284 = smul.addr %s283, 4
      %s285 = scalar_lea.vmem %s6, %s284
      %p286 = scmp.lt.s32.totalorder %s19, 1
      %s287 = scalar_select %p286, %s19, 1
      %s288 = smul.addr %s287, 8
      %s289 = scalar_lea.vmem %s7, %s288
      %v291 = vld [vmem:[%s280] sm:$0xff]
      %v292 = vld [vmem:[%s280 + $0x8] sm:$0xff]
      %v293 = vld [vmem:[%s280 + $0x10] sm:$0xff]
      %v294 = vld [vmem:[%s280 + $0x18] sm:$0xff]
      %v295 = vld [vmem:[%s1] sm:$0xff]
      %297 = vset.pattern.permute.xlu0 0
      %298 = vperm.xlu0 %297, %v295
      %v299 = vpop.permute.xlu0 %298
      %v301 = vmul.f32 %v291, %v299
      %v302 = vmul.f32 %v292, %v299
      %v303 = vmul.f32 %v293, %v299
      %v304 = vmul.f32 %v294, %v299
      %v305 = vld [vmem:[%s2] sm:$0xff]
      %307 = vset.pattern.permute.xlu0 0
      %308 = vperm.xlu0 %307, %v305
      %v309 = vpop.permute.xlu0 %308
      %v311 = vadd.f32 %v301, %v309
      %v312 = vadd.f32 %v302, %v309
      %v313 = vadd.f32 %v303, %v309
      %v314 = vadd.f32 %v304, %v309
      %v315 = vmax.f32 %v311, 0.0
      %v316 = vmax.f32 %v312, 0.0
      %v317 = vmax.f32 %v313, 0.0
      %v318 = vmax.f32 %v314, 0.0
      %319 = vst [vmem:[#allocation2] sm:$0xff] 0.0
      %320 = vst [vmem:[#allocation2 + $0x28] sm:$0xff] 0.0
      %321 = vst [vmem:[#allocation2 + $0x8] sm:$0xff] %v315
      %322 = vst [vmem:[#allocation2 + $0x10] sm:$0xff] %v316
      %323 = vst [vmem:[#allocation2 + $0x18] sm:$0xff] %v317
      %324 = vst [vmem:[#allocation2 + $0x20] sm:$0xff] %v318
      %v325 = vld [vmem:[#allocation2] sm:$0xff]
      %v326 = vld [vmem:[#allocation2 + $0x8] sm:$0xff]
      %v327 = vld [vmem:[#allocation2 + $0x10] sm:$0xff]
      %v328 = vld [vmem:[#allocation2 + $0x18] sm:$0xff]
      %v329 = vld [vmem:[#allocation2 + $0x20] sm:$0xff]
      %v330 = vld [vmem:[%s5] ss:$8 sm:$0xf]
      %v332 = vlaneseq
      %v333 = vshrl.u32 %v332, 7
      %v334 = vsub.s32 0, %v333
      %v335 = vrot.slane %v330, %v334
      %v336 = vlaneseq
      %v337 = vshrl.u32 %v336, 7
      %v338 = vsub.s32 1, %v337
      %v339 = vrot.slane %v330, %v338
      %v340 = vlaneseq
      %v341 = vshrl.u32 %v340, 7
      %v342 = vsub.s32 2, %v341
      %v343 = vrot.slane %v330, %v342
      %v344 = vlaneseq
      %v345 = vshrl.u32 %v344, 7
      %v346 = vsub.s32 3, %v345
      %v347 = vrot.slane %v330, %v346
      %348 = vrot.lane.b32.xlu0 %v335, 55
      %v349 = vpop.permute.xlu0 %348
      %350 = vrot.lane.b32.xlu0 %v339, 55
      %v351 = vpop.permute.xlu0 %350
      %352 = vrot.lane.b32.xlu0 %v343, 55
      %v353 = vpop.permute.xlu0 %352
      %354 = vrot.lane.b32.xlu0 %v347, 55
      %v355 = vpop.permute.xlu0 %354
      %vm356 = vcmask 449536
      %v357 = vsel %vm356, %v349, %v351
      %v358 = vsel %vm356, %v351, %v353
      %v359 = vsel %vm356, %v353, %v355
      %v365 = vmul.f32 %v325, %v349
      %v366 = vmul.f32 %v326, %v357
      %v367 = vmul.f32 %v327, %v358
      %v368 = vmul.f32 %v328, %v359
      %v369 = vmul.f32 %v329, %v355
      %v370 = vpack.c.bf16 %v365, %v365
      %v371 = vpack.c.bf16 %v366, %v366
      %v372 = vpack.c.bf16 %v367, %v367
      %v373 = vpack.c.bf16 %v368, %v368
      %v374 = vpack.c.bf16 %v369, %v369
      %v380 = vunpack.c.l.b16 %v370
      %v381 = vunpack.c.l.b16 %v371
      %v382 = vunpack.c.l.b16 %v372
      %v383 = vunpack.c.l.b16 %v373
      %v384 = vunpack.c.l.b16 %v374
      %v385 = vpack.c.b16 %v381, %v380
      %v386 = vpack.c.b16 %v383, %v382
      %v387 = vpack.c.b16 %v384, %v384
      %388 = vrot.lane.b32.xlu0 %v385, 73
      %v389 = vpop.permute.xlu0 %388
      %390 = vrot.lane.b32.xlu0 %v386, 73
      %v391 = vpop.permute.xlu0 %390
      %392 = vrot.lane.b32.xlu0 %v387, 73
      %v393 = vpop.permute.xlu0 %392
      %v394 = vrot.slane %v389, 4
      %v395 = vrot.slane %v391, 4
      %v396 = vrot.slane %v393, 4
      %vm397 = vcmask 1043456
      %v398 = vsel %vm397, %v394, %v395
      %vm399 = vcmask 596992
      %v400 = vsel %vm399, %v389, %v398
      %v401 = vsel %vm397, %v395, %v396
      %v402 = vsel %vm399, %v391, %v401
      %405 = vst [vmem:[#allocation3] sm:$0xff] %v400
      %406 = vst [vmem:[#allocation3 + $0x8] sm:$0xff] %v402
      %v407 = vld [vmem:[#allocation2] sm:$0xff]
      %v408 = vld [vmem:[#allocation2 + $0x8] sm:$0xff]
      %v409 = vld [vmem:[#allocation2 + $0x10] sm:$0xff]
      %v410 = vld [vmem:[#allocation2 + $0x18] sm:$0xff]
      %v411 = vld [vmem:[#allocation2 + $0x20] sm:$0xff]
      %s412 = scalar_lea.vmem %s5, 1
      %v413 = vld [vmem:[%s412] ss:$8 sm:$0xf]
      %v415 = vlaneseq
      %v416 = vshrl.u32 %v415, 7
      %v417 = vsub.s32 0, %v416
      %v418 = vrot.slane %v413, %v417
      %v419 = vlaneseq
      %v420 = vshrl.u32 %v419, 7
      %v421 = vsub.s32 1, %v420
      %v422 = vrot.slane %v413, %v421
      %v423 = vlaneseq
      %v424 = vshrl.u32 %v423, 7
      %v425 = vsub.s32 2, %v424
      %v426 = vrot.slane %v413, %v425
      %v427 = vlaneseq
      %v428 = vshrl.u32 %v427, 7
      %v429 = vsub.s32 3, %v428
      %v430 = vrot.slane %v413, %v429
      %431 = vrot.lane.b32.xlu0 %v418, 56
      %v432 = vpop.permute.xlu0 %431
      %433 = vrot.lane.b32.xlu0 %v422, 56
      %v434 = vpop.permute.xlu0 %433
      %435 = vrot.lane.b32.xlu0 %v426, 56
      %v436 = vpop.permute.xlu0 %435
      %437 = vrot.lane.b32.xlu0 %v430, 56
      %v438 = vpop.permute.xlu0 %437
      %vm439 = vcmask 457728
      %v440 = vsel %vm439, %v432, %v434
      %v441 = vsel %vm439, %v434, %v436
      %v442 = vsel %vm439, %v436, %v438
      %v448 = vmul.f32 %v407, %v432
      %v449 = vmul.f32 %v408, %v440
      %v450 = vmul.f32 %v409, %v441
      %v451 = vmul.f32 %v410, %v442
      %v452 = vmul.f32 %v411, %v438
      %v453 = vpack.c.bf16 %v448, %v448
      %v454 = vpack.c.bf16 %v449, %v449
      %v455 = vpack.c.bf16 %v450, %v450
      %v456 = vpack.c.bf16 %v451, %v451
      %v457 = vpack.c.bf16 %v452, %v452
      %v463 = vunpack.c.l.b16 %v453
      %v464 = vunpack.c.l.b16 %v454
      %v465 = vunpack.c.l.b16 %v455
      %v466 = vunpack.c.l.b16 %v456
      %v467 = vunpack.c.l.b16 %v457
      %v468 = vpack.c.b16 %v464, %v463
      %v469 = vpack.c.b16 %v466, %v465
      %v470 = vpack.c.b16 %v467, %v467
      %471 = vrot.lane.b32.xlu0 %v468, 72
      %v472 = vpop.permute.xlu0 %471
      %473 = vrot.lane.b32.xlu0 %v469, 72
      %v474 = vpop.permute.xlu0 %473
      %475 = vrot.lane.b32.xlu0 %v470, 72
      %v476 = vpop.permute.xlu0 %475
      %v477 = vrot.slane %v472, 4
      %v478 = vrot.slane %v474, 4
      %v479 = vrot.slane %v476, 4
      %v480 = vsel %vm397, %v477, %v478
      %vm481 = vcmask 588800
      %v482 = vsel %vm481, %v472, %v480
      %v483 = vsel %vm397, %v478, %v479
      %v484 = vsel %vm481, %v474, %v483
      %487 = vst [vmem:[#allocation3 + $0x10] sm:$0xff] %v482
      %488 = vst [vmem:[#allocation3 + $0x18] sm:$0xff] %v484
      %v489 = vld [vmem:[#allocation2] sm:$0xff]
      %v490 = vld [vmem:[#allocation2 + $0x8] sm:$0xff]
      %v491 = vld [vmem:[#allocation2 + $0x10] sm:$0xff]
      %v492 = vld [vmem:[#allocation2 + $0x18] sm:$0xff]
      %v493 = vld [vmem:[#allocation2 + $0x20] sm:$0xff]
      %s494 = scalar_lea.vmem %s5, 2
      %v495 = vld [vmem:[%s494] ss:$8 sm:$0xf]
      %v497 = vlaneseq
      %v498 = vshrl.u32 %v497, 7
      %v499 = vsub.s32 0, %v498
      %v500 = vrot.slane %v495, %v499
      %v501 = vlaneseq
      %v502 = vshrl.u32 %v501, 7
      %v503 = vsub.s32 1, %v502
      %v504 = vrot.slane %v495, %v503
      %v505 = vlaneseq
      %v506 = vshrl.u32 %v505, 7
      %v507 = vsub.s32 2, %v506
      %v508 = vrot.slane %v495, %v507
      %v509 = vlaneseq
      %v510 = vshrl.u32 %v509, 7
      %v511 = vsub.s32 3, %v510
      %v512 = vrot.slane %v495, %v511
      %513 = vrot.lane.b32.xlu0 %v500, 57
      %v514 = vpop.permute.xlu0 %513
      %515 = vrot.lane.b32.xlu0 %v504, 57
      %v516 = vpop.permute.xlu0 %515
      %517 = vrot.lane.b32.xlu0 %v508, 57
      %v518 = vpop.permute.xlu0 %517
      %519 = vrot.lane.b32.xlu0 %v512, 57
      %v520 = vpop.permute.xlu0 %519
      %vm521 = vcmask 465920
      %v522 = vsel %vm521, %v514, %v516
      %v523 = vsel %vm521, %v516, %v518
      %v524 = vsel %vm521, %v518, %v520
      %v530 = vmul.f32 %v489, %v514
      %v531 = vmul.f32 %v490, %v522
      %v532 = vmul.f32 %v491, %v523
      %v533 = vmul.f32 %v492, %v524
      %v534 = vmul.f32 %v493, %v520
      %v535 = vpack.c.bf16 %v530, %v530
      %v536 = vpack.c.bf16 %v531, %v531
      %v537 = vpack.c.bf16 %v532, %v532
      %v538 = vpack.c.bf16 %v533, %v533
      %v539 = vpack.c.bf16 %v534, %v534
      %v545 = vunpack.c.l.b16 %v535
      %v546 = vunpack.c.l.b16 %v536
      %v547 = vunpack.c.l.b16 %v537
      %v548 = vunpack.c.l.b16 %v538
      %v549 = vunpack.c.l.b16 %v539
      %v550 = vpack.c.b16 %v546, %v545
      %v551 = vpack.c.b16 %v548, %v547
      %v552 = vpack.c.b16 %v549, %v549
      %553 = vrot.lane.b32.xlu0 %v550, 71
      %v554 = vpop.permute.xlu0 %553
      %555 = vrot.lane.b32.xlu0 %v551, 71
      %v556 = vpop.permute.xlu0 %555
      %557 = vrot.lane.b32.xlu0 %v552, 71
      %v558 = vpop.permute.xlu0 %557
      %v559 = vrot.slane %v554, 4
      %v560 = vrot.slane %v556, 4
      %v561 = vrot.slane %v558, 4
      %v562 = vsel %vm397, %v559, %v560
      %vm563 = vcmask 580608
      %v564 = vsel %vm563, %v554, %v562
      %v565 = vsel %vm397, %v560, %v561
      %v566 = vsel %vm563, %v556, %v565
      %569 = vst [vmem:[#allocation3 + $0x20] sm:$0xff] %v564
      %570 = vst [vmem:[#allocation3 + $0x28] sm:$0xff] %v566
      %v571 = vld [vmem:[#allocation2] sm:$0xff]
      %v572 = vld [vmem:[#allocation2 + $0x8] sm:$0xff]
      %v573 = vld [vmem:[#allocation2 + $0x10] sm:$0xff]
      %v574 = vld [vmem:[#allocation2 + $0x18] sm:$0xff]
      %v575 = vld [vmem:[#allocation2 + $0x20] sm:$0xff]
      %s576 = scalar_lea.vmem %s5, 3
      %v577 = vld [vmem:[%s576] ss:$8 sm:$0xf]
      %v579 = vlaneseq
      %v580 = vshrl.u32 %v579, 7
      %v581 = vsub.s32 0, %v580
      %v582 = vrot.slane %v577, %v581
      %v583 = vlaneseq
      %v584 = vshrl.u32 %v583, 7
      %v585 = vsub.s32 1, %v584
      %v586 = vrot.slane %v577, %v585
      %v587 = vlaneseq
      %v588 = vshrl.u32 %v587, 7
      %v589 = vsub.s32 2, %v588
      %v590 = vrot.slane %v577, %v589
      %v591 = vlaneseq
      %v592 = vshrl.u32 %v591, 7
      %v593 = vsub.s32 3, %v592
      %v594 = vrot.slane %v577, %v593
      %595 = vrot.lane.b32.xlu0 %v582, 63
      %v596 = vpop.permute.xlu0 %595
      %597 = vrot.lane.b32.xlu0 %v586, 63
      %v598 = vpop.permute.xlu0 %597
      %599 = vrot.lane.b32.xlu0 %v590, 63
      %v600 = vpop.permute.xlu0 %599
      %601 = vrot.lane.b32.xlu0 %v594, 63
      %v602 = vpop.permute.xlu0 %601
      %vm603 = vcmask 515072
      %v604 = vsel %vm603, %v596, %v598
      %v605 = vsel %vm603, %v598, %v600
      %v606 = vsel %vm603, %v600, %v602
      %v612 = vmul.f32 %v571, %v596
      %v613 = vmul.f32 %v572, %v604
      %v614 = vmul.f32 %v573, %v605
      %v615 = vmul.f32 %v574, %v606
      %v616 = vmul.f32 %v575, %v602
      %v617 = vpack.c.bf16 %v612, %v612
      %v618 = vpack.c.bf16 %v613, %v613
      %v619 = vpack.c.bf16 %v614, %v614
      %v620 = vpack.c.bf16 %v615, %v615
      %v621 = vpack.c.bf16 %v616, %v616
      %v627 = vunpack.c.l.b16 %v617
      %v628 = vunpack.c.l.b16 %v618
      %v629 = vunpack.c.l.b16 %v619
      %v630 = vunpack.c.l.b16 %v620
      %v631 = vunpack.c.l.b16 %v621
      %v632 = vpack.c.b16 %v628, %v627
      %v633 = vpack.c.b16 %v630, %v629
      %v634 = vpack.c.b16 %v631, %v631
      %635 = vrot.lane.b32.xlu0 %v632, 65
      %v636 = vpop.permute.xlu0 %635
      %637 = vrot.lane.b32.xlu0 %v633, 65
      %v638 = vpop.permute.xlu0 %637
      %639 = vrot.lane.b32.xlu0 %v634, 65
      %v640 = vpop.permute.xlu0 %639
      %v641 = vrot.slane %v636, 4
      %v642 = vrot.slane %v638, 4
      %v643 = vrot.slane %v640, 4
      %v644 = vsel %vm397, %v641, %v642
      %vm645 = vcmask 531456
      %v646 = vsel %vm645, %v636, %v644
      %v647 = vsel %vm397, %v642, %v643
      %v648 = vsel %vm645, %v638, %v647
      %651 = vst [vmem:[#allocation3 + $0x30] sm:$0xff] %v646
      %652 = vst [vmem:[#allocation3 + $0x38] sm:$0xff] %v648
      %v653 = vld [vmem:[#allocation2] sm:$0xff]
      %v654 = vld [vmem:[#allocation2 + $0x8] sm:$0xff]
      %v655 = vld [vmem:[#allocation2 + $0x10] sm:$0xff]
      %v656 = vld [vmem:[#allocation2 + $0x18] sm:$0xff]
      %v657 = vld [vmem:[#allocation2 + $0x20] sm:$0xff]
      %s658 = scalar_lea.vmem %s5, 4
      %v659 = vld [vmem:[%s658] ss:$8 sm:$0xf]
      %v661 = vlaneseq
      %v662 = vshrl.u32 %v661, 7
      %v663 = vsub.s32 0, %v662
      %v664 = vrot.slane %v659, %v663
      %v665 = vlaneseq
      %v666 = vshrl.u32 %v665, 7
      %v667 = vsub.s32 1, %v666
      %v668 = vrot.slane %v659, %v667
      %v669 = vlaneseq
      %v670 = vshrl.u32 %v669, 7
      %v671 = vsub.s32 2, %v670
      %v672 = vrot.slane %v659, %v671
      %v673 = vlaneseq
      %v674 = vshrl.u32 %v673, 7
      %v675 = vsub.s32 3, %v674
      %v676 = vrot.slane %v659, %v675
      %677 = vrot.lane.b32.xlu0 %v664, 64
      %v678 = vpop.permute.xlu0 %677
      %679 = vrot.lane.b32.xlu0 %v668, 64
      %v680 = vpop.permute.xlu0 %679
      %681 = vrot.lane.b32.xlu0 %v672, 64
      %v682 = vpop.permute.xlu0 %681
      %683 = vrot.lane.b32.xlu0 %v676, 64
      %v684 = vpop.permute.xlu0 %683
      %vm685 = vcmask 523264
      %v686 = vsel %vm685, %v678, %v680
      %v687 = vsel %vm685, %v680, %v682
      %v688 = vsel %vm685, %v682, %v684
      %v694 = vmul.f32 %v653, %v678
      %v695 = vmul.f32 %v654, %v686
      %v696 = vmul.f32 %v655, %v687
      %v697 = vmul.f32 %v656, %v688
      %v698 = vmul.f32 %v657, %v684
      %v699 = vpack.c.bf16 %v694, %v694
      %v700 = vpack.c.bf16 %v695, %v695
      %v701 = vpack.c.bf16 %v696, %v696
      %v702 = vpack.c.bf16 %v697, %v697
      %v703 = vpack.c.bf16 %v698, %v698
      %v709 = vunpack.c.l.b16 %v699
      %v710 = vunpack.c.l.b16 %v700
      %v711 = vunpack.c.l.b16 %v701
      %v712 = vunpack.c.l.b16 %v702
      %v713 = vunpack.c.l.b16 %v703
      %v714 = vpack.c.b16 %v710, %v709
      %v715 = vpack.c.b16 %v712, %v711
      %v716 = vpack.c.b16 %v713, %v713
      %717 = vrot.lane.b32.xlu0 %v714, 64
      %v718 = vpop.permute.xlu0 %717
      %719 = vrot.lane.b32.xlu0 %v715, 64
      %v720 = vpop.permute.xlu0 %719
      %721 = vrot.lane.b32.xlu0 %v716, 64
      %v722 = vpop.permute.xlu0 %721
      %v723 = vrot.slane %v718, 4
      %v724 = vrot.slane %v720, 4
      %v725 = vrot.slane %v722, 4
      %v726 = vsel %vm397, %v723, %v724
      %vm727 = vcmask 523264
      %v728 = vsel %vm727, %v718, %v726
      %v729 = vsel %vm397, %v724, %v725
      %v730 = vsel %vm727, %v720, %v729
      %733 = vst [vmem:[#allocation3 + $0x40] sm:$0xff] %v728
      %734 = vst [vmem:[#allocation3 + $0x48] sm:$0xff] %v730
      %v735 = vld [vmem:[#allocation2] sm:$0xff]
      %v736 = vld [vmem:[#allocation2 + $0x8] sm:$0xff]
      %v737 = vld [vmem:[#allocation2 + $0x10] sm:$0xff]
      %v738 = vld [vmem:[#allocation2 + $0x18] sm:$0xff]
      %v739 = vld [vmem:[#allocation2 + $0x20] sm:$0xff]
      %s740 = scalar_lea.vmem %s5, 5
      %v741 = vld [vmem:[%s740] ss:$8 sm:$0xf]
      %v743 = vlaneseq
      %v744 = vshrl.u32 %v743, 7
      %v745 = vsub.s32 0, %v744
      %v746 = vrot.slane %v741, %v745
      %v747 = vlaneseq
      %v748 = vshrl.u32 %v747, 7
      %v749 = vsub.s32 1, %v748
      %v750 = vrot.slane %v741, %v749
      %v751 = vlaneseq
      %v752 = vshrl.u32 %v751, 7
      %v753 = vsub.s32 2, %v752
      %v754 = vrot.slane %v741, %v753
      %v755 = vlaneseq
      %v756 = vshrl.u32 %v755, 7
      %v757 = vsub.s32 3, %v756
      %v758 = vrot.slane %v741, %v757
      %759 = vrot.lane.b32.xlu0 %v746, 65
      %v760 = vpop.permute.xlu0 %759
      %761 = vrot.lane.b32.xlu0 %v750, 65
      %v762 = vpop.permute.xlu0 %761
      %763 = vrot.lane.b32.xlu0 %v754, 65
      %v764 = vpop.permute.xlu0 %763
      %765 = vrot.lane.b32.xlu0 %v758, 65
      %v766 = vpop.permute.xlu0 %765
      %vm767 = vcmask 531456
      %v768 = vsel %vm767, %v760, %v762
      %v769 = vsel %vm767, %v762, %v764
      %v770 = vsel %vm767, %v764, %v766
      %v776 = vmul.f32 %v735, %v760
      %v777 = vmul.f32 %v736, %v768
      %v778 = vmul.f32 %v737, %v769
      %v779 = vmul.f32 %v738, %v770
      %v780 = vmul.f32 %v739, %v766
      %v781 = vpack.c.bf16 %v776, %v776
      %v782 = vpack.c.bf16 %v777, %v777
      %v783 = vpack.c.bf16 %v778, %v778
      %v784 = vpack.c.bf16 %v779, %v779
      %v785 = vpack.c.bf16 %v780, %v780
      %v791 = vunpack.c.l.b16 %v781
      %v792 = vunpack.c.l.b16 %v782
      %v793 = vunpack.c.l.b16 %v783
      %v794 = vunpack.c.l.b16 %v784
      %v795 = vunpack.c.l.b16 %v785
      %v796 = vpack.c.b16 %v792, %v791
      %v797 = vpack.c.b16 %v794, %v793
      %v798 = vpack.c.b16 %v795, %v795
      %799 = vrot.lane.b32.xlu0 %v796, 63
      %v800 = vpop.permute.xlu0 %799
      %801 = vrot.lane.b32.xlu0 %v797, 63
      %v802 = vpop.permute.xlu0 %801
      %803 = vrot.lane.b32.xlu0 %v798, 63
      %v804 = vpop.permute.xlu0 %803
      %v805 = vrot.slane %v800, 4
      %v806 = vrot.slane %v802, 4
      %v807 = vrot.slane %v804, 4
      %v808 = vsel %vm397, %v805, %v806
      %vm809 = vcmask 515072
      %v810 = vsel %vm809, %v800, %v808
      %v811 = vsel %vm397, %v806, %v807
      %v812 = vsel %vm809, %v802, %v811
      %815 = vst [vmem:[#allocation3 + $0x50] sm:$0xff] %v810
      %816 = vst [vmem:[#allocation3 + $0x58] sm:$0xff] %v812
      %v817 = vld [vmem:[#allocation2] sm:$0xff]
      %v818 = vld [vmem:[#allocation2 + $0x8] sm:$0xff]
      %v819 = vld [vmem:[#allocation2 + $0x10] sm:$0xff]
      %v820 = vld [vmem:[#allocation2 + $0x18] sm:$0xff]
      %v821 = vld [vmem:[#allocation2 + $0x20] sm:$0xff]
      %s822 = scalar_lea.vmem %s5, 6
      %v823 = vld [vmem:[%s822] ss:$8 sm:$0xf]
      %v825 = vlaneseq
      %v826 = vshrl.u32 %v825, 7
      %v827 = vsub.s32 0, %v826
      %v828 = vrot.slane %v823, %v827
      %v829 = vlaneseq
      %v830 = vshrl.u32 %v829, 7
      %v831 = vsub.s32 1, %v830
      %v832 = vrot.slane %v823, %v831
      %v833 = vlaneseq
      %v834 = vshrl.u32 %v833, 7
      %v835 = vsub.s32 2, %v834
      %v836 = vrot.slane %v823, %v835
      %v837 = vlaneseq
      %v838 = vshrl.u32 %v837, 7
      %v839 = vsub.s32 3, %v838
      %v840 = vrot.slane %v823, %v839
      %841 = vrot.lane.b32.xlu0 %v828, 71
      %v842 = vpop.permute.xlu0 %841
      %843 = vrot.lane.b32.xlu0 %v832, 71
      %v844 = vpop.permute.xlu0 %843
      %845 = vrot.lane.b32.xlu0 %v836, 71
      %v846 = vpop.permute.xlu0 %845
      %847 = vrot.lane.b32.xlu0 %v840, 71
      %v848 = vpop.permute.xlu0 %847
      %vm849 = vcmask 580608
      %v850 = vsel %vm849, %v842, %v844
      %v851 = vsel %vm849, %v844, %v846
      %v852 = vsel %vm849, %v846, %v848
      %v858 = vmul.f32 %v817, %v842
      %v859 = vmul.f32 %v818, %v850
      %v860 = vmul.f32 %v819, %v851
      %v861 = vmul.f32 %v820, %v852
      %v862 = vmul.f32 %v821, %v848
      %v863 = vpack.c.bf16 %v858, %v858
      %v864 = vpack.c.bf16 %v859, %v859
      %v865 = vpack.c.bf16 %v860, %v860
      %v866 = vpack.c.bf16 %v861, %v861
      %v867 = vpack.c.bf16 %v862, %v862
      %v873 = vunpack.c.l.b16 %v863
      %v874 = vunpack.c.l.b16 %v864
      %v875 = vunpack.c.l.b16 %v865
      %v876 = vunpack.c.l.b16 %v866
      %v877 = vunpack.c.l.b16 %v867
      %v878 = vpack.c.b16 %v874, %v873
      %v879 = vpack.c.b16 %v876, %v875
      %v880 = vpack.c.b16 %v877, %v877
      %881 = vrot.lane.b32.xlu0 %v878, 57
      %v882 = vpop.permute.xlu0 %881
      %883 = vrot.lane.b32.xlu0 %v879, 57
      %v884 = vpop.permute.xlu0 %883
      %885 = vrot.lane.b32.xlu0 %v880, 57
      %v886 = vpop.permute.xlu0 %885
      %v887 = vrot.slane %v882, 4
      %v888 = vrot.slane %v884, 4
      %v889 = vrot.slane %v886, 4
      %v890 = vsel %vm397, %v887, %v888
      %vm891 = vcmask 465920
      %v892 = vsel %vm891, %v882, %v890
      %v893 = vsel %vm397, %v888, %v889
      %v894 = vsel %vm891, %v884, %v893
      %897 = vst [vmem:[#allocation3 + $0x60] sm:$0xff] %v892
      %898 = vst [vmem:[#allocation3 + $0x68] sm:$0xff] %v894
      %v899 = vld [vmem:[#allocation2] sm:$0xff]
      %v900 = vld [vmem:[#allocation2 + $0x8] sm:$0xff]
      %v901 = vld [vmem:[#allocation2 + $0x10] sm:$0xff]
      %v902 = vld [vmem:[#allocation2 + $0x18] sm:$0xff]
      %v903 = vld [vmem:[#allocation2 + $0x20] sm:$0xff]
      %s904 = scalar_lea.vmem %s5, 7
      %v905 = vld [vmem:[%s904] ss:$8 sm:$0xf]
      %v907 = vlaneseq
      %v908 = vshrl.u32 %v907, 7
      %v909 = vsub.s32 0, %v908
      %v910 = vrot.slane %v905, %v909
      %v911 = vlaneseq
      %v912 = vshrl.u32 %v911, 7
      %v913 = vsub.s32 1, %v912
      %v914 = vrot.slane %v905, %v913
      %v915 = vlaneseq
      %v916 = vshrl.u32 %v915, 7
      %v917 = vsub.s32 2, %v916
      %v918 = vrot.slane %v905, %v917
      %v919 = vlaneseq
      %v920 = vshrl.u32 %v919, 7
      %v921 = vsub.s32 3, %v920
      %v922 = vrot.slane %v905, %v921
      %923 = vrot.lane.b32.xlu0 %v910, 72
      %v924 = vpop.permute.xlu0 %923
      %925 = vrot.lane.b32.xlu0 %v914, 72
      %v926 = vpop.permute.xlu0 %925
      %927 = vrot.lane.b32.xlu0 %v918, 72
      %v928 = vpop.permute.xlu0 %927
      %929 = vrot.lane.b32.xlu0 %v922, 72
      %v930 = vpop.permute.xlu0 %929
      %vm931 = vcmask 588800
      %v932 = vsel %vm931, %v924, %v926
      %v933 = vsel %vm931, %v926, %v928
      %v934 = vsel %vm931, %v928, %v930
      %v940 = vmul.f32 %v899, %v924
      %v941 = vmul.f32 %v900, %v932
      %v942 = vmul.f32 %v901, %v933
      %v943 = vmul.f32 %v902, %v934
      %v944 = vmul.f32 %v903, %v930
      %v945 = vpack.c.bf16 %v940, %v940
      %v946 = vpack.c.bf16 %v941, %v941
      %v947 = vpack.c.bf16 %v942, %v942
      %v948 = vpack.c.bf16 %v943, %v943
      %v949 = vpack.c.bf16 %v944, %v944
      %v955 = vunpack.c.l.b16 %v945
      %v956 = vunpack.c.l.b16 %v946
      %v957 = vunpack.c.l.b16 %v947
      %v958 = vunpack.c.l.b16 %v948
      %v959 = vunpack.c.l.b16 %v949
      %v960 = vpack.c.b16 %v956, %v955
      %v961 = vpack.c.b16 %v958, %v957
      %v962 = vpack.c.b16 %v959, %v959
      %963 = vrot.lane.b32.xlu0 %v960, 56
      %v964 = vpop.permute.xlu0 %963
      %965 = vrot.lane.b32.xlu0 %v961, 56
      %v966 = vpop.permute.xlu0 %965
      %967 = vrot.lane.b32.xlu0 %v962, 56
      %v968 = vpop.permute.xlu0 %967
      %v969 = vrot.slane %v964, 4
      %v970 = vrot.slane %v966, 4
      %v971 = vrot.slane %v968, 4
      %v972 = vsel %vm397, %v969, %v970
      %vm973 = vcmask 457728
      %v974 = vsel %vm973, %v964, %v972
      %v975 = vsel %vm397, %v970, %v971
      %v976 = vsel %vm973, %v966, %v975
      %979 = vst [vmem:[#allocation3 + $0x70] sm:$0xff] %v974
      %980 = vst [vmem:[#allocation3 + $0x78] sm:$0xff] %v976
      %v981 = vld [vmem:[#allocation2] sm:$0xff]
      %v982 = vld [vmem:[#allocation2 + $0x8] sm:$0xff]
      %v983 = vld [vmem:[#allocation2 + $0x10] sm:$0xff]
      %v984 = vld [vmem:[#allocation2 + $0x18] sm:$0xff]
      %v985 = vld [vmem:[#allocation2 + $0x20] sm:$0xff]
      %s986 = scalar_lea.vmem %s5, 32
      %v987 = vld [vmem:[%s986] ss:$8 sm:$0xf]
      %v989 = vlaneseq
      %v990 = vshrl.u32 %v989, 7
      %v991 = vsub.s32 0, %v990
      %v992 = vrot.slane %v987, %v991
      %v993 = vlaneseq
      %v994 = vshrl.u32 %v993, 7
      %v995 = vsub.s32 1, %v994
      %v996 = vrot.slane %v987, %v995
      %v997 = vlaneseq
      %v998 = vshrl.u32 %v997, 7
      %v999 = vsub.s32 2, %v998
      %v1000 = vrot.slane %v987, %v999
      %v1001 = vlaneseq
      %v1002 = vshrl.u32 %v1001, 7
      %v1003 = vsub.s32 3, %v1002
      %v1004 = vrot.slane %v987, %v1003
      %1005 = vrot.lane.b32.xlu0 %v992, 73
      %v1006 = vpop.permute.xlu0 %1005
      %1007 = vrot.lane.b32.xlu0 %v996, 73
      %v1008 = vpop.permute.xlu0 %1007
      %1009 = vrot.lane.b32.xlu0 %v1000, 73
      %v1010 = vpop.permute.xlu0 %1009
      %1011 = vrot.lane.b32.xlu0 %v1004, 73
      %v1012 = vpop.permute.xlu0 %1011
      %vm1013 = vcmask 596992
      %v1014 = vsel %vm1013, %v1006, %v1008
      %v1015 = vsel %vm1013, %v1008, %v1010
      %v1016 = vsel %vm1013, %v1010, %v1012
      %v1022 = vmul.f32 %v981, %v1006
      %v1023 = vmul.f32 %v982, %v1014
      %v1024 = vmul.f32 %v983, %v1015
      %v1025 = vmul.f32 %v984, %v1016
      %v1026 = vmul.f32 %v985, %v1012
      %v1027 = vpack.c.bf16 %v1022, %v1022
      %v1028 = vpack.c.bf16 %v1023, %v1023
      %v1029 = vpack.c.bf16 %v1024, %v1024
      %v1030 = vpack.c.bf16 %v1025, %v1025
      %v1031 = vpack.c.bf16 %v1026, %v1026
      %v1037 = vunpack.c.l.b16 %v1027
      %v1038 = vunpack.c.l.b16 %v1028
      %v1039 = vunpack.c.l.b16 %v1029
      %v1040 = vunpack.c.l.b16 %v1030
      %v1041 = vunpack.c.l.b16 %v1031
      %v1042 = vpack.c.b16 %v1038, %v1037
      %v1043 = vpack.c.b16 %v1040, %v1039
      %v1044 = vpack.c.b16 %v1041, %v1041
      %1045 = vrot.lane.b32.xlu0 %v1042, 55
      %v1046 = vpop.permute.xlu0 %1045
      %1047 = vrot.lane.b32.xlu0 %v1043, 55
      %v1048 = vpop.permute.xlu0 %1047
      %1049 = vrot.lane.b32.xlu0 %v1044, 55
      %v1050 = vpop.permute.xlu0 %1049
      %v1051 = vrot.slane %v1046, 4
      %v1052 = vrot.slane %v1048, 4
      %v1053 = vrot.slane %v1050, 4
      %v1054 = vsel %vm397, %v1051, %v1052
      %vm1055 = vcmask 449536
      %v1056 = vsel %vm1055, %v1046, %v1054
      %v1057 = vsel %vm397, %v1052, %v1053
      %v1058 = vsel %vm1055, %v1048, %v1057
      %1061 = vst [vmem:[#allocation3 + $0x80] sm:$0xff] %v1056
      %1062 = vst [vmem:[#allocation3 + $0x88] sm:$0xff] %v1058
      %v1063 = vld [vmem:[#allocation2] sm:$0xff]
      %v1064 = vld [vmem:[#allocation2 + $0x8] sm:$0xff]
      %v1065 = vld [vmem:[#allocation2 + $0x10] sm:$0xff]
      %v1066 = vld [vmem:[#allocation2 + $0x18] sm:$0xff]
      %v1067 = vld [vmem:[#allocation2 + $0x20] sm:$0xff]
      %s1068 = scalar_lea.vmem %s5, 33
      %v1069 = vld [vmem:[%s1068] ss:$8 sm:$0xf]
      %v1071 = vlaneseq
      %v1072 = vshrl.u32 %v1071, 7
      %v1073 = vsub.s32 0, %v1072
      %v1074 = vrot.slane %v1069, %v1073
      %v1075 = vlaneseq
      %v1076 = vshrl.u32 %v1075, 7
      %v1077 = vsub.s32 1, %v1076
      %v1078 = vrot.slane %v1069, %v1077
      %v1079 = vlaneseq
      %v1080 = vshrl.u32 %v1079, 7
      %v1081 = vsub.s32 2, %v1080
      %v1082 = vrot.slane %v1069, %v1081
      %v1083 = vlaneseq
      %v1084 = vshrl.u32 %v1083, 7
      %v1085 = vsub.s32 3, %v1084
      %v1086 = vrot.slane %v1069, %v1085
      %1087 = vrot.lane.b32.xlu0 %v1074, 119
      %v1088 = vpop.permute.xlu0 %1087
      %1089 = vrot.lane.b32.xlu0 %v1078, 119
      %v1090 = vpop.permute.xlu0 %1089
      %1091 = vrot.lane.b32.xlu0 %v1082, 119
      %v1092 = vpop.permute.xlu0 %1091
      %1093 = vrot.lane.b32.xlu0 %v1086, 119
      %v1094 = vpop.permute.xlu0 %1093
      %vm1095 = vcmask 973824
      %v1096 = vsel %vm1095, %v1088, %v1090
      %v1097 = vsel %vm1095, %v1090, %v1092
      %v1098 = vsel %vm1095, %v1092, %v1094
      %v1104 = vmul.f32 %v1063, %v1088
      %v1105 = vmul.f32 %v1064, %v1096
      %v1106 = vmul.f32 %v1065, %v1097
      %v1107 = vmul.f32 %v1066, %v1098
      %v1108 = vmul.f32 %v1067, %v1094
      %v1109 = vpack.c.bf16 %v1104, %v1104
      %v1110 = vpack.c.bf16 %v1105, %v1105
      %v1111 = vpack.c.bf16 %v1106, %v1106
      %v1112 = vpack.c.bf16 %v1107, %v1107
      %v1113 = vpack.c.bf16 %v1108, %v1108
      %v1119 = vunpack.c.l.b16 %v1109
      %v1120 = vunpack.c.l.b16 %v1110
      %v1121 = vunpack.c.l.b16 %v1111
      %v1122 = vunpack.c.l.b16 %v1112
      %v1123 = vunpack.c.l.b16 %v1113
      %v1124 = vpack.c.b16 %v1120, %v1119
      %v1125 = vpack.c.b16 %v1122, %v1121
      %v1126 = vpack.c.b16 %v1123, %v1123
      %1127 = vrot.lane.b32.xlu0 %v1124, 9
      %v1128 = vpop.permute.xlu0 %1127
      %1129 = vrot.lane.b32.xlu0 %v1125, 9
      %v1130 = vpop.permute.xlu0 %1129
      %1131 = vrot.lane.b32.xlu0 %v1126, 9
      %v1132 = vpop.permute.xlu0 %1131
      %v1133 = vrot.slane %v1128, 4
      %v1134 = vrot.slane %v1130, 4
      %v1135 = vrot.slane %v1132, 4
      %v1136 = vsel %vm397, %v1133, %v1134
      %vm1137 = vcmask 72704
      %v1138 = vsel %vm1137, %v1128, %v1136
      %v1139 = vsel %vm397, %v1134, %v1135
      %v1140 = vsel %vm1137, %v1130, %v1139
      %1143 = vst [vmem:[#allocation3 + $0x90] sm:$0xff] %v1138
      %1144 = vst [vmem:[#allocation3 + $0x98] sm:$0xff] %v1140
      %v1145 = vld [vmem:[#allocation2] sm:$0xff]
      %v1146 = vld [vmem:[#allocation2 + $0x8] sm:$0xff]
      %v1147 = vld [vmem:[#allocation2 + $0x10] sm:$0xff]
      %v1148 = vld [vmem:[#allocation2 + $0x18] sm:$0xff]
      %v1149 = vld [vmem:[#allocation2 + $0x20] sm:$0xff]
      %s1150 = scalar_lea.vmem %s5, 34
      %v1151 = vld [vmem:[%s1150] ss:$8 sm:$0xf]
      %v1153 = vlaneseq
      %v1154 = vshrl.u32 %v1153, 7
      %v1155 = vsub.s32 0, %v1154
      %v1156 = vrot.slane %v1151, %v1155
      %v1157 = vlaneseq
      %v1158 = vshrl.u32 %v1157, 7
      %v1159 = vsub.s32 1, %v1158
      %v1160 = vrot.slane %v1151, %v1159
      %v1161 = vlaneseq
      %v1162 = vshrl.u32 %v1161, 7
      %v1163 = vsub.s32 2, %v1162
      %v1164 = vrot.slane %v1151, %v1163
      %v1165 = vlaneseq
      %v1166 = vshrl.u32 %v1165, 7
      %v1167 = vsub.s32 3, %v1166
      %v1168 = vrot.slane %v1151, %v1167
      %1169 = vrot.lane.b32.xlu0 %v1156, 120
      %v1170 = vpop.permute.xlu0 %1169
      %1171 = vrot.lane.b32.xlu0 %v1160, 120
      %v1172 = vpop.permute.xlu0 %1171
      %1173 = vrot.lane.b32.xlu0 %v1164, 120
      %v1174 = vpop.permute.xlu0 %1173
      %1175 = vrot.lane.b32.xlu0 %v1168, 120
      %v1176 = vpop.permute.xlu0 %1175
      %vm1177 = vcmask 982016
      %v1178 = vsel %vm1177, %v1170, %v1172
      %v1179 = vsel %vm1177, %v1172, %v1174
      %v1180 = vsel %vm1177, %v1174, %v1176
      %v1186 = vmul.f32 %v1145, %v1170
      %v1187 = vmul.f32 %v1146, %v1178
      %v1188 = vmul.f32 %v1147, %v1179
      %v1189 = vmul.f32 %v1148, %v1180
      %v1190 = vmul.f32 %v1149, %v1176
      %v1191 = vpack.c.bf16 %v1186, %v1186
      %v1192 = vpack.c.bf16 %v1187, %v1187
      %v1193 = vpack.c.bf16 %v1188, %v1188
      %v1194 = vpack.c.bf16 %v1189, %v1189
      %v1195 = vpack.c.bf16 %v1190, %v1190
      %v1201 = vunpack.c.l.b16 %v1191
      %v1202 = vunpack.c.l.b16 %v1192
      %v1203 = vunpack.c.l.b16 %v1193
      %v1204 = vunpack.c.l.b16 %v1194
      %v1205 = vunpack.c.l.b16 %v1195
      %v1206 = vpack.c.b16 %v1202, %v1201
      %v1207 = vpack.c.b16 %v1204, %v1203
      %v1208 = vpack.c.b16 %v1205, %v1205
      %1209 = vrot.lane.b32.xlu0 %v1206, 8
      %v1210 = vpop.permute.xlu0 %1209
      %1211 = vrot.lane.b32.xlu0 %v1207, 8
      %v1212 = vpop.permute.xlu0 %1211
      %1213 = vrot.lane.b32.xlu0 %v1208, 8
      %v1214 = vpop.permute.xlu0 %1213
      %v1215 = vrot.slane %v1210, 4
      %v1216 = vrot.slane %v1212, 4
      %v1217 = vrot.slane %v1214, 4
      %v1218 = vsel %vm397, %v1215, %v1216
      %vm1219 = vcmask 64512
      %v1220 = vsel %vm1219, %v1210, %v1218
      %v1221 = vsel %vm397, %v1216, %v1217
      %v1222 = vsel %vm1219, %v1212, %v1221
      %1225 = vst [vmem:[#allocation3 + $0xa0] sm:$0xff] %v1220
      %1226 = vst [vmem:[#allocation3 + $0xa8] sm:$0xff] %v1222
      %v1227 = vld [vmem:[#allocation2] sm:$0xff]
      %v1228 = vld [vmem:[#allocation2 + $0x8] sm:$0xff]
      %v1229 = vld [vmem:[#allocation2 + $0x10] sm:$0xff]
      %v1230 = vld [vmem:[#allocation2 + $0x18] sm:$0xff]
      %v1231 = vld [vmem:[#allocation2 + $0x20] sm:$0xff]
      %s1232 = scalar_lea.vmem %s5, 35
      %v1233 = vld [vmem:[%s1232] ss:$8 sm:$0xf]
      %v1235 = vlaneseq
      %v1236 = vshrl.u32 %v1235, 7
      %v1237 = vsub.s32 0, %v1236
      %v1238 = vrot.slane %v1233, %v1237
      %v1239 = vlaneseq
      %v1240 = vshrl.u32 %v1239, 7
      %v1241 = vsub.s32 1, %v1240
      %v1242 = vrot.slane %v1233, %v1241
      %v1243 = vlaneseq
      %v1244 = vshrl.u32 %v1243, 7
      %v1245 = vsub.s32 2, %v1244
      %v1246 = vrot.slane %v1233, %v1245
      %v1247 = vlaneseq
      %v1248 = vshrl.u32 %v1247, 7
      %v1249 = vsub.s32 3, %v1248
      %v1250 = vrot.slane %v1233, %v1249
      %1251 = vrot.lane.b32.xlu0 %v1238, 121
      %v1252 = vpop.permute.xlu0 %1251
      %1253 = vrot.lane.b32.xlu0 %v1242, 121
      %v1254 = vpop.permute.xlu0 %1253
      %1255 = vrot.lane.b32.xlu0 %v1246, 121
      %v1256 = vpop.permute.xlu0 %1255
      %1257 = vrot.lane.b32.xlu0 %v1250, 121
      %v1258 = vpop.permute.xlu0 %1257
      %vm1259 = vcmask 990208
      %v1260 = vsel %vm1259, %v1252, %v1254
      %v1261 = vsel %vm1259, %v1254, %v1256
      %v1262 = vsel %vm1259, %v1256, %v1258
      %v1268 = vmul.f32 %v1227, %v1252
      %v1269 = vmul.f32 %v1228, %v1260
      %v1270 = vmul.f32 %v1229, %v1261
      %v1271 = vmul.f32 %v1230, %v1262
      %v1272 = vmul.f32 %v1231, %v1258
      %v1273 = vpack.c.bf16 %v1268, %v1268
      %v1274 = vpack.c.bf16 %v1269, %v1269
      %v1275 = vpack.c.bf16 %v1270, %v1270
      %v1276 = vpack.c.bf16 %v1271, %v1271
      %v1277 = vpack.c.bf16 %v1272, %v1272
      %v1283 = vunpack.c.l.b16 %v1273
      %v1284 = vunpack.c.l.b16 %v1274
      %v1285 = vunpack.c.l.b16 %v1275
      %v1286 = vunpack.c.l.b16 %v1276
      %v1287 = vunpack.c.l.b16 %v1277
      %v1288 = vpack.c.b16 %v1284, %v1283
      %v1289 = vpack.c.b16 %v1286, %v1285
      %v1290 = vpack.c.b16 %v1287, %v1287
      %1291 = vrot.lane.b32.xlu0 %v1288, 7
      %v1292 = vpop.permute.xlu0 %1291
      %1293 = vrot.lane.b32.xlu0 %v1289, 7
      %v1294 = vpop.permute.xlu0 %1293
      %1295 = vrot.lane.b32.xlu0 %v1290, 7
      %v1296 = vpop.permute.xlu0 %1295
      %v1297 = vrot.slane %v1292, 4
      %v1298 = vrot.slane %v1294, 4
      %v1299 = vrot.slane %v1296, 4
      %v1300 = vsel %vm397, %v1297, %v1298
      %vm1301 = vcmask 56320
      %v1302 = vsel %vm1301, %v1292, %v1300
      %v1303 = vsel %vm397, %v1298, %v1299
      %v1304 = vsel %vm1301, %v1294, %v1303
      %1307 = vst [vmem:[#allocation3 + $0xb0] sm:$0xff] %v1302
      %1308 = vst [vmem:[#allocation3 + $0xb8] sm:$0xff] %v1304
      %v1309 = vld [vmem:[#allocation2] sm:$0xff]
      %v1310 = vld [vmem:[#allocation2 + $0x8] sm:$0xff]
      %v1311 = vld [vmem:[#allocation2 + $0x10] sm:$0xff]
      %v1312 = vld [vmem:[#allocation2 + $0x18] sm:$0xff]
      %v1313 = vld [vmem:[#allocation2 + $0x20] sm:$0xff]
      %s1314 = scalar_lea.vmem %s5, 36
      %v1315 = vld [vmem:[%s1314] ss:$8 sm:$0xf]
      %v1317 = vlaneseq
      %v1318 = vshrl.u32 %v1317, 7
      %v1319 = vsub.s32 0, %v1318
      %v1320 = vrot.slane %v1315, %v1319
      %v1321 = vlaneseq
      %v1322 = vshrl.u32 %v1321, 7
      %v1323 = vsub.s32 1, %v1322
      %v1324 = vrot.slane %v1315, %v1323
      %v1325 = vlaneseq
      %v1326 = vshrl.u32 %v1325, 7
      %v1327 = vsub.s32 2, %v1326
      %v1328 = vrot.slane %v1315, %v1327
      %v1329 = vlaneseq
      %v1330 = vshrl.u32 %v1329, 7
      %v1331 = vsub.s32 3, %v1330
      %v1332 = vrot.slane %v1315, %v1331
      %1333 = vrot.lane.b32.xlu0 %v1320, 127
      %v1334 = vpop.permute.xlu0 %1333
      %1335 = vrot.lane.b32.xlu0 %v1324, 127
      %v1336 = vpop.permute.xlu0 %1335
      %1337 = vrot.lane.b32.xlu0 %v1328, 127
      %v1338 = vpop.permute.xlu0 %1337
      %1339 = vrot.lane.b32.xlu0 %v1332, 127
      %v1340 = vpop.permute.xlu0 %1339
      %vm1341 = vcmask 1039360
      %v1342 = vsel %vm1341, %v1334, %v1336
      %v1343 = vsel %vm1341, %v1336, %v1338
      %v1344 = vsel %vm1341, %v1338, %v1340
      %v1350 = vmul.f32 %v1309, %v1334
      %v1351 = vmul.f32 %v1310, %v1342
      %v1352 = vmul.f32 %v1311, %v1343
      %v1353 = vmul.f32 %v1312, %v1344
      %v1354 = vmul.f32 %v1313, %v1340
      %v1355 = vpack.c.bf16 %v1350, %v1350
      %v1356 = vpack.c.bf16 %v1351, %v1351
      %v1357 = vpack.c.bf16 %v1352, %v1352
      %v1358 = vpack.c.bf16 %v1353, %v1353
      %v1359 = vpack.c.bf16 %v1354, %v1354
      %v1365 = vunpack.c.l.b16 %v1355
      %v1366 = vunpack.c.l.b16 %v1356
      %v1367 = vunpack.c.l.b16 %v1357
      %v1368 = vunpack.c.l.b16 %v1358
      %v1369 = vunpack.c.l.b16 %v1359
      %v1370 = vpack.c.b16 %v1366, %v1365
      %v1371 = vpack.c.b16 %v1368, %v1367
      %v1372 = vpack.c.b16 %v1369, %v1369
      %1373 = vrot.lane.b32.xlu0 %v1370, 1
      %v1374 = vpop.permute.xlu0 %1373
      %1375 = vrot.lane.b32.xlu0 %v1371, 1
      %v1376 = vpop.permute.xlu0 %1375
      %1377 = vrot.lane.b32.xlu0 %v1372, 1
      %v1378 = vpop.permute.xlu0 %1377
      %v1379 = vrot.slane %v1374, 4
      %v1380 = vrot.slane %v1376, 4
      %v1381 = vrot.slane %v1378, 4
      %v1382 = vsel %vm397, %v1379, %v1380
      %vm1383 = vcmask 7168
      %v1384 = vsel %vm1383, %v1374, %v1382
      %v1385 = vsel %vm397, %v1380, %v1381
      %v1386 = vsel %vm1383, %v1376, %v1385
      %1389 = vst [vmem:[#allocation3 + $0xc0] sm:$0xff] %v1384
      %1390 = vst [vmem:[#allocation3 + $0xc8] sm:$0xff] %v1386
      %v1391 = vld [vmem:[#allocation2 + $0x8] sm:$0xff]
      %v1392 = vld [vmem:[#allocation2 + $0x10] sm:$0xff]
      %v1393 = vld [vmem:[#allocation2 + $0x18] sm:$0xff]
      %v1394 = vld [vmem:[#allocation2 + $0x20] sm:$0xff]
      %s1395 = scalar_lea.vmem %s5, 37
      %v1396 = vld [vmem:[%s1395] ss:$8 sm:$0xf]
      %v1398 = vlaneseq
      %v1399 = vshrl.u32 %v1398, 7
      %v1400 = vsub.s32 0, %v1399
      %v1401 = vrot.slane %v1396, %v1400
      %v1402 = vlaneseq
      %v1403 = vshrl.u32 %v1402, 7
      %v1404 = vsub.s32 1, %v1403
      %v1405 = vrot.slane %v1396, %v1404
      %v1406 = vlaneseq
      %v1407 = vshrl.u32 %v1406, 7
      %v1408 = vsub.s32 2, %v1407
      %v1409 = vrot.slane %v1396, %v1408
      %v1410 = vlaneseq
      %v1411 = vshrl.u32 %v1410, 7
      %v1412 = vsub.s32 3, %v1411
      %v1413 = vrot.slane %v1396, %v1412
      %v1418 = vmul.f32 %v1391, %v1401
      %v1419 = vmul.f32 %v1392, %v1405
      %v1420 = vmul.f32 %v1393, %v1409
      %v1421 = vmul.f32 %v1394, %v1413
      %v1422 = vpack.c.bf16 %v1418, %v1418
      %v1423 = vpack.c.bf16 %v1419, %v1419
      %v1424 = vpack.c.bf16 %v1420, %v1420
      %v1425 = vpack.c.bf16 %v1421, %v1421
      %v1430 = vunpack.c.l.b16 %v1422
      %v1431 = vunpack.c.l.b16 %v1423
      %v1432 = vunpack.c.l.b16 %v1424
      %v1433 = vunpack.c.l.b16 %v1425
      %v1434 = vpack.c.b16 %v1431, %v1430
      %v1435 = vpack.c.b16 %v1433, %v1432
      %1438 = vst [vmem:[#allocation3 + $0xd0] sm:$0xff] %v1434
      %1439 = vst [vmem:[#allocation3 + $0xd8] sm:$0xff] %v1435
      %v1440 = vld [vmem:[#allocation2 + $0x8] sm:$0xff]
      %v1441 = vld [vmem:[#allocation2 + $0x10] sm:$0xff]
      %v1442 = vld [vmem:[#allocation2 + $0x18] sm:$0xff]
      %v1443 = vld [vmem:[#allocation2 + $0x20] sm:$0xff]
      %v1444 = vld [vmem:[#allocation2 + $0x28] sm:$0xff]
      %s1445 = scalar_lea.vmem %s5, 38
      %v1446 = vld [vmem:[%s1445] ss:$8 sm:$0xf]
      %v1448 = vlaneseq
      %v1449 = vshrl.u32 %v1448, 7
      %v1450 = vsub.s32 0, %v1449
      %v1451 = vrot.slane %v1446, %v1450
      %v1452 = vlaneseq
      %v1453 = vshrl.u32 %v1452, 7
      %v1454 = vsub.s32 1, %v1453
      %v1455 = vrot.slane %v1446, %v1454
      %v1456 = vlaneseq
      %v1457 = vshrl.u32 %v1456, 7
      %v1458 = vsub.s32 2, %v1457
      %v1459 = vrot.slane %v1446, %v1458
      %v1460 = vlaneseq
      %v1461 = vshrl.u32 %v1460, 7
      %v1462 = vsub.s32 3, %v1461
      %v1463 = vrot.slane %v1446, %v1462
      %1464 = vrot.lane.b32.xlu0 %v1451, 1
      %v1465 = vpop.permute.xlu0 %1464
      %1466 = vrot.lane.b32.xlu0 %v1455, 1
      %v1467 = vpop.permute.xlu0 %1466
      %1468 = vrot.lane.b32.xlu0 %v1459, 1
      %v1469 = vpop.permute.xlu0 %1468
      %1470 = vrot.lane.b32.xlu0 %v1463, 1
      %v1471 = vpop.permute.xlu0 %1470
      %vm1472 = vcmask 7168
      %v1473 = vsel %vm1472, %v1465, %v1467
      %v1474 = vsel %vm1472, %v1467, %v1469
      %v1475 = vsel %vm1472, %v1469, %v1471
      %v1481 = vmul.f32 %v1440, %v1465
      %v1482 = vmul.f32 %v1441, %v1473
      %v1483 = vmul.f32 %v1442, %v1474
      %v1484 = vmul.f32 %v1443, %v1475
      %v1485 = vmul.f32 %v1444, %v1471
      %v1486 = vpack.c.bf16 %v1481, %v1481
      %v1487 = vpack.c.bf16 %v1482, %v1482
      %v1488 = vpack.c.bf16 %v1483, %v1483
      %v1489 = vpack.c.bf16 %v1484, %v1484
      %v1490 = vpack.c.bf16 %v1485, %v1485
      %v1496 = vunpack.c.l.b16 %v1486
      %v1497 = vunpack.c.l.b16 %v1487
      %v1498 = vunpack.c.l.b16 %v1488
      %v1499 = vunpack.c.l.b16 %v1489
      %v1500 = vunpack.c.l.b16 %v1490
      %v1501 = vpack.c.b16 %v1497, %v1496
      %v1502 = vpack.c.b16 %v1499, %v1498
      %v1503 = vpack.c.b16 %v1500, %v1500
      %1504 = vrot.lane.b32.xlu0 %v1501, 127
      %v1505 = vpop.permute.xlu0 %1504
      %1506 = vrot.lane.b32.xlu0 %v1502, 127
      %v1507 = vpop.permute.xlu0 %1506
      %1508 = vrot.lane.b32.xlu0 %v1503, 127
      %v1509 = vpop.permute.xlu0 %1508
      %v1510 = vrot.slane %v1505, 4
      %v1511 = vrot.slane %v1507, 4
      %v1512 = vrot.slane %v1509, 4
      %v1513 = vsel %vm397, %v1510, %v1511
      %vm1514 = vcmask 1039360
      %v1515 = vsel %vm1514, %v1505, %v1513
      %v1516 = vsel %vm397, %v1511, %v1512
      %v1517 = vsel %vm1514, %v1507, %v1516
      %1520 = vst [vmem:[#allocation3 + $0xe0] sm:$0xff] %v1515
      %1521 = vst [vmem:[#allocation3 + $0xe8] sm:$0xff] %v1517
      %v1522 = vld [vmem:[#allocation2 + $0x8] sm:$0xff]
      %v1523 = vld [vmem:[#allocation2 + $0x10] sm:$0xff]
      %v1524 = vld [vmem:[#allocation2 + $0x18] sm:$0xff]
      %v1525 = vld [vmem:[#allocation2 + $0x20] sm:$0xff]
      %v1526 = vld [vmem:[#allocation2 + $0x28] sm:$0xff]
      %s1527 = scalar_lea.vmem %s5, 39
      %v1528 = vld [vmem:[%s1527] ss:$8 sm:$0xf]
      %v1530 = vlaneseq
      %v1531 = vshrl.u32 %v1530, 7
      %v1532 = vsub.s32 0, %v1531
      %v1533 = vrot.slane %v1528, %v1532
      %v1534 = vlaneseq
      %v1535 = vshrl.u32 %v1534, 7
      %v1536 = vsub.s32 1, %v1535
      %v1537 = vrot.slane %v1528, %v1536
      %v1538 = vlaneseq
      %v1539 = vshrl.u32 %v1538, 7
      %v1540 = vsub.s32 2, %v1539
      %v1541 = vrot.slane %v1528, %v1540
      %v1542 = vlaneseq
      %v1543 = vshrl.u32 %v1542, 7
      %v1544 = vsub.s32 3, %v1543
      %v1545 = vrot.slane %v1528, %v1544
      %1546 = vrot.lane.b32.xlu0 %v1533, 7
      %v1547 = vpop.permute.xlu0 %1546
      %1548 = vrot.lane.b32.xlu0 %v1537, 7
      %v1549 = vpop.permute.xlu0 %1548
      %1550 = vrot.lane.b32.xlu0 %v1541, 7
      %v1551 = vpop.permute.xlu0 %1550
      %1552 = vrot.lane.b32.xlu0 %v1545, 7
      %v1553 = vpop.permute.xlu0 %1552
      %vm1554 = vcmask 56320
      %v1555 = vsel %vm1554, %v1547, %v1549
      %v1556 = vsel %vm1554, %v1549, %v1551
      %v1557 = vsel %vm1554, %v1551, %v1553
      %v1563 = vmul.f32 %v1522, %v1547
      %v1564 = vmul.f32 %v1523, %v1555
      %v1565 = vmul.f32 %v1524, %v1556
      %v1566 = vmul.f32 %v1525, %v1557
      %v1567 = vmul.f32 %v1526, %v1553
      %v1568 = vpack.c.bf16 %v1563, %v1563
      %v1569 = vpack.c.bf16 %v1564, %v1564
      %v1570 = vpack.c.bf16 %v1565, %v1565
      %v1571 = vpack.c.bf16 %v1566, %v1566
      %v1572 = vpack.c.bf16 %v1567, %v1567
      %v1578 = vunpack.c.l.b16 %v1568
      %v1579 = vunpack.c.l.b16 %v1569
      %v1580 = vunpack.c.l.b16 %v1570
      %v1581 = vunpack.c.l.b16 %v1571
      %v1582 = vunpack.c.l.b16 %v1572
      %v1583 = vpack.c.b16 %v1579, %v1578
      %v1584 = vpack.c.b16 %v1581, %v1580
      %v1585 = vpack.c.b16 %v1582, %v1582
      %1586 = vrot.lane.b32.xlu0 %v1583, 121
      %v1587 = vpop.permute.xlu0 %1586
      %1588 = vrot.lane.b32.xlu0 %v1584, 121
      %v1589 = vpop.permute.xlu0 %1588
      %1590 = vrot.lane.b32.xlu0 %v1585, 121
      %v1591 = vpop.permute.xlu0 %1590
      %v1592 = vrot.slane %v1587, 4
      %v1593 = vrot.slane %v1589, 4
      %v1594 = vrot.slane %v1591, 4
      %v1595 = vsel %vm397, %v1592, %v1593
      %vm1596 = vcmask 990208
      %v1597 = vsel %vm1596, %v1587, %v1595
      %v1598 = vsel %vm397, %v1593, %v1594
      %v1599 = vsel %vm1596, %v1589, %v1598
      %1602 = vst [vmem:[#allocation3 + $0xf0] sm:$0xff] %v1597
      %1603 = vst [vmem:[#allocation3 + $0xf8] sm:$0xff] %v1599
      %v1604 = vld [vmem:[#allocation2 + $0x8] sm:$0xff]
      %v1605 = vld [vmem:[#allocation2 + $0x10] sm:$0xff]
      %v1606 = vld [vmem:[#allocation2 + $0x18] sm:$0xff]
      %v1607 = vld [vmem:[#allocation2 + $0x20] sm:$0xff]
      %v1608 = vld [vmem:[#allocation2 + $0x28] sm:$0xff]
      %s1609 = scalar_lea.vmem %s5, 64
      %v1610 = vld [vmem:[%s1609] ss:$8 sm:$0xf]
      %v1612 = vlaneseq
      %v1613 = vshrl.u32 %v1612, 7
      %v1614 = vsub.s32 0, %v1613
      %v1615 = vrot.slane %v1610, %v1614
      %v1616 = vlaneseq
      %v1617 = vshrl.u32 %v1616, 7
      %v1618 = vsub.s32 1, %v1617
      %v1619 = vrot.slane %v1610, %v1618
      %v1620 = vlaneseq
      %v1621 = vshrl.u32 %v1620, 7
      %v1622 = vsub.s32 2, %v1621
      %v1623 = vrot.slane %v1610, %v1622
      %v1624 = vlaneseq
      %v1625 = vshrl.u32 %v1624, 7
      %v1626 = vsub.s32 3, %v1625
      %v1627 = vrot.slane %v1610, %v1626
      %1628 = vrot.lane.b32.xlu0 %v1615, 8
      %v1629 = vpop.permute.xlu0 %1628
      %1630 = vrot.lane.b32.xlu0 %v1619, 8
      %v1631 = vpop.permute.xlu0 %1630
      %1632 = vrot.lane.b32.xlu0 %v1623, 8
      %v1633 = vpop.permute.xlu0 %1632
      %1634 = vrot.lane.b32.xlu0 %v1627, 8
      %v1635 = vpop.permute.xlu0 %1634
      %vm1636 = vcmask 64512
      %v1637 = vsel %vm1636, %v1629, %v1631
      %v1638 = vsel %vm1636, %v1631, %v1633
      %v1639 = vsel %vm1636, %v1633, %v1635
      %v1645 = vmul.f32 %v1604, %v1629
      %v1646 = vmul.f32 %v1605, %v1637
      %v1647 = vmul.f32 %v1606, %v1638
      %v1648 = vmul.f32 %v1607, %v1639
      %v1649 = vmul.f32 %v1608, %v1635
      %v1650 = vpack.c.bf16 %v1645, %v1645
      %v1651 = vpack.c.bf16 %v1646, %v1646
      %v1652 = vpack.c.bf16 %v1647, %v1647
      %v1653 = vpack.c.bf16 %v1648, %v1648
      %v1654 = vpack.c.bf16 %v1649, %v1649
      %v1660 = vunpack.c.l.b16 %v1650
      %v1661 = vunpack.c.l.b16 %v1651
      %v1662 = vunpack.c.l.b16 %v1652
      %v1663 = vunpack.c.l.b16 %v1653
      %v1664 = vunpack.c.l.b16 %v1654
      %v1665 = vpack.c.b16 %v1661, %v1660
      %v1666 = vpack.c.b16 %v1663, %v1662
      %v1667 = vpack.c.b16 %v1664, %v1664
      %1668 = vrot.lane.b32.xlu0 %v1665, 120
      %v1669 = vpop.permute.xlu0 %1668
      %1670 = vrot.lane.b32.xlu0 %v1666, 120
      %v1671 = vpop.permute.xlu0 %1670
      %1672 = vrot.lane.b32.xlu0 %v1667, 120
      %v1673 = vpop.permute.xlu0 %1672
      %v1674 = vrot.slane %v1669, 4
      %v1675 = vrot.slane %v1671, 4
      %v1676 = vrot.slane %v1673, 4
      %v1677 = vsel %vm397, %v1674, %v1675
      %vm1678 = vcmask 982016
      %v1679 = vsel %vm1678, %v1669, %v1677
      %v1680 = vsel %vm397, %v1675, %v1676
      %v1681 = vsel %vm1678, %v1671, %v1680
      %1684 = vst [vmem:[#allocation3 + $0x100] sm:$0xff] %v1679
      %1685 = vst [vmem:[#allocation3 + $0x108] sm:$0xff] %v1681
      %v1686 = vld [vmem:[#allocation2 + $0x8] sm:$0xff]
      %v1687 = vld [vmem:[#allocation2 + $0x10] sm:$0xff]
      %v1688 = vld [vmem:[#allocation2 + $0x18] sm:$0xff]
      %v1689 = vld [vmem:[#allocation2 + $0x20] sm:$0xff]
      %v1690 = vld [vmem:[#allocation2 + $0x28] sm:$0xff]
      %s1691 = scalar_lea.vmem %s5, 65
      %v1692 = vld [vmem:[%s1691] ss:$8 sm:$0xf]
      %v1694 = vlaneseq
      %v1695 = vshrl.u32 %v1694, 7
      %v1696 = vsub.s32 0, %v1695
      %v1697 = vrot.slane %v1692, %v1696
      %v1698 = vlaneseq
      %v1699 = vshrl.u32 %v1698, 7
      %v1700 = vsub.s32 1, %v1699
      %v1701 = vrot.slane %v1692, %v1700
      %v1702 = vlaneseq
      %v1703 = vshrl.u32 %v1702, 7
      %v1704 = vsub.s32 2, %v1703
      %v1705 = vrot.slane %v1692, %v1704
      %v1706 = vlaneseq
      %v1707 = vshrl.u32 %v1706, 7
      %v1708 = vsub.s32 3, %v1707
      %v1709 = vrot.slane %v1692, %v1708
      %1710 = vrot.lane.b32.xlu0 %v1697, 9
      %v1711 = vpop.permute.xlu0 %1710
      %1712 = vrot.lane.b32.xlu0 %v1701, 9
      %v1713 = vpop.permute.xlu0 %1712
      %1714 = vrot.lane.b32.xlu0 %v1705, 9
      %v1715 = vpop.permute.xlu0 %1714
      %1716 = vrot.lane.b32.xlu0 %v1709, 9
      %v1717 = vpop.permute.xlu0 %1716
      %vm1718 = vcmask 72704
      %v1719 = vsel %vm1718, %v1711, %v1713
      %v1720 = vsel %vm1718, %v1713, %v1715
      %v1721 = vsel %vm1718, %v1715, %v1717
      %v1727 = vmul.f32 %v1686, %v1711
      %v1728 = vmul.f32 %v1687, %v1719
      %v1729 = vmul.f32 %v1688, %v1720
      %v1730 = vmul.f32 %v1689, %v1721
      %v1731 = vmul.f32 %v1690, %v1717
      %v1732 = vpack.c.bf16 %v1727, %v1727
      %v1733 = vpack.c.bf16 %v1728, %v1728
      %v1734 = vpack.c.bf16 %v1729, %v1729
      %v1735 = vpack.c.bf16 %v1730, %v1730
      %v1736 = vpack.c.bf16 %v1731, %v1731
      %v1742 = vunpack.c.l.b16 %v1732
      %v1743 = vunpack.c.l.b16 %v1733
      %v1744 = vunpack.c.l.b16 %v1734
      %v1745 = vunpack.c.l.b16 %v1735
      %v1746 = vunpack.c.l.b16 %v1736
      %v1747 = vpack.c.b16 %v1743, %v1742
      %v1748 = vpack.c.b16 %v1745, %v1744
      %v1749 = vpack.c.b16 %v1746, %v1746
      %1750 = vrot.lane.b32.xlu0 %v1747, 119
      %v1751 = vpop.permute.xlu0 %1750
      %1752 = vrot.lane.b32.xlu0 %v1748, 119
      %v1753 = vpop.permute.xlu0 %1752
      %1754 = vrot.lane.b32.xlu0 %v1749, 119
      %v1755 = vpop.permute.xlu0 %1754
      %v1756 = vrot.slane %v1751, 4
      %v1757 = vrot.slane %v1753, 4
      %v1758 = vrot.slane %v1755, 4
      %v1759 = vsel %vm397, %v1756, %v1757
      %vm1760 = vcmask 973824
      %v1761 = vsel %vm1760, %v1751, %v1759
      %v1762 = vsel %vm397, %v1757, %v1758
      %v1763 = vsel %vm1760, %v1753, %v1762
      %1766 = vst [vmem:[#allocation3 + $0x110] sm:$0xff] %v1761
      %1767 = vst [vmem:[#allocation3 + $0x118] sm:$0xff] %v1763
      %v1768 = vld [vmem:[#allocation2 + $0x8] sm:$0xff]
      %v1769 = vld [vmem:[#allocation2 + $0x10] sm:$0xff]
      %v1770 = vld [vmem:[#allocation2 + $0x18] sm:$0xff]
      %v1771 = vld [vmem:[#allocation2 + $0x20] sm:$0xff]
      %v1772 = vld [vmem:[#allocation2 + $0x28] sm:$0xff]
      %s1773 = scalar_lea.vmem %s5, 66
      %v1774 = vld [vmem:[%s1773] ss:$8 sm:$0xf]
      %v1776 = vlaneseq
      %v1777 = vshrl.u32 %v1776, 7
      %v1778 = vsub.s32 0, %v1777
      %v1779 = vrot.slane %v1774, %v1778
      %v1780 = vlaneseq
      %v1781 = vshrl.u32 %v1780, 7
      %v1782 = vsub.s32 1, %v1781
      %v1783 = vrot.slane %v1774, %v1782
      %v1784 = vlaneseq
      %v1785 = vshrl.u32 %v1784, 7
      %v1786 = vsub.s32 2, %v1785
      %v1787 = vrot.slane %v1774, %v1786
      %v1788 = vlaneseq
      %v1789 = vshrl.u32 %v1788, 7
      %v1790 = vsub.s32 3, %v1789
      %v1791 = vrot.slane %v1774, %v1790
      %1792 = vrot.lane.b32.xlu0 %v1779, 55
      %v1793 = vpop.permute.xlu0 %1792
      %1794 = vrot.lane.b32.xlu0 %v1783, 55
      %v1795 = vpop.permute.xlu0 %1794
      %1796 = vrot.lane.b32.xlu0 %v1787, 55
      %v1797 = vpop.permute.xlu0 %1796
      %1798 = vrot.lane.b32.xlu0 %v1791, 55
      %v1799 = vpop.permute.xlu0 %1798
      %v1800 = vsel %vm356, %v1793, %v1795
      %v1801 = vsel %vm356, %v1795, %v1797
      %v1802 = vsel %vm356, %v1797, %v1799
      %v1808 = vmul.f32 %v1768, %v1793
      %v1809 = vmul.f32 %v1769, %v1800
      %v1810 = vmul.f32 %v1770, %v1801
      %v1811 = vmul.f32 %v1771, %v1802
      %v1812 = vmul.f32 %v1772, %v1799
      %v1813 = vpack.c.bf16 %v1808, %v1808
      %v1814 = vpack.c.bf16 %v1809, %v1809
      %v1815 = vpack.c.bf16 %v1810, %v1810
      %v1816 = vpack.c.bf16 %v1811, %v1811
      %v1817 = vpack.c.bf16 %v1812, %v1812
      %v1823 = vunpack.c.l.b16 %v1813
      %v1824 = vunpack.c.l.b16 %v1814
      %v1825 = vunpack.c.l.b16 %v1815
      %v1826 = vunpack.c.l.b16 %v1816
      %v1827 = vunpack.c.l.b16 %v1817
      %v1828 = vpack.c.b16 %v1824, %v1823
      %v1829 = vpack.c.b16 %v1826, %v1825
      %v1830 = vpack.c.b16 %v1827, %v1827
      %1831 = vrot.lane.b32.xlu0 %v1828, 73
      %v1832 = vpop.permute.xlu0 %1831
      %1833 = vrot.lane.b32.xlu0 %v1829, 73
      %v1834 = vpop.permute.xlu0 %1833
      %1835 = vrot.lane.b32.xlu0 %v1830, 73
      %v1836 = vpop.permute.xlu0 %1835
      %v1837 = vrot.slane %v1832, 4
      %v1838 = vrot.slane %v1834, 4
      %v1839 = vrot.slane %v1836, 4
      %v1840 = vsel %vm397, %v1837, %v1838
      %v1841 = vsel %vm399, %v1832, %v1840
      %v1842 = vsel %vm397, %v1838, %v1839
      %v1843 = vsel %vm399, %v1834, %v1842
      %1846 = vst [vmem:[#allocation3 + $0x120] sm:$0xff] %v1841
      %1847 = vst [vmem:[#allocation3 + $0x128] sm:$0xff] %v1843
      %v1848 = vld [vmem:[#allocation2 + $0x8] sm:$0xff]
      %v1849 = vld [vmem:[#allocation2 + $0x10] sm:$0xff]
      %v1850 = vld [vmem:[#allocation2 + $0x18] sm:$0xff]
      %v1851 = vld [vmem:[#allocation2 + $0x20] sm:$0xff]
      %v1852 = vld [vmem:[#allocation2 + $0x28] sm:$0xff]
      %s1853 = scalar_lea.vmem %s5, 67
      %v1854 = vld [vmem:[%s1853] ss:$8 sm:$0xf]
      %v1856 = vlaneseq
      %v1857 = vshrl.u32 %v1856, 7
      %v1858 = vsub.s32 0, %v1857
      %v1859 = vrot.slane %v1854, %v1858
      %v1860 = vlaneseq
      %v1861 = vshrl.u32 %v1860, 7
      %v1862 = vsub.s32 1, %v1861
      %v1863 = vrot.slane %v1854, %v1862
      %v1864 = vlaneseq
      %v1865 = vshrl.u32 %v1864, 7
      %v1866 = vsub.s32 2, %v1865
      %v1867 = vrot.slane %v1854, %v1866
      %v1868 = vlaneseq
      %v1869 = vshrl.u32 %v1868, 7
      %v1870 = vsub.s32 3, %v1869
      %v1871 = vrot.slane %v1854, %v1870
      %1872 = vrot.lane.b32.xlu0 %v1859, 56
      %v1873 = vpop.permute.xlu0 %1872
      %1874 = vrot.lane.b32.xlu0 %v1863, 56
      %v1875 = vpop.permute.xlu0 %1874
      %1876 = vrot.lane.b32.xlu0 %v1867, 56
      %v1877 = vpop.permute.xlu0 %1876
      %1878 = vrot.lane.b32.xlu0 %v1871, 56
      %v1879 = vpop.permute.xlu0 %1878
      %v1880 = vsel %vm439, %v1873, %v1875
      %v1881 = vsel %vm439, %v1875, %v1877
      %v1882 = vsel %vm439, %v1877, %v1879
      %v1888 = vmul.f32 %v1848, %v1873
      %v1889 = vmul.f32 %v1849, %v1880
      %v1890 = vmul.f32 %v1850, %v1881
      %v1891 = vmul.f32 %v1851, %v1882
      %v1892 = vmul.f32 %v1852, %v1879
      %v1893 = vpack.c.bf16 %v1888, %v1888
      %v1894 = vpack.c.bf16 %v1889, %v1889
      %v1895 = vpack.c.bf16 %v1890, %v1890
      %v1896 = vpack.c.bf16 %v1891, %v1891
      %v1897 = vpack.c.bf16 %v1892, %v1892
      %v1903 = vunpack.c.l.b16 %v1893
      %v1904 = vunpack.c.l.b16 %v1894
      %v1905 = vunpack.c.l.b16 %v1895
      %v1906 = vunpack.c.l.b16 %v1896
      %v1907 = vunpack.c.l.b16 %v1897
      %v1908 = vpack.c.b16 %v1904, %v1903
      %v1909 = vpack.c.b16 %v1906, %v1905
      %v1910 = vpack.c.b16 %v1907, %v1907
      %1911 = vrot.lane.b32.xlu0 %v1908, 72
      %v1912 = vpop.permute.xlu0 %1911
      %1913 = vrot.lane.b32.xlu0 %v1909, 72
      %v1914 = vpop.permute.xlu0 %1913
      %1915 = vrot.lane.b32.xlu0 %v1910, 72
      %v1916 = vpop.permute.xlu0 %1915
      %v1917 = vrot.slane %v1912, 4
      %v1918 = vrot.slane %v1914, 4
      %v1919 = vrot.slane %v1916, 4
      %v1920 = vsel %vm397, %v1917, %v1918
      %v1921 = vsel %vm481, %v1912, %v1920
      %v1922 = vsel %vm397, %v1918, %v1919
      %v1923 = vsel %vm481, %v1914, %v1922
      %1926 = vst [vmem:[#allocation3 + $0x130] sm:$0xff] %v1921
      %1927 = vst [vmem:[#allocation3 + $0x138] sm:$0xff] %v1923
      %v1928 = vld [vmem:[#allocation2 + $0x8] sm:$0xff]
      %v1929 = vld [vmem:[#allocation2 + $0x10] sm:$0xff]
      %v1930 = vld [vmem:[#allocation2 + $0x18] sm:$0xff]
      %v1931 = vld [vmem:[#allocation2 + $0x20] sm:$0xff]
      %v1932 = vld [vmem:[#allocation2 + $0x28] sm:$0xff]
      %s1933 = scalar_lea.vmem %s5, 68
      %v1934 = vld [vmem:[%s1933] ss:$8 sm:$0xf]
      %v1936 = vlaneseq
      %v1937 = vshrl.u32 %v1936, 7
      %v1938 = vsub.s32 0, %v1937
      %v1939 = vrot.slane %v1934, %v1938
      %v1940 = vlaneseq
      %v1941 = vshrl.u32 %v1940, 7
      %v1942 = vsub.s32 1, %v1941
      %v1943 = vrot.slane %v1934, %v1942
      %v1944 = vlaneseq
      %v1945 = vshrl.u32 %v1944, 7
      %v1946 = vsub.s32 2, %v1945
      %v1947 = vrot.slane %v1934, %v1946
      %v1948 = vlaneseq
      %v1949 = vshrl.u32 %v1948, 7
      %v1950 = vsub.s32 3, %v1949
      %v1951 = vrot.slane %v1934, %v1950
      %1952 = vrot.lane.b32.xlu0 %v1939, 57
      %v1953 = vpop.permute.xlu0 %1952
      %1954 = vrot.lane.b32.xlu0 %v1943, 57
      %v1955 = vpop.permute.xlu0 %1954
      %1956 = vrot.lane.b32.xlu0 %v1947, 57
      %v1957 = vpop.permute.xlu0 %1956
      %1958 = vrot.lane.b32.xlu0 %v1951, 57
      %v1959 = vpop.permute.xlu0 %1958
      %v1960 = vsel %vm521, %v1953, %v1955
      %v1961 = vsel %vm521, %v1955, %v1957
      %v1962 = vsel %vm521, %v1957, %v1959
      %v1968 = vmul.f32 %v1928, %v1953
      %v1969 = vmul.f32 %v1929, %v1960
      %v1970 = vmul.f32 %v1930, %v1961
      %v1971 = vmul.f32 %v1931, %v1962
      %v1972 = vmul.f32 %v1932, %v1959
      %v1973 = vpack.c.bf16 %v1968, %v1968
      %v1974 = vpack.c.bf16 %v1969, %v1969
      %v1975 = vpack.c.bf16 %v1970, %v1970
      %v1976 = vpack.c.bf16 %v1971, %v1971
      %v1977 = vpack.c.bf16 %v1972, %v1972
      %v1983 = vunpack.c.l.b16 %v1973
      %v1984 = vunpack.c.l.b16 %v1974
      %v1985 = vunpack.c.l.b16 %v1975
      %v1986 = vunpack.c.l.b16 %v1976
      %v1987 = vunpack.c.l.b16 %v1977
      %v1988 = vpack.c.b16 %v1984, %v1983
      %v1989 = vpack.c.b16 %v1986, %v1985
      %v1990 = vpack.c.b16 %v1987, %v1987
      %1991 = vrot.lane.b32.xlu0 %v1988, 71
      %v1992 = vpop.permute.xlu0 %1991
      %1993 = vrot.lane.b32.xlu0 %v1989, 71
      %v1994 = vpop.permute.xlu0 %1993
      %1995 = vrot.lane.b32.xlu0 %v1990, 71
      %v1996 = vpop.permute.xlu0 %1995
      %v1997 = vrot.slane %v1992, 4
      %v1998 = vrot.slane %v1994, 4
      %v1999 = vrot.slane %v1996, 4
      %v2000 = vsel %vm397, %v1997, %v1998
      %v2001 = vsel %vm563, %v1992, %v2000
      %v2002 = vsel %vm397, %v1998, %v1999
      %v2003 = vsel %vm563, %v1994, %v2002
      %2006 = vst [vmem:[#allocation3 + $0x140] sm:$0xff] %v2001
      %2007 = vst [vmem:[#allocation3 + $0x148] sm:$0xff] %v2003
      %v2008 = vld [vmem:[#allocation2 + $0x8] sm:$0xff]
      %v2009 = vld [vmem:[#allocation2 + $0x10] sm:$0xff]
      %v2010 = vld [vmem:[#allocation2 + $0x18] sm:$0xff]
      %v2011 = vld [vmem:[#allocation2 + $0x20] sm:$0xff]
      %v2012 = vld [vmem:[#allocation2 + $0x28] sm:$0xff]
      %s2013 = scalar_lea.vmem %s5, 69
      %v2014 = vld [vmem:[%s2013] ss:$8 sm:$0xf]
      %v2016 = vlaneseq
      %v2017 = vshrl.u32 %v2016, 7
      %v2018 = vsub.s32 0, %v2017
      %v2019 = vrot.slane %v2014, %v2018
      %v2020 = vlaneseq
      %v2021 = vshrl.u32 %v2020, 7
      %v2022 = vsub.s32 1, %v2021
      %v2023 = vrot.slane %v2014, %v2022
      %v2024 = vlaneseq
      %v2025 = vshrl.u32 %v2024, 7
      %v2026 = vsub.s32 2, %v2025
      %v2027 = vrot.slane %v2014, %v2026
      %v2028 = vlaneseq
      %v2029 = vshrl.u32 %v2028, 7
      %v2030 = vsub.s32 3, %v2029
      %v2031 = vrot.slane %v2014, %v2030
      %2032 = vrot.lane.b32.xlu0 %v2019, 63
      %v2033 = vpop.permute.xlu0 %2032
      %2034 = vrot.lane.b32.xlu0 %v2023, 63
      %v2035 = vpop.permute.xlu0 %2034
      %2036 = vrot.lane.b32.xlu0 %v2027, 63
      %v2037 = vpop.permute.xlu0 %2036
      %2038 = vrot.lane.b32.xlu0 %v2031, 63
      %v2039 = vpop.permute.xlu0 %2038
      %v2040 = vsel %vm603, %v2033, %v2035
      %v2041 = vsel %vm603, %v2035, %v2037
      %v2042 = vsel %vm603, %v2037, %v2039
      %v2048 = vmul.f32 %v2008, %v2033
      %v2049 = vmul.f32 %v2009, %v2040
      %v2050 = vmul.f32 %v2010, %v2041
      %v2051 = vmul.f32 %v2011, %v2042
      %v2052 = vmul.f32 %v2012, %v2039
      %v2053 = vpack.c.bf16 %v2048, %v2048
      %v2054 = vpack.c.bf16 %v2049, %v2049
      %v2055 = vpack.c.bf16 %v2050, %v2050
      %v2056 = vpack.c.bf16 %v2051, %v2051
      %v2057 = vpack.c.bf16 %v2052, %v2052
      %v2063 = vunpack.c.l.b16 %v2053
      %v2064 = vunpack.c.l.b16 %v2054
      %v2065 = vunpack.c.l.b16 %v2055
      %v2066 = vunpack.c.l.b16 %v2056
      %v2067 = vunpack.c.l.b16 %v2057
      %v2068 = vpack.c.b16 %v2064, %v2063
      %v2069 = vpack.c.b16 %v2066, %v2065
      %v2070 = vpack.c.b16 %v2067, %v2067
      %2071 = vrot.lane.b32.xlu0 %v2068, 65
      %v2072 = vpop.permute.xlu0 %2071
      %2073 = vrot.lane.b32.xlu0 %v2069, 65
      %v2074 = vpop.permute.xlu0 %2073
      %2075 = vrot.lane.b32.xlu0 %v2070, 65
      %v2076 = vpop.permute.xlu0 %2075
      %v2077 = vrot.slane %v2072, 4
      %v2078 = vrot.slane %v2074, 4
      %v2079 = vrot.slane %v2076, 4
      %v2080 = vsel %vm397, %v2077, %v2078
      %v2081 = vsel %vm645, %v2072, %v2080
      %v2082 = vsel %vm397, %v2078, %v2079
      %v2083 = vsel %vm645, %v2074, %v2082
      %2086 = vst [vmem:[#allocation3 + $0x150] sm:$0xff] %v2081
      %2087 = vst [vmem:[#allocation3 + $0x158] sm:$0xff] %v2083
      %v2088 = vld [vmem:[#allocation2 + $0x8] sm:$0xff]
      %v2089 = vld [vmem:[#allocation2 + $0x10] sm:$0xff]
      %v2090 = vld [vmem:[#allocation2 + $0x18] sm:$0xff]
      %v2091 = vld [vmem:[#allocation2 + $0x20] sm:$0xff]
      %v2092 = vld [vmem:[#allocation2 + $0x28] sm:$0xff]
      %s2093 = scalar_lea.vmem %s5, 70
      %v2094 = vld [vmem:[%s2093] ss:$8 sm:$0xf]
      %v2096 = vlaneseq
      %v2097 = vshrl.u32 %v2096, 7
      %v2098 = vsub.s32 0, %v2097
      %v2099 = vrot.slane %v2094, %v2098
      %v2100 = vlaneseq
      %v2101 = vshrl.u32 %v2100, 7
      %v2102 = vsub.s32 1, %v2101
      %v2103 = vrot.slane %v2094, %v2102
      %v2104 = vlaneseq
      %v2105 = vshrl.u32 %v2104, 7
      %v2106 = vsub.s32 2, %v2105
      %v2107 = vrot.slane %v2094, %v2106
      %v2108 = vlaneseq
      %v2109 = vshrl.u32 %v2108, 7
      %v2110 = vsub.s32 3, %v2109
      %v2111 = vrot.slane %v2094, %v2110
      %2112 = vrot.lane.b32.xlu0 %v2099, 64
      %v2113 = vpop.permute.xlu0 %2112
      %2114 = vrot.lane.b32.xlu0 %v2103, 64
      %v2115 = vpop.permute.xlu0 %2114
      %2116 = vrot.lane.b32.xlu0 %v2107, 64
      %v2117 = vpop.permute.xlu0 %2116
      %2118 = vrot.lane.b32.xlu0 %v2111, 64
      %v2119 = vpop.permute.xlu0 %2118
      %v2120 = vsel %vm685, %v2113, %v2115
      %v2121 = vsel %vm685, %v2115, %v2117
      %v2122 = vsel %vm685, %v2117, %v2119
      %v2128 = vmul.f32 %v2088, %v2113
      %v2129 = vmul.f32 %v2089, %v2120
      %v2130 = vmul.f32 %v2090, %v2121
      %v2131 = vmul.f32 %v2091, %v2122
      %v2132 = vmul.f32 %v2092, %v2119
      %v2133 = vpack.c.bf16 %v2128, %v2128
      %v2134 = vpack.c.bf16 %v2129, %v2129
      %v2135 = vpack.c.bf16 %v2130, %v2130
      %v2136 = vpack.c.bf16 %v2131, %v2131
      %v2137 = vpack.c.bf16 %v2132, %v2132
      %v2143 = vunpack.c.l.b16 %v2133
      %v2144 = vunpack.c.l.b16 %v2134
      %v2145 = vunpack.c.l.b16 %v2135
      %v2146 = vunpack.c.l.b16 %v2136
      %v2147 = vunpack.c.l.b16 %v2137
      %v2148 = vpack.c.b16 %v2144, %v2143
      %v2149 = vpack.c.b16 %v2146, %v2145
      %v2150 = vpack.c.b16 %v2147, %v2147
      %2151 = vrot.lane.b32.xlu0 %v2148, 64
      %v2152 = vpop.permute.xlu0 %2151
      %2153 = vrot.lane.b32.xlu0 %v2149, 64
      %v2154 = vpop.permute.xlu0 %2153
      %2155 = vrot.lane.b32.xlu0 %v2150, 64
      %v2156 = vpop.permute.xlu0 %2155
      %v2157 = vrot.slane %v2152, 4
      %v2158 = vrot.slane %v2154, 4
      %v2159 = vrot.slane %v2156, 4
      %v2160 = vsel %vm397, %v2157, %v2158
      %v2161 = vsel %vm727, %v2152, %v2160
      %v2162 = vsel %vm397, %v2158, %v2159
      %v2163 = vsel %vm727, %v2154, %v2162
      %2166 = vst [vmem:[#allocation3 + $0x160] sm:$0xff] %v2161
      %2167 = vst [vmem:[#allocation3 + $0x168] sm:$0xff] %v2163
      %v2168 = vld [vmem:[#allocation2 + $0x8] sm:$0xff]
      %v2169 = vld [vmem:[#allocation2 + $0x10] sm:$0xff]
      %v2170 = vld [vmem:[#allocation2 + $0x18] sm:$0xff]
      %v2171 = vld [vmem:[#allocation2 + $0x20] sm:$0xff]
      %v2172 = vld [vmem:[#allocation2 + $0x28] sm:$0xff]
      %s2173 = scalar_lea.vmem %s5, 71
      %v2174 = vld [vmem:[%s2173] ss:$8 sm:$0xf]
      %v2176 = vlaneseq
      %v2177 = vshrl.u32 %v2176, 7
      %v2178 = vsub.s32 0, %v2177
      %v2179 = vrot.slane %v2174, %v2178
      %v2180 = vlaneseq
      %v2181 = vshrl.u32 %v2180, 7
      %v2182 = vsub.s32 1, %v2181
      %v2183 = vrot.slane %v2174, %v2182
      %v2184 = vlaneseq
      %v2185 = vshrl.u32 %v2184, 7
      %v2186 = vsub.s32 2, %v2185
      %v2187 = vrot.slane %v2174, %v2186
      %v2188 = vlaneseq
      %v2189 = vshrl.u32 %v2188, 7
      %v2190 = vsub.s32 3, %v2189
      %v2191 = vrot.slane %v2174, %v2190
      %2192 = vrot.lane.b32.xlu0 %v2179, 65
      %v2193 = vpop.permute.xlu0 %2192
      %2194 = vrot.lane.b32.xlu0 %v2183, 65
      %v2195 = vpop.permute.xlu0 %2194
      %2196 = vrot.lane.b32.xlu0 %v2187, 65
      %v2197 = vpop.permute.xlu0 %2196
      %2198 = vrot.lane.b32.xlu0 %v2191, 65
      %v2199 = vpop.permute.xlu0 %2198
      %v2200 = vsel %vm767, %v2193, %v2195
      %v2201 = vsel %vm767, %v2195, %v2197
      %v2202 = vsel %vm767, %v2197, %v2199
      %v2208 = vmul.f32 %v2168, %v2193
      %v2209 = vmul.f32 %v2169, %v2200
      %v2210 = vmul.f32 %v2170, %v2201
      %v2211 = vmul.f32 %v2171, %v2202
      %v2212 = vmul.f32 %v2172, %v2199
      %v2213 = vpack.c.bf16 %v2208, %v2208
      %v2214 = vpack.c.bf16 %v2209, %v2209
      %v2215 = vpack.c.bf16 %v2210, %v2210
      %v2216 = vpack.c.bf16 %v2211, %v2211
      %v2217 = vpack.c.bf16 %v2212, %v2212
      %v2223 = vunpack.c.l.b16 %v2213
      %v2224 = vunpack.c.l.b16 %v2214
      %v2225 = vunpack.c.l.b16 %v2215
      %v2226 = vunpack.c.l.b16 %v2216
      %v2227 = vunpack.c.l.b16 %v2217
      %v2228 = vpack.c.b16 %v2224, %v2223
      %v2229 = vpack.c.b16 %v2226, %v2225
      %v2230 = vpack.c.b16 %v2227, %v2227
      %2231 = vrot.lane.b32.xlu0 %v2228, 63
      %v2232 = vpop.permute.xlu0 %2231
      %2233 = vrot.lane.b32.xlu0 %v2229, 63
      %v2234 = vpop.permute.xlu0 %2233
      %2235 = vrot.lane.b32.xlu0 %v2230, 63
      %v2236 = vpop.permute.xlu0 %2235
      %v2237 = vrot.slane %v2232, 4
      %v2238 = vrot.slane %v2234, 4
      %v2239 = vrot.slane %v2236, 4
      %v2240 = vsel %vm397, %v2237, %v2238
      %v2241 = vsel %vm809, %v2232, %v2240
      %v2242 = vsel %vm397, %v2238, %v2239
      %v2243 = vsel %vm809, %v2234, %v2242
      %2246 = vst [vmem:[#allocation3 + $0x170] sm:$0xff] %v2241
      %2247 = vst [vmem:[#allocation3 + $0x178] sm:$0xff] %v2243
      %v2248 = vld [vmem:[#allocation2 + $0x8] sm:$0xff]
      %v2249 = vld [vmem:[#allocation2 + $0x10] sm:$0xff]
      %v2250 = vld [vmem:[#allocation2 + $0x18] sm:$0xff]
      %v2251 = vld [vmem:[#allocation2 + $0x20] sm:$0xff]
      %v2252 = vld [vmem:[#allocation2 + $0x28] sm:$0xff]
      %s2253 = scalar_lea.vmem %s5, 96
      %v2254 = vld [vmem:[%s2253] ss:$8 sm:$0xf]
      %v2256 = vlaneseq
      %v2257 = vshrl.u32 %v2256, 7
      %v2258 = vsub.s32 0, %v2257
      %v2259 = vrot.slane %v2254, %v2258
      %v2260 = vlaneseq
      %v2261 = vshrl.u32 %v2260, 7
      %v2262 = vsub.s32 1, %v2261
      %v2263 = vrot.slane %v2254, %v2262
      %v2264 = vlaneseq
      %v2265 = vshrl.u32 %v2264, 7
      %v2266 = vsub.s32 2, %v2265
      %v2267 = vrot.slane %v2254, %v2266
      %v2268 = vlaneseq
      %v2269 = vshrl.u32 %v2268, 7
      %v2270 = vsub.s32 3, %v2269
      %v2271 = vrot.slane %v2254, %v2270
      %2272 = vrot.lane.b32.xlu0 %v2259, 71
      %v2273 = vpop.permute.xlu0 %2272
      %2274 = vrot.lane.b32.xlu0 %v2263, 71
      %v2275 = vpop.permute.xlu0 %2274
      %2276 = vrot.lane.b32.xlu0 %v2267, 71
      %v2277 = vpop.permute.xlu0 %2276
      %2278 = vrot.lane.b32.xlu0 %v2271, 71
      %v2279 = vpop.permute.xlu0 %2278
      %v2280 = vsel %vm849, %v2273, %v2275
      %v2281 = vsel %vm849, %v2275, %v2277
      %v2282 = vsel %vm849, %v2277, %v2279
      %v2288 = vmul.f32 %v2248, %v2273
      %v2289 = vmul.f32 %v2249, %v2280
      %v2290 = vmul.f32 %v2250, %v2281
      %v2291 = vmul.f32 %v2251, %v2282
      %v2292 = vmul.f32 %v2252, %v2279
      %v2293 = vpack.c.bf16 %v2288, %v2288
      %v2294 = vpack.c.bf16 %v2289, %v2289
      %v2295 = vpack.c.bf16 %v2290, %v2290
      %v2296 = vpack.c.bf16 %v2291, %v2291
      %v2297 = vpack.c.bf16 %v2292, %v2292
      %v2303 = vunpack.c.l.b16 %v2293
      %v2304 = vunpack.c.l.b16 %v2294
      %v2305 = vunpack.c.l.b16 %v2295
      %v2306 = vunpack.c.l.b16 %v2296
      %v2307 = vunpack.c.l.b16 %v2297
      %v2308 = vpack.c.b16 %v2304, %v2303
      %v2309 = vpack.c.b16 %v2306, %v2305
      %v2310 = vpack.c.b16 %v2307, %v2307
      %2311 = vrot.lane.b32.xlu0 %v2308, 57
      %v2312 = vpop.permute.xlu0 %2311
      %2313 = vrot.lane.b32.xlu0 %v2309, 57
      %v2314 = vpop.permute.xlu0 %2313
      %2315 = vrot.lane.b32.xlu0 %v2310, 57
      %v2316 = vpop.permute.xlu0 %2315
      %v2317 = vrot.slane %v2312, 4
      %v2318 = vrot.slane %v2314, 4
      %v2319 = vrot.slane %v2316, 4
      %v2320 = vsel %vm397, %v2317, %v2318
      %v2321 = vsel %vm891, %v2312, %v2320
      %v2322 = vsel %vm397, %v2318, %v2319
      %v2323 = vsel %vm891, %v2314, %v2322
      %2326 = vst [vmem:[#allocation3 + $0x180] sm:$0xff] %v2321
      %2327 = vst [vmem:[#allocation3 + $0x188] sm:$0xff] %v2323
      %v2328 = vld [vmem:[#allocation2 + $0x8] sm:$0xff]
      %v2329 = vld [vmem:[#allocation2 + $0x10] sm:$0xff]
      %v2330 = vld [vmem:[#allocation2 + $0x18] sm:$0xff]
      %v2331 = vld [vmem:[#allocation2 + $0x20] sm:$0xff]
      %v2332 = vld [vmem:[#allocation2 + $0x28] sm:$0xff]
      %s2333 = scalar_lea.vmem %s5, 97
      %v2334 = vld [vmem:[%s2333] ss:$8 sm:$0xf]
      %v2336 = vlaneseq
      %v2337 = vshrl.u32 %v2336, 7
      %v2338 = vsub.s32 0, %v2337
      %v2339 = vrot.slane %v2334, %v2338
      %v2340 = vlaneseq
      %v2341 = vshrl.u32 %v2340, 7
      %v2342 = vsub.s32 1, %v2341
      %v2343 = vrot.slane %v2334, %v2342
      %v2344 = vlaneseq
      %v2345 = vshrl.u32 %v2344, 7
      %v2346 = vsub.s32 2, %v2345
      %v2347 = vrot.slane %v2334, %v2346
      %v2348 = vlaneseq
      %v2349 = vshrl.u32 %v2348, 7
      %v2350 = vsub.s32 3, %v2349
      %v2351 = vrot.slane %v2334, %v2350
      %2352 = vrot.lane.b32.xlu0 %v2339, 72
      %v2353 = vpop.permute.xlu0 %2352
      %2354 = vrot.lane.b32.xlu0 %v2343, 72
      %v2355 = vpop.permute.xlu0 %2354
      %2356 = vrot.lane.b32.xlu0 %v2347, 72
      %v2357 = vpop.permute.xlu0 %2356
      %2358 = vrot.lane.b32.xlu0 %v2351, 72
      %v2359 = vpop.permute.xlu0 %2358
      %v2360 = vsel %vm931, %v2353, %v2355
      %v2361 = vsel %vm931, %v2355, %v2357
      %v2362 = vsel %vm931, %v2357, %v2359
      %v2368 = vmul.f32 %v2328, %v2353
      %v2369 = vmul.f32 %v2329, %v2360
      %v2370 = vmul.f32 %v2330, %v2361
      %v2371 = vmul.f32 %v2331, %v2362
      %v2372 = vmul.f32 %v2332, %v2359
      %v2373 = vpack.c.bf16 %v2368, %v2368
      %v2374 = vpack.c.bf16 %v2369, %v2369
      %v2375 = vpack.c.bf16 %v2370, %v2370
      %v2376 = vpack.c.bf16 %v2371, %v2371
      %v2377 = vpack.c.bf16 %v2372, %v2372
      %v2383 = vunpack.c.l.b16 %v2373
      %v2384 = vunpack.c.l.b16 %v2374
      %v2385 = vunpack.c.l.b16 %v2375
      %v2386 = vunpack.c.l.b16 %v2376
      %v2387 = vunpack.c.l.b16 %v2377
      %v2388 = vpack.c.b16 %v2384, %v2383
      %v2389 = vpack.c.b16 %v2386, %v2385
      %v2390 = vpack.c.b16 %v2387, %v2387
      %2391 = vrot.lane.b32.xlu0 %v2388, 56
      %v2392 = vpop.permute.xlu0 %2391
      %2393 = vrot.lane.b32.xlu0 %v2389, 56
      %v2394 = vpop.permute.xlu0 %2393
      %2395 = vrot.lane.b32.xlu0 %v2390, 56
      %v2396 = vpop.permute.xlu0 %2395
      %v2397 = vrot.slane %v2392, 4
      %v2398 = vrot.slane %v2394, 4
      %v2399 = vrot.slane %v2396, 4
      %v2400 = vsel %vm397, %v2397, %v2398
      %v2401 = vsel %vm973, %v2392, %v2400
      %v2402 = vsel %vm397, %v2398, %v2399
      %v2403 = vsel %vm973, %v2394, %v2402
      %2406 = vst [vmem:[#allocation3 + $0x190] sm:$0xff] %v2401
      %2407 = vst [vmem:[#allocation3 + $0x198] sm:$0xff] %v2403
      %v2408 = vld [vmem:[#allocation2 + $0x8] sm:$0xff]
      %v2409 = vld [vmem:[#allocation2 + $0x10] sm:$0xff]
      %v2410 = vld [vmem:[#allocation2 + $0x18] sm:$0xff]
      %v2411 = vld [vmem:[#allocation2 + $0x20] sm:$0xff]
      %v2412 = vld [vmem:[#allocation2 + $0x28] sm:$0xff]
      %s2413 = scalar_lea.vmem %s5, 98
      %v2414 = vld [vmem:[%s2413] ss:$8 sm:$0xf]
      %v2416 = vlaneseq
      %v2417 = vshrl.u32 %v2416, 7
      %v2418 = vsub.s32 0, %v2417
      %v2419 = vrot.slane %v2414, %v2418
      %v2420 = vlaneseq
      %v2421 = vshrl.u32 %v2420, 7
      %v2422 = vsub.s32 1, %v2421
      %v2423 = vrot.slane %v2414, %v2422
      %v2424 = vlaneseq
      %v2425 = vshrl.u32 %v2424, 7
      %v2426 = vsub.s32 2, %v2425
      %v2427 = vrot.slane %v2414, %v2426
      %v2428 = vlaneseq
      %v2429 = vshrl.u32 %v2428, 7
      %v2430 = vsub.s32 3, %v2429
      %v2431 = vrot.slane %v2414, %v2430
      %2432 = vrot.lane.b32.xlu0 %v2419, 73
      %v2433 = vpop.permute.xlu0 %2432
      %2434 = vrot.lane.b32.xlu0 %v2423, 73
      %v2435 = vpop.permute.xlu0 %2434
      %2436 = vrot.lane.b32.xlu0 %v2427, 73
      %v2437 = vpop.permute.xlu0 %2436
      %2438 = vrot.lane.b32.xlu0 %v2431, 73
      %v2439 = vpop.permute.xlu0 %2438
      %v2440 = vsel %vm1013, %v2433, %v2435
      %v2441 = vsel %vm1013, %v2435, %v2437
      %v2442 = vsel %vm1013, %v2437, %v2439
      %v2448 = vmul.f32 %v2408, %v2433
      %v2449 = vmul.f32 %v2409, %v2440
      %v2450 = vmul.f32 %v2410, %v2441
      %v2451 = vmul.f32 %v2411, %v2442
      %v2452 = vmul.f32 %v2412, %v2439
      %v2453 = vpack.c.bf16 %v2448, %v2448
      %v2454 = vpack.c.bf16 %v2449, %v2449
      %v2455 = vpack.c.bf16 %v2450, %v2450
      %v2456 = vpack.c.bf16 %v2451, %v2451
      %v2457 = vpack.c.bf16 %v2452, %v2452
      %v2463 = vunpack.c.l.b16 %v2453
      %v2464 = vunpack.c.l.b16 %v2454
      %v2465 = vunpack.c.l.b16 %v2455
      %v2466 = vunpack.c.l.b16 %v2456
      %v2467 = vunpack.c.l.b16 %v2457
      %v2468 = vpack.c.b16 %v2464, %v2463
      %v2469 = vpack.c.b16 %v2466, %v2465
      %v2470 = vpack.c.b16 %v2467, %v2467
      %2471 = vrot.lane.b32.xlu0 %v2468, 55
      %v2472 = vpop.permute.xlu0 %2471
      %2473 = vrot.lane.b32.xlu0 %v2469, 55
      %v2474 = vpop.permute.xlu0 %2473
      %2475 = vrot.lane.b32.xlu0 %v2470, 55
      %v2476 = vpop.permute.xlu0 %2475
      %v2477 = vrot.slane %v2472, 4
      %v2478 = vrot.slane %v2474, 4
      %v2479 = vrot.slane %v2476, 4
      %v2480 = vsel %vm397, %v2477, %v2478
      %v2481 = vsel %vm1055, %v2472, %v2480
      %v2482 = vsel %vm397, %v2478, %v2479
      %v2483 = vsel %vm1055, %v2474, %v2482
      %2486 = vst [vmem:[#allocation3 + $0x1a0] sm:$0xff] %v2481
      %2487 = vst [vmem:[#allocation3 + $0x1a8] sm:$0xff] %v2483
      %v2488 = vld [vmem:[%s3] sm:$0xff]
      %v2489 = vld [vmem:[#allocation3] sm:$0xff]
      %v2490 = vld [vmem:[#allocation3 + $0x8] sm:$0xff]
      %v2491 = vld [vmem:[#allocation3 + $0x10] sm:$0xff]
      %v2492 = vld [vmem:[#allocation3 + $0x18] sm:$0xff]
      %v2493 = vld [vmem:[#allocation3 + $0x20] sm:$0xff]
      %v2494 = vld [vmem:[#allocation3 + $0x28] sm:$0xff]
      %v2495 = vld [vmem:[#allocation3 + $0x30] sm:$0xff]
      %v2496 = vld [vmem:[#allocation3 + $0x38] sm:$0xff]
      %v2497 = vld [vmem:[#allocation3 + $0x40] sm:$0xff]
      %v2498 = vld [vmem:[#allocation3 + $0x48] sm:$0xff]
      %v2499 = vld [vmem:[#allocation3 + $0x50] sm:$0xff]
      %v2500 = vld [vmem:[#allocation3 + $0x58] sm:$0xff]
      %v2501 = vld [vmem:[#allocation3 + $0x60] sm:$0xff]
      %v2502 = vld [vmem:[#allocation3 + $0x68] sm:$0xff]
      %v2503 = vld [vmem:[#allocation3 + $0x70] sm:$0xff]
      %v2504 = vld [vmem:[#allocation3 + $0x78] sm:$0xff]
      %v2505 = vld [vmem:[#allocation3 + $0x80] sm:$0xff]
      %v2506 = vld [vmem:[#allocation3 + $0x88] sm:$0xff]
      %v2507 = vld [vmem:[#allocation3 + $0x90] sm:$0xff]
      %v2508 = vld [vmem:[#allocation3 + $0x98] sm:$0xff]
      %v2509 = vld [vmem:[#allocation3 + $0xa0] sm:$0xff]
      %v2510 = vld [vmem:[#allocation3 + $0xa8] sm:$0xff]
      %v2511 = vld [vmem:[#allocation3 + $0xb0] sm:$0xff]
      %v2512 = vld [vmem:[#allocation3 + $0xb8] sm:$0xff]
      %v2513 = vld [vmem:[#allocation3 + $0xc0] sm:$0xff]
      %v2514 = vld [vmem:[#allocation3 + $0xc8] sm:$0xff]
      %v2515 = vld [vmem:[#allocation3 + $0xd0] sm:$0xff]
      %v2516 = vld [vmem:[#allocation3 + $0xd8] sm:$0xff]
      %v2517 = vld [vmem:[#allocation3 + $0xe0] sm:$0xff]
      %v2518 = vld [vmem:[#allocation3 + $0xe8] sm:$0xff]
      %v2519 = vld [vmem:[#allocation3 + $0xf0] sm:$0xff]
      %v2520 = vld [vmem:[#allocation3 + $0xf8] sm:$0xff]
      %v2521 = vld [vmem:[#allocation3 + $0x100] sm:$0xff]
      %v2522 = vld [vmem:[#allocation3 + $0x108] sm:$0xff]
      %v2523 = vld [vmem:[#allocation3 + $0x110] sm:$0xff]
      %v2524 = vld [vmem:[#allocation3 + $0x118] sm:$0xff]
      %v2525 = vld [vmem:[#allocation3 + $0x120] sm:$0xff]
      %v2526 = vld [vmem:[#allocation3 + $0x128] sm:$0xff]
      %v2527 = vld [vmem:[#allocation3 + $0x130] sm:$0xff]
      %v2528 = vld [vmem:[#allocation3 + $0x138] sm:$0xff]
      %v2529 = vld [vmem:[#allocation3 + $0x140] sm:$0xff]
      %v2530 = vld [vmem:[#allocation3 + $0x148] sm:$0xff]
      %v2531 = vld [vmem:[#allocation3 + $0x150] sm:$0xff]
      %v2532 = vld [vmem:[#allocation3 + $0x158] sm:$0xff]
      %v2533 = vld [vmem:[#allocation3 + $0x160] sm:$0xff]
      %v2534 = vld [vmem:[#allocation3 + $0x168] sm:$0xff]
      %v2535 = vld [vmem:[#allocation3 + $0x170] sm:$0xff]
      %v2536 = vld [vmem:[#allocation3 + $0x178] sm:$0xff]
      %v2537 = vld [vmem:[#allocation3 + $0x180] sm:$0xff]
      %v2538 = vld [vmem:[#allocation3 + $0x188] sm:$0xff]
      %v2539 = vld [vmem:[#allocation3 + $0x190] sm:$0xff]
      %v2540 = vld [vmem:[#allocation3 + $0x198] sm:$0xff]
      %v2541 = vld [vmem:[#allocation3 + $0x1a0] sm:$0xff]
      %v2542 = vld [vmem:[#allocation3 + $0x1a8] sm:$0xff]
      %v2543 = vld [vmem:[%s4] sm:$0xff]
      %2545 = vset.pattern.permute.xlu0 0
      %2546 = vperm.xlu0 %2545, %v2543
      %v2547 = vpop.permute.xlu0 %2546
      %v2550 = vunpack.c.l.b16 %v2488
      %v2551 = vunpack.c.h.b16 %v2488
      %v2552 = vpack.c.b16 %v2550, %v2550
      %v2553 = vpack.c.b16 %v2551, %v2551
      %v2609 = vunpack.c.l.b16 %v2489
      %v2610 = vunpack.c.h.b16 %v2489
      %v2611 = vunpack.c.l.b16 %v2490
      %v2612 = vunpack.c.h.b16 %v2490
      %v2613 = vunpack.c.l.b16 %v2491
      %v2614 = vunpack.c.h.b16 %v2491
      %v2615 = vunpack.c.l.b16 %v2492
      %v2616 = vunpack.c.h.b16 %v2492
      %v2617 = vunpack.c.l.b16 %v2493
      %v2618 = vunpack.c.h.b16 %v2493
      %v2619 = vunpack.c.l.b16 %v2494
      %v2620 = vunpack.c.h.b16 %v2494
      %v2621 = vunpack.c.l.b16 %v2495
      %v2622 = vunpack.c.h.b16 %v2495
      %v2623 = vunpack.c.l.b16 %v2496
      %v2624 = vunpack.c.h.b16 %v2496
      %v2625 = vunpack.c.l.b16 %v2497
      %v2626 = vunpack.c.h.b16 %v2497
      %v2627 = vunpack.c.l.b16 %v2498
      %v2628 = vunpack.c.h.b16 %v2498
      %v2629 = vunpack.c.l.b16 %v2499
      %v2630 = vunpack.c.h.b16 %v2499
      %v2631 = vunpack.c.l.b16 %v2500
      %v2632 = vunpack.c.h.b16 %v2500
      %v2633 = vunpack.c.l.b16 %v2501
      %v2634 = vunpack.c.h.b16 %v2501
      %v2635 = vunpack.c.l.b16 %v2502
      %v2636 = vunpack.c.h.b16 %v2502
      %v2637 = vunpack.c.l.b16 %v2503
      %v2638 = vunpack.c.h.b16 %v2503
      %v2639 = vunpack.c.l.b16 %v2504
      %v2640 = vunpack.c.h.b16 %v2504
      %v2641 = vunpack.c.l.b16 %v2505
      %v2642 = vunpack.c.h.b16 %v2505
      %v2643 = vunpack.c.l.b16 %v2506
      %v2644 = vunpack.c.h.b16 %v2506
      %v2645 = vunpack.c.l.b16 %v2507
      %v2646 = vunpack.c.h.b16 %v2507
      %v2647 = vunpack.c.l.b16 %v2508
      %v2648 = vunpack.c.h.b16 %v2508
      %v2649 = vunpack.c.l.b16 %v2509
      %v2650 = vunpack.c.h.b16 %v2509
      %v2651 = vunpack.c.l.b16 %v2510
      %v2652 = vunpack.c.h.b16 %v2510
      %v2653 = vunpack.c.l.b16 %v2511
      %v2654 = vunpack.c.h.b16 %v2511
      %v2655 = vunpack.c.l.b16 %v2512
      %v2656 = vunpack.c.h.b16 %v2512
      %v2657 = vunpack.c.l.b16 %v2513
      %v2658 = vunpack.c.h.b16 %v2513
      %v2659 = vunpack.c.l.b16 %v2514
      %v2660 = vunpack.c.h.b16 %v2514
      %v2661 = vunpack.c.l.b16 %v2515
      %v2662 = vunpack.c.h.b16 %v2515
      %v2663 = vunpack.c.l.b16 %v2516
      %v2664 = vunpack.c.h.b16 %v2516
      %v2665 = vunpack.c.l.b16 %v2517
      %v2666 = vunpack.c.h.b16 %v2517
      %v2667 = vunpack.c.l.b16 %v2518
      %v2668 = vunpack.c.h.b16 %v2518
      %v2669 = vunpack.c.l.b16 %v2519
      %v2670 = vunpack.c.h.b16 %v2519
      %v2671 = vunpack.c.l.b16 %v2520
      %v2672 = vunpack.c.h.b16 %v2520
      %v2673 = vunpack.c.l.b16 %v2521
      %v2674 = vunpack.c.h.b16 %v2521
      %v2675 = vunpack.c.l.b16 %v2522
      %v2676 = vunpack.c.h.b16 %v2522
      %v2677 = vunpack.c.l.b16 %v2523
      %v2678 = vunpack.c.h.b16 %v2523
      %v2679 = vunpack.c.l.b16 %v2524
      %v2680 = vunpack.c.h.b16 %v2524
      %v2681 = vunpack.c.l.b16 %v2525
      %v2682 = vunpack.c.h.b16 %v2525
      %v2683 = vunpack.c.l.b16 %v2526
      %v2684 = vunpack.c.h.b16 %v2526
      %v2685 = vunpack.c.l.b16 %v2527
      %v2686 = vunpack.c.h.b16 %v2527
      %v2687 = vunpack.c.l.b16 %v2528
      %v2688 = vunpack.c.h.b16 %v2528
      %v2689 = vunpack.c.l.b16 %v2529
      %v2690 = vunpack.c.h.b16 %v2529
      %v2691 = vunpack.c.l.b16 %v2530
      %v2692 = vunpack.c.h.b16 %v2530
      %v2693 = vunpack.c.l.b16 %v2531
      %v2694 = vunpack.c.h.b16 %v2531
      %v2695 = vunpack.c.l.b16 %v2532
      %v2696 = vunpack.c.h.b16 %v2532
      %v2697 = vunpack.c.l.b16 %v2533
      %v2698 = vunpack.c.h.b16 %v2533
      %v2699 = vunpack.c.l.b16 %v2534
      %v2700 = vunpack.c.h.b16 %v2534
      %v2701 = vunpack.c.l.b16 %v2535
      %v2702 = vunpack.c.h.b16 %v2535
      %v2703 = vunpack.c.l.b16 %v2536
      %v2704 = vunpack.c.h.b16 %v2536
      %v2705 = vunpack.c.l.b16 %v2537
      %v2706 = vunpack.c.h.b16 %v2537
      %v2707 = vunpack.c.l.b16 %v2538
      %v2708 = vunpack.c.h.b16 %v2538
      %v2709 = vunpack.c.l.b16 %v2539
      %v2710 = vunpack.c.h.b16 %v2539
      %v2711 = vunpack.c.l.b16 %v2540
      %v2712 = vunpack.c.h.b16 %v2540
      %v2713 = vunpack.c.l.b16 %v2541
      %v2714 = vunpack.c.h.b16 %v2541
      %v2715 = vunpack.c.l.b16 %v2542
      %v2716 = vunpack.c.h.b16 %v2542
      %v2717 = vpack.c.b16 %v2613, %v2609
      %v2718 = vpack.c.b16 %v2614, %v2610
      %v2719 = vpack.c.b16 %v2615, %v2611
      %v2720 = vpack.c.b16 %v2616, %v2612
      %v2721 = vpack.c.b16 %v2621, %v2617
      %v2722 = vpack.c.b16 %v2622, %v2618
      %v2723 = vpack.c.b16 %v2623, %v2619
      %v2724 = vpack.c.b16 %v2624, %v2620
      %v2725 = vpack.c.b16 %v2629, %v2625
      %v2726 = vpack.c.b16 %v2630, %v2626
      %v2727 = vpack.c.b16 %v2631, %v2627
      %v2728 = vpack.c.b16 %v2632, %v2628
      %v2729 = vpack.c.b16 %v2637, %v2633
      %v2730 = vpack.c.b16 %v2638, %v2634
      %v2731 = vpack.c.b16 %v2639, %v2635
      %v2732 = vpack.c.b16 %v2640, %v2636
      %v2733 = vpack.c.b16 %v2645, %v2641
      %v2734 = vpack.c.b16 %v2646, %v2642
      %v2735 = vpack.c.b16 %v2647, %v2643
      %v2736 = vpack.c.b16 %v2648, %v2644
      %v2737 = vpack.c.b16 %v2653, %v2649
      %v2738 = vpack.c.b16 %v2654, %v2650
      %v2739 = vpack.c.b16 %v2655, %v2651
      %v2740 = vpack.c.b16 %v2656, %v2652
      %v2741 = vpack.c.b16 %v2661, %v2657
      %v2742 = vpack.c.b16 %v2662, %v2658
      %v2743 = vpack.c.b16 %v2663, %v2659
      %v2744 = vpack.c.b16 %v2664, %v2660
      %v2745 = vpack.c.b16 %v2669, %v2665
      %v2746 = vpack.c.b16 %v2670, %v2666
      %v2747 = vpack.c.b16 %v2671, %v2667
      %v2748 = vpack.c.b16 %v2672, %v2668
      %v2749 = vpack.c.b16 %v2677, %v2673
      %v2750 = vpack.c.b16 %v2678, %v2674
      %v2751 = vpack.c.b16 %v2679, %v2675
      %v2752 = vpack.c.b16 %v2680, %v2676
      %v2753 = vpack.c.b16 %v2685, %v2681
      %v2754 = vpack.c.b16 %v2686, %v2682
      %v2755 = vpack.c.b16 %v2687, %v2683
      %v2756 = vpack.c.b16 %v2688, %v2684
      %v2757 = vpack.c.b16 %v2693, %v2689
      %v2758 = vpack.c.b16 %v2694, %v2690
      %v2759 = vpack.c.b16 %v2695, %v2691
      %v2760 = vpack.c.b16 %v2696, %v2692
      %v2761 = vpack.c.b16 %v2701, %v2697
      %v2762 = vpack.c.b16 %v2702, %v2698
      %v2763 = vpack.c.b16 %v2703, %v2699
      %v2764 = vpack.c.b16 %v2704, %v2700
      %v2765 = vpack.c.b16 %v2709, %v2705
      %v2766 = vpack.c.b16 %v2710, %v2706
      %v2767 = vpack.c.b16 %v2711, %v2707
      %v2768 = vpack.c.b16 %v2712, %v2708
      %v2769 = vpack.c.b16 %v2713, %v2713
      %v2770 = vpack.c.b16 %v2714, %v2714
      %v2771 = vpack.c.b16 %v2715, %v2715
      %v2772 = vpack.c.b16 %v2716, %v2716
      %vm2825 = vcmask 719872
      %v2827 = vsel %vm2825, %v2553, 0
      %vm2829 = vcmask 1043456
      %v2831 = vsel %vm2829, %v2769, 0
      %v2834 = vsel %vm2829, %v2770, 0
      %v2837 = vsel %vm2829, %v2771, 0
      %v2840 = vsel %vm2829, %v2772, 0
      %2842 = vmatprep.subr.bf16.mxu0 %v2718
      %2843 = vmatpush1.bf16.msra.mxu0 %v2717
      %2844 = vmatprep.subr.bf16.mxu0 %v2722
      %2845 = vmatpush1.bf16.msra.mxu0 %v2721
      %2846 = vmatprep.subr.bf16.mxu0 %v2726
      %2847 = vmatpush1.bf16.msra.mxu0 %v2725
      %2848 = vmatprep.subr.bf16.mxu0 %v2730
      %2849 = vmatpush1.bf16.msra.mxu0 %v2729
      %2850 = vmatprep.subr.bf16.mxu0 %v2734
      %2851 = vmatpush1.bf16.msra.mxu0 %v2733
      %2852 = vmatprep.subr.bf16.mxu0 %v2738
      %2853 = vmatpush1.bf16.msra.mxu0 %v2737
      %2854 = vmatprep.subr.bf16.mxu0 %v2742
      %2855 = vmatpush1.bf16.msra.mxu0 %v2741
      %2856 = vmatprep.subr.bf16.mxu0 %v2746
      %2857 = vmatpush1.bf16.msra.mxu0 %v2745
      %2858 = vmatprep.subr.bf16.mxu0 %v2750
      %2859 = vmatpush1.bf16.msra.mxu0 %v2749
      %2860 = vmatprep.subr.bf16.mxu0 %v2754
      %2861 = vmatpush1.bf16.msra.mxu0 %v2753
      %2862 = vmatprep.subr.bf16.mxu0 %v2758
      %2863 = vmatpush1.bf16.msra.mxu0 %v2757
      %2864 = vmatprep.subr.bf16.mxu0 %v2762
      %2865 = vmatpush1.bf16.msra.mxu0 %v2761
      %2866 = vmatprep.subr.bf16.mxu0 %v2766
      %2867 = vmatpush1.bf16.msra.mxu0 %v2765
      %2868 = vmatprep.subr.bf16.mxu0 %v2834
      %2869 = vmatpush1.bf16.msra.mxu0 %v2831
      %2870 = vmatprep.subr.bf16.mxu0 0
      %2871 = vmatpush1.bf16.msra.mxu0 0
      %2872 = vmatprep.subr.bf16.mxu0 0
      %2873 = vmatpush1.bf16.msra.mxu0 0
      %2874 = vmatprep.mubr.bf16.mxu0 %v2827
      %2875 = vmatmul.mubr.bf16.gmra.mrb[0].mxu0 %v2552
      %v2876 = vpop.f32.mrb[0].mxu0
      %v2877 = vadd.f32 %v2547, %v2876
      %v2878 = vpop.f32.mrb[0].mxu0
      %v2879 = vadd.f32 %v2547, %v2878
      %v2880 = vpop.f32.mrb[0].mxu0
      %v2881 = vpop.f32.mrb[0].mxu0
      %2882 = vdwg.mxu0
      %2883 = vmatprep.subr.bf16.mxu0 %v2720
      %2884 = vmatpush1.bf16.msra.mxu0 %v2719
      %2885 = vmatprep.subr.bf16.mxu0 %v2724
      %2886 = vmatpush1.bf16.msra.mxu0 %v2723
      %2887 = vmatprep.subr.bf16.mxu0 %v2728
      %2888 = vmatpush1.bf16.msra.mxu0 %v2727
      %2889 = vmatprep.subr.bf16.mxu0 %v2732
      %2890 = vmatpush1.bf16.msra.mxu0 %v2731
      %2891 = vmatprep.subr.bf16.mxu0 %v2736
      %2892 = vmatpush1.bf16.msra.mxu0 %v2735
      %2893 = vmatprep.subr.bf16.mxu0 %v2740
      %2894 = vmatpush1.bf16.msra.mxu0 %v2739
      %2895 = vmatprep.subr.bf16.mxu0 %v2744
      %2896 = vmatpush1.bf16.msra.mxu0 %v2743
      %2897 = vmatprep.subr.bf16.mxu0 %v2748
      %2898 = vmatpush1.bf16.msra.mxu0 %v2747
      %2899 = vmatprep.subr.bf16.mxu0 %v2752
      %2900 = vmatpush1.bf16.msra.mxu0 %v2751
      %2901 = vmatprep.subr.bf16.mxu0 %v2756
      %2902 = vmatpush1.bf16.msra.mxu0 %v2755
      %2903 = vmatprep.subr.bf16.mxu0 %v2760
      %2904 = vmatpush1.bf16.msra.mxu0 %v2759
      %2905 = vmatprep.subr.bf16.mxu0 %v2764
      %2906 = vmatpush1.bf16.msra.mxu0 %v2763
      %2907 = vmatprep.subr.bf16.mxu0 %v2768
      %2908 = vmatpush1.bf16.msra.mxu0 %v2767
      %2909 = vmatprep.subr.bf16.mxu0 %v2840
      %2910 = vmatpush1.bf16.msra.mxu0 %v2837
      %2911 = vmatprep.subr.bf16.mxu0 0
      %2912 = vmatpush1.bf16.msra.mxu0 0
      %2913 = vmatprep.subr.bf16.mxu0 0
      %2914 = vmatpush1.bf16.msra.mxu0 0
      %2915 = vmatprep.mubr.bf16.mxu0 %v2827
      %2916 = vmatmul.mubr.bf16.gmra.mrb[0].mxu0 %v2552
      %v2917 = vpop.f32.mrb[0].mxu0
      %v2918 = vadd.f32 %v2547, %v2917
      %v2919 = vpop.f32.mrb[0].mxu0
      %v2920 = vadd.f32 %v2547, %v2919
      %v2921 = vpop.f32.mrb[0].mxu0
      %v2922 = vpop.f32.mrb[0].mxu0
      %2923 = vdwg.mxu0
      %v2924 = vpack.c.bf16 %v2877, %v2877
      %v2925 = vpack.c.bf16 %v2879, %v2879
      %v2926 = vpack.c.bf16 %v2918, %v2918
      %v2927 = vpack.c.bf16 %v2920, %v2920
      %v2932 = vunpack.c.l.b16 %v2924
      %v2933 = vunpack.c.l.b16 %v2925
      %v2934 = vunpack.c.l.b16 %v2926
      %v2935 = vunpack.c.l.b16 %v2927
      %v2936 = vpack.c.b16 %v2933, %v2932
      %v2937 = vpack.c.b16 %v2935, %v2934
      %2940 = vst [vmem:[%s285] sm:$0xff] %v2936
      %2941 = vst [vmem:[%s285 + $0x8] sm:$0xff] %v2937
      %v2942 = vadd.f32 %v2877, %v2879
      %v2943 = vadd.f32 %v2942, %v2918
      %v2944 = vadd.f32 %v2943, %v2920
      %2945 = vadd.xlane.f32.xlu0 %v2944
      %v2946 = vpop.xlane.xlu0 %2945
      %2947 = vst.msk [vmem:[%s289] sm:$0xff] %vm1472, %v2946
      %v2948 = vmul.f32 %v2877, %v2877
      %v2949 = vmul.f32 %v2879, %v2879
      %v2950 = vmul.f32 %v2918, %v2918
      %v2951 = vmul.f32 %v2920, %v2920
      %v2952 = vadd.f32 %v2948, %v2949
      %v2953 = vadd.f32 %v2952, %v2950
      %v2954 = vadd.f32 %v2953, %v2951
      %2955 = vadd.xlane.f32.xlu0 %v2954
      %v2956 = vpop.xlane.xlu0 %2955
      %vm2957 = vcmask 15368
      %2958 = vst.msk [vmem:[%s289] sm:$0xff] %vm2957, %v2956
      %p2959 = scmp.lt.s32.totalorder %s19, 1
      %s2960 = scalar_select %p2959, %s19, 1
      %s2961 = smul.addr %s2960, 4
      %s2962 = smul.addr %s2961, 4
      %s2963 = scalar_lea.vmem %s6, %s2962
      %p2964 = scmp.lt.s32.totalorder %s19, 1
      %s2965 = scalar_select %p2964, %s19, 1
      %s2966 = smul.addr %s2965, 8
      %s2967 = scalar_lea.vmem %s7, %s2966
      // Predicated region
      $region45: #{resblock3d_forward.2} parent=43 // pred_check
        %p2968 = pneg %p168
      $region46: #{resblock3d_forward.2} parent=43 // pred_check_branch
        %2970 = sbr.rel (%p2968) target = $region48
      $region47: #{resblock3d_forward.2} parent=43 // pred_region
        _
      $region48: #{resblock3d_forward.2} parent=43 // pred_fallthru
        _
      // Predicated region
      $region49: #{resblock3d_forward.2} parent=43 // pred_check
        %p2971 = pneg %p194
      $region50: #{resblock3d_forward.2} parent=43 // pred_check_branch
        %2973 = sbr.rel (%p2971) target = $region52
      $region51: #{resblock3d_forward.2} parent=43 // pred_region
        _
      $region52: #{resblock3d_forward.2} parent=43 // pred_fallthru
        _
    $region44: #{resblock3d_forward.2} parent=5 // pred_fallthru
      _
    %p2974 = scmp.le.s32.totalorder 2, %s14
    // Predicated region
    $region53: #{resblock3d_forward.2} parent=5 // pred_check
      %p2975 = pneg %p2974
    $region54: #{resblock3d_forward.2} parent=5 // pred_check_branch
      %2977 = sbr.rel (%p2975) target = $region56
    $region55: #{resblock3d_forward.2} parent=5 // pred_region
      %s2978 = ssub.s32 %s14, 2
      // Predicated region
      $region57: #{resblock3d_forward.2} parent=55 // pred_check
        %p2979 = pneg %p174
      $region58: #{resblock3d_forward.2} parent=55 // pred_check_branch
        %2981 = sbr.rel (%p2979) target = $region60
      $region59: #{resblock3d_forward.2} parent=55 // pred_region
        %p2982 = scmp.lt.s32.totalorder %s20, 1
        %s2983 = scalar_select %p2982, %s20, 1
        %s2984 = smul.addr %s2983, 4
        %s2985 = smul.addr %s2984, 4
        %s2986 = scalar_lea.vmem %s6, %s2985
      $region60: #{resblock3d_forward.2} parent=55 // pred_fallthru
        _
      // Predicated region
      $region61: #{resblock3d_forward.2} parent=55 // pred_check
        %p2987 = pneg %p200
      $region62: #{resblock3d_forward.2} parent=55 // pred_check_branch
        %2989 = sbr.rel (%p2987) target = $region64
      $region63: #{resblock3d_forward.2} parent=55 // pred_region
        %p2990 = scmp.lt.s32.totalorder %s20, 1
        %s2991 = scalar_select %p2990, %s20, 1
        %s2992 = smul.addr %s2991, 8
        %s2993 = scalar_lea.vmem %s7, %s2992
      $region64: #{resblock3d_forward.2} parent=55 // pred_fallthru
        _
    $region56: #{resblock3d_forward.2} parent=5 // pred_fallthru
      _
  $region6: #{resblock3d_forward.2} parent=0 // loop_footer
    %s18 = sadd.s32 1, %s14
  $region7: #{resblock3d_forward.2} parent=0 // loop_footer_branch
    %13 = sbr.rel target = $region3
  $region8: #{resblock3d_forward.2} parent=0 // loop_exit
    _

// kernel: resblock3d_forward.3
$region0: #{resblock3d_forward.3}
  #allocation0 [shape = 'u32[]', space=smem, size = 0x4, offset = 0x4, fixed_abs, tag = 'smem constant byte address 0x4 - core index']
  #allocation1 [shape = 'u32[144,128]{1,0:T(1,128)}', space=vmem, size = 0x12000, scoped, tag = 'internal scratch']
  #allocation2 [shape = 'f32[8,768]{1,0:T(8,128)}', space=vmem, size = 0x6000, scoped, tag = 'scratch operand']
  #allocation3 [shape = 'bf16[224,512]{1,0:T(16,128)(2,1)}', space=vmem, size = 0x38000, scoped, tag = 'scratch operand']
  %s0 = inlined_call_operand.vmem [shape: bf16[2,8,512], index: 0, kind: input, shape index: {}]
  %s1 = inlined_call_operand.vmem [shape: f32[8,1], index: 1, kind: input, shape index: {}]
  %s2 = inlined_call_operand.vmem [shape: f32[8,1], index: 2, kind: input, shape index: {}]
  %s3 = inlined_call_operand.vmem [shape: bf16[8,224], index: 3, kind: input, shape index: {}]
  %s4 = inlined_call_operand.vmem [shape: f32[8,1], index: 4, kind: input, shape index: {}]
  %s5 = inlined_call_operand.vmem [shape: f32[27,512], index: 5, kind: input, shape index: {}]
  %s6 = inlined_call_operand.vmem [shape: f32[2,8,512], index: 6, kind: input, shape index: {}]
  %s7 = inlined_call_operand.vmem [shape: f32[2,8,512], index: 7, kind: output, shape index: {}]
  %s8 = sld [smem:[#allocation0]]
  $region61: #{resblock3d_forward.3} parent=0
    _
  %s10 = ssub.s32 1, %s8
  %s11 = scalar_select 0, %s10, %s8
  loop: start=0, step=1, limit=4
  $region2: #{resblock3d_forward.3} parent=0 // loop_pre_header
    _
  $region3: #{resblock3d_forward.3} parent=0 // loop_header
    %s13 = sphi 0, %s17
    %p14 = scmp.ge.s32.totalorder %s13, 4
    %s23 = sphi 0, %s25
    %s26 = sphi 0, %s23
    %s27 = sphi 0, %s26
    %s43 = sphi 0, %s27
    %s47 = sphi 0, %s47
    %s49 = sphi 0, %s47
    %s50 = sphi 0, %s49
    %s64 = sphi 0, %s50
    %s68 = sphi 0, %s68
    %s70 = sphi 0, %s68
    %s71 = sphi 0, %s70
    %s85 = sphi 0, %s71
    %s89 = sphi 0, %s89
    %s91 = sphi 0, %s89
    %s92 = sphi 0, %s91
    %s106 = sphi 0, %s92
    %s110 = sphi 0, %s110
    %s112 = sphi 0, %s110
    %s113 = sphi 0, %s112
    %s127 = sphi 0, %s113
    %s131 = sphi 0, %s131
    %s133 = sphi 0, %s131
    %s134 = sphi 0, %s133
    %s148 = sphi 0, %s134
    %s154 = sphi 0, %s156
    %s157 = sphi 0, %s154
    %s158 = sphi 0, %s157
    %s174 = sphi 0, %s158
    %s180 = sphi 0, %s182
    %s183 = sphi 0, %s180
    %s184 = sphi 0, %s183
    %s200 = sphi 0, %s184
  $region4: #{resblock3d_forward.3} parent=0 // loop_header_branch
    %16 = sbr.rel (%p14) target = $region8
  $region5: #{resblock3d_forward.3} parent=0 // loop_body
    %s18 = ssub.s32 %s13, 1
    %s19 = ssub.s32 %s13, 2
    %s20 = sadd.s32 %s13, 1
    %s21 = ssub.s32 %s13, %s20
    %p22 = scmp.eq.s32.totalorder %s21, 0
    %s24 = sadd.s32 %s23, 1
    %s25 = scalar_select %p22, %s23, %s24
    %p28 = pneg %p22
    %p29 = scmp.eq.s32.totalorder %s13, 1
    %p30 = por %p28, %p29
    %p31 = scmp.ne.s32.totalorder %s23, %s26
    %p32 = scmp.eq.s32.totalorder %s13, 0
    %p33 = por %p31, %p32
    %p34 = scmp.ne.s32.totalorder %s23, %s26
    %p35 = scmp.eq.s32.totalorder %s18, 1
    %p36 = por %p34, %p35
    %p37 = scmp.ne.s32.totalorder %s26, %s27
    %p38 = scmp.eq.s32.totalorder %s18, 0
    %p39 = por %p37, %p38
    %p40 = scmp.ne.s32.totalorder %s26, %s27
    %p41 = scmp.eq.s32.totalorder %s19, 1
    %p42 = por %p40, %p41
    %p44 = scmp.ne.s32.totalorder %s27, %s43
    %p45 = scmp.eq.s32.totalorder %s19, 0
    %p46 = por %p44, %p45
    %s48 = sadd.s32 %s47, 1
    %p51 = scmp.eq.s32.totalorder %s13, 1
    %p52 = scmp.ne.s32.totalorder %s47, %s49
    %p53 = scmp.eq.s32.totalorder %s13, 0
    %p54 = por %p52, %p53
    %p55 = scmp.ne.s32.totalorder %s47, %s49
    %p56 = scmp.eq.s32.totalorder %s18, 1
    %p57 = por %p55, %p56
    %p58 = scmp.ne.s32.totalorder %s49, %s50
    %p59 = scmp.eq.s32.totalorder %s18, 0
    %p60 = por %p58, %p59
    %p61 = scmp.ne.s32.totalorder %s49, %s50
    %p62 = scmp.eq.s32.totalorder %s19, 1
    %p63 = por %p61, %p62
    %p65 = scmp.ne.s32.totalorder %s50, %s64
    %p66 = scmp.eq.s32.totalorder %s19, 0
    %p67 = por %p65, %p66
    %s69 = sadd.s32 %s68, 1
    %p72 = scmp.eq.s32.totalorder %s13, 1
    %p73 = scmp.ne.s32.totalorder %s68, %s70
    %p74 = scmp.eq.s32.totalorder %s13, 0
    %p75 = por %p73, %p74
    %p76 = scmp.ne.s32.totalorder %s68, %s70
    %p77 = scmp.eq.s32.totalorder %s18, 1
    %p78 = por %p76, %p77
    %p79 = scmp.ne.s32.totalorder %s70, %s71
    %p80 = scmp.eq.s32.totalorder %s18, 0
    %p81 = por %p79, %p80
    %p82 = scmp.ne.s32.totalorder %s70, %s71
    %p83 = scmp.eq.s32.totalorder %s19, 1
    %p84 = por %p82, %p83
    %p86 = scmp.ne.s32.totalorder %s71, %s85
    %p87 = scmp.eq.s32.totalorder %s19, 0
    %p88 = por %p86, %p87
    %s90 = sadd.s32 %s89, 1
    %p93 = scmp.eq.s32.totalorder %s13, 1
    %p94 = scmp.ne.s32.totalorder %s89, %s91
    %p95 = scmp.eq.s32.totalorder %s13, 0
    %p96 = por %p94, %p95
    %p97 = scmp.ne.s32.totalorder %s89, %s91
    %p98 = scmp.eq.s32.totalorder %s18, 1
    %p99 = por %p97, %p98
    %p100 = scmp.ne.s32.totalorder %s91, %s92
    %p101 = scmp.eq.s32.totalorder %s18, 0
    %p102 = por %p100, %p101
    %p103 = scmp.ne.s32.totalorder %s91, %s92
    %p104 = scmp.eq.s32.totalorder %s19, 1
    %p105 = por %p103, %p104
    %p107 = scmp.ne.s32.totalorder %s92, %s106
    %p108 = scmp.eq.s32.totalorder %s19, 0
    %p109 = por %p107, %p108
    %s111 = sadd.s32 %s110, 1
    %p114 = scmp.eq.s32.totalorder %s13, 1
    %p115 = scmp.ne.s32.totalorder %s110, %s112
    %p116 = scmp.eq.s32.totalorder %s13, 0
    %p117 = por %p115, %p116
    %p118 = scmp.ne.s32.totalorder %s110, %s112
    %p119 = scmp.eq.s32.totalorder %s18, 1
    %p120 = por %p118, %p119
    %p121 = scmp.ne.s32.totalorder %s112, %s113
    %p122 = scmp.eq.s32.totalorder %s18, 0
    %p123 = por %p121, %p122
    %p124 = scmp.ne.s32.totalorder %s112, %s113
    %p125 = scmp.eq.s32.totalorder %s19, 1
    %p126 = por %p124, %p125
    %p128 = scmp.ne.s32.totalorder %s113, %s127
    %p129 = scmp.eq.s32.totalorder %s19, 0
    %p130 = por %p128, %p129
    %s132 = sadd.s32 %s131, 1
    %p135 = scmp.eq.s32.totalorder %s13, 1
    %p136 = scmp.ne.s32.totalorder %s131, %s133
    %p137 = scmp.eq.s32.totalorder %s13, 0
    %p138 = por %p136, %p137
    %p139 = scmp.ne.s32.totalorder %s131, %s133
    %p140 = scmp.eq.s32.totalorder %s18, 1
    %p141 = por %p139, %p140
    %p142 = scmp.ne.s32.totalorder %s133, %s134
    %p143 = scmp.eq.s32.totalorder %s18, 0
    %p144 = por %p142, %p143
    %p145 = scmp.ne.s32.totalorder %s133, %s134
    %p146 = scmp.eq.s32.totalorder %s19, 1
    %p147 = por %p145, %p146
    %p149 = scmp.ne.s32.totalorder %s134, %s148
    %p150 = scmp.eq.s32.totalorder %s19, 0
    %p151 = por %p149, %p150
    %s152 = ssub.s32 %s13, %s20
    %p153 = scmp.eq.s32.totalorder %s152, 0
    %s155 = sadd.s32 %s154, 1
    %s156 = scalar_select %p153, %s154, %s155
    %p159 = pneg %p153
    %p160 = scmp.eq.s32.totalorder %s13, 1
    %p161 = por %p159, %p160
    %p162 = scmp.ne.s32.totalorder %s154, %s157
    %p163 = scmp.eq.s32.totalorder %s13, 0
    %p164 = por %p162, %p163
    %p165 = scmp.ne.s32.totalorder %s154, %s157
    %p166 = scmp.eq.s32.totalorder %s18, 1
    %p167 = por %p165, %p166
    %p168 = scmp.ne.s32.totalorder %s157, %s158
    %p169 = scmp.eq.s32.totalorder %s18, 0
    %p170 = por %p168, %p169
    %p171 = scmp.ne.s32.totalorder %s157, %s158
    %p172 = scmp.eq.s32.totalorder %s19, 1
    %p173 = por %p171, %p172
    %p175 = scmp.ne.s32.totalorder %s158, %s174
    %p176 = scmp.eq.s32.totalorder %s19, 0
    %p177 = por %p175, %p176
    %s178 = ssub.s32 %s13, %s20
    %p179 = scmp.eq.s32.totalorder %s178, 0
    %s181 = sadd.s32 %s180, 1
    %s182 = scalar_select %p179, %s180, %s181
    %p185 = pneg %p179
    %p186 = scmp.eq.s32.totalorder %s13, 1
    %p187 = por %p185, %p186
    %p188 = scmp.ne.s32.totalorder %s180, %s183
    %p189 = scmp.eq.s32.totalorder %s13, 0
    %p190 = por %p188, %p189
    %p191 = scmp.ne.s32.totalorder %s180, %s183
    %p192 = scmp.eq.s32.totalorder %s18, 1
    %p193 = por %p191, %p192
    %p194 = scmp.ne.s32.totalorder %s183, %s184
    %p195 = scmp.eq.s32.totalorder %s18, 0
    %p196 = por %p194, %p195
    %p197 = scmp.ne.s32.totalorder %s183, %s184
    %p198 = scmp.eq.s32.totalorder %s19, 1
    %p199 = por %p197, %p198
    %p201 = scmp.ne.s32.totalorder %s184, %s200
    %p202 = scmp.eq.s32.totalorder %s19, 0
    %p203 = por %p201, %p202
    %p204 = scmp.le.s32.totalorder 1, %s13
    %p205 = scmp.lt.s32.totalorder %s13, 3
    %p206 = pnand %p204, %p205
    %p207 = pneg %p206
    // Predicated region
    $region9: #{resblock3d_forward.3} parent=5 // pred_check
      _
    $region10: #{resblock3d_forward.3} parent=5 // pred_check_branch
      %209 = sbr.rel (%p206) target = $region12
    $region11: #{resblock3d_forward.3} parent=5 // pred_region
      %s210 = ssub.s32 %s13, 1
      // Predicated region
      $region13: #{resblock3d_forward.3} parent=11 // pred_check
        %p211 = pneg %p60
      $region14: #{resblock3d_forward.3} parent=11 // pred_check_branch
        %213 = sbr.rel (%p211) target = $region16
      $region15: #{resblock3d_forward.3} parent=11 // pred_region
        _
      $region16: #{resblock3d_forward.3} parent=11 // pred_fallthru
        _
      // Predicated region
      $region17: #{resblock3d_forward.3} parent=11 // pred_check
        %p214 = pneg %p81
      $region18: #{resblock3d_forward.3} parent=11 // pred_check_branch
        %216 = sbr.rel (%p214) target = $region20
      $region19: #{resblock3d_forward.3} parent=11 // pred_region
        _
      $region20: #{resblock3d_forward.3} parent=11 // pred_fallthru
        _
      // Predicated region
      $region21: #{resblock3d_forward.3} parent=11 // pred_check
        %p217 = pneg %p102
      $region22: #{resblock3d_forward.3} parent=11 // pred_check_branch
        %219 = sbr.rel (%p217) target = $region24
      $region23: #{resblock3d_forward.3} parent=11 // pred_region
        _
      $region24: #{resblock3d_forward.3} parent=11 // pred_fallthru
        _
      // Predicated region
      $region25: #{resblock3d_forward.3} parent=11 // pred_check
        %p220 = pneg %p123
      $region26: #{resblock3d_forward.3} parent=11 // pred_check_branch
        %222 = sbr.rel (%p220) target = $region28
      $region27: #{resblock3d_forward.3} parent=11 // pred_region
        _
      $region28: #{resblock3d_forward.3} parent=11 // pred_fallthru
        _
      // Predicated region
      $region29: #{resblock3d_forward.3} parent=11 // pred_check
        %p223 = pneg %p144
      $region30: #{resblock3d_forward.3} parent=11 // pred_check_branch
        %225 = sbr.rel (%p223) target = $region32
      $region31: #{resblock3d_forward.3} parent=11 // pred_region
        _
      $region32: #{resblock3d_forward.3} parent=11 // pred_fallthru
        _
    $region12: #{resblock3d_forward.3} parent=5 // pred_fallthru
      _
    %p226 = scmp.lt.s32.totalorder %s13, 2
    // Predicated region
    $region33: #{resblock3d_forward.3} parent=5 // pred_check
      %p227 = pneg %p226
    $region34: #{resblock3d_forward.3} parent=5 // pred_check_branch
      %229 = sbr.rel (%p227) target = $region36
    $region35: #{resblock3d_forward.3} parent=5 // pred_region
      // Predicated region
      $region37: #{resblock3d_forward.3} parent=35 // pred_check
        %p230 = pneg %p33
      $region38: #{resblock3d_forward.3} parent=35 // pred_check_branch
        %232 = sbr.rel (%p230) target = $region40
      $region39: #{resblock3d_forward.3} parent=35 // pred_region
        %p233 = scmp.lt.s32.totalorder %s13, 1
        %s234 = scalar_select %p233, %s13, 1
        %s235 = smul.addr %s234, 4
        %s236 = smul.addr %s235, 4
        %s237 = scalar_lea.vmem %s0, %s236
      $region40: #{resblock3d_forward.3} parent=35 // pred_fallthru
        _
      // Predicated region
      $region41: #{resblock3d_forward.3} parent=35 // pred_check
        %p238 = pneg %p164
      $region42: #{resblock3d_forward.3} parent=35 // pred_check_branch
        %240 = sbr.rel (%p238) target = $region44
      $region43: #{resblock3d_forward.3} parent=35 // pred_region
        %p241 = scmp.lt.s32.totalorder %s13, 1
        %s242 = scalar_select %p241, %s13, 1
        %s243 = smul.addr %s242, 4
        %s244 = smul.addr %s243, 8
        %s245 = scalar_lea.vmem %s6, %s244
      $region44: #{resblock3d_forward.3} parent=35 // pred_fallthru
        _
    $region36: #{resblock3d_forward.3} parent=5 // pred_fallthru
      _
    %p246 = scmp.le.s32.totalorder 1, %s13
    %p247 = scmp.lt.s32.totalorder %s13, 3
    %p248 = pnand %p246, %p247
    %p249 = pneg %p248
    // Predicated region
    $region45: #{resblock3d_forward.3} parent=5 // pred_check
      _
    $region46: #{resblock3d_forward.3} parent=5 // pred_check_branch
      %251 = sbr.rel (%p248) target = $region48
    $region47: #{resblock3d_forward.3} parent=5 // pred_region
      %s252 = ssub.s32 %s13, 1
      %p253 = scmp.lt.s32.totalorder %s18, 1
      %s254 = scalar_select %p253, %s18, 1
      %s255 = smul.addr %s254, 4
      %s256 = smul.addr %s255, 4
      %s257 = scalar_lea.vmem %s0, %s256
      %p258 = pneg %p39
      %p259 = pneg %p36
      %p260 = pneg %p60
      %p261 = pneg %p57
      %p262 = pneg %p81
      %p263 = pneg %p78
      %p264 = pneg %p102
      %p265 = pneg %p99
      %p266 = pneg %p123
      %p267 = pneg %p120
      %p268 = pneg %p144
      %p269 = pneg %p141
      %p270 = scmp.lt.s32.totalorder %s18, 1
      %s271 = scalar_select %p270, %s18, 1
      %s272 = smul.addr %s271, 4
      %s273 = smul.addr %s272, 8
      %s274 = scalar_lea.vmem %s6, %s273
      %p275 = pneg %p170
      %p276 = pneg %p167
      %p277 = pneg %p196
      %p278 = pneg %p193
      %p279 = scmp.lt.s32.totalorder %s18, 1
      %s280 = scalar_select %p279, %s18, 1
      %s281 = smul.addr %s280, 4
      %s282 = smul.addr %s281, 8
      %s283 = scalar_lea.vmem %s7, %s282
      %p284 = scmp.lt.s32.totalorder %s18, 1
      %s285 = scalar_select %p284, %s18, 1
      %s286 = smul.addr %s285, 4
      %s287 = smul.addr %s286, 4
      %s288 = scalar_lea.vmem %s0, %s287
      %p289 = scmp.lt.s32.totalorder %s18, 1
      %s290 = scalar_select %p289, %s18, 1
      %s291 = smul.addr %s290, 4
      %s292 = smul.addr %s291, 8
      %s293 = scalar_lea.vmem %s6, %s292
      %p294 = scmp.lt.s32.totalorder %s18, 1
      %s295 = scalar_select %p294, %s18, 1
      %s296 = smul.addr %s295, 4
      %s297 = smul.addr %s296, 8
      %s298 = scalar_lea.vmem %s7, %s297
      %v300 = vld [vmem:[%s288] sm:$0xff]
      %v301 = vld [vmem:[%s288 + $0x8] sm:$0xff]
      %v302 = vunpack.c.l.bf16 %v300
      %v303 = vunpack.c.h.bf16 %v300
      %v304 = vunpack.c.l.bf16 %v301
      %v305 = vunpack.c.h.bf16 %v301
      %v306 = vld [vmem:[%s1] sm:$0xff]
      %308 = vset.pattern.permute.xlu0 0
      %309 = vperm.xlu0 %308, %v306
      %v310 = vpop.permute.xlu0 %309
      %v312 = vmul.f32 %v302, %v310
      %v313 = vmul.f32 %v303, %v310
      %v314 = vmul.f32 %v304, %v310
      %v315 = vmul.f32 %v305, %v310
      %v316 = vld [vmem:[%s2] sm:$0xff]
      %318 = vset.pattern.permute.xlu0 0
      %319 = vperm.xlu0 %318, %v316
      %v320 = vpop.permute.xlu0 %319
      %v322 = vadd.f32 %v312, %v320
      %v323 = vadd.f32 %v313, %v320
      %v324 = vadd.f32 %v314, %v320
      %v325 = vadd.f32 %v315, %v320
      %v326 = vmax.f32 %v322, 0.0
      %v327 = vmax.f32 %v323, 0.0
      %v328 = vmax.f32 %v324, 0.0
      %v329 = vmax.f32 %v325, 0.0
      %330 = vst [vmem:[#allocation2] sm:$0xff] 0.0
      %331 = vst [vmem:[#allocation2 + $0x28] sm:$0xff] 0.0
      %332 = vst [vmem:[#allocation2 + $0x8] sm:$0xff] %v326
      %333 = vst [vmem:[#allocation2 + $0x10] sm:$0xff] %v327
      %334 = vst [vmem:[#allocation2 + $0x18] sm:$0xff] %v328
      %335 = vst [vmem:[#allocation2 + $0x20] sm:$0xff] %v329
      %v336 = vld [vmem:[#allocation2] sm:$0xff]
      %v337 = vld [vmem:[#allocation2 + $0x8] sm:$0xff]
      %v338 = vld [vmem:[#allocation2 + $0x10] sm:$0xff]
      %v339 = vld [vmem:[#allocation2 + $0x18] sm:$0xff]
      %v340 = vld [vmem:[#allocation2 + $0x20] sm:$0xff]
      %v341 = vld [vmem:[%s5] ss:$8 sm:$0xf]
      %v343 = vlaneseq
      %v344 = vshrl.u32 %v343, 7
      %v345 = vsub.s32 0, %v344
      %v346 = vrot.slane %v341, %v345
      %v347 = vlaneseq
      %v348 = vshrl.u32 %v347, 7
      %v349 = vsub.s32 1, %v348
      %v350 = vrot.slane %v341, %v349
      %v351 = vlaneseq
      %v352 = vshrl.u32 %v351, 7
      %v353 = vsub.s32 2, %v352
      %v354 = vrot.slane %v341, %v353
      %v355 = vlaneseq
      %v356 = vshrl.u32 %v355, 7
      %v357 = vsub.s32 3, %v356
      %v358 = vrot.slane %v341, %v357
      %359 = vrot.lane.b32.xlu0 %v346, 55
      %v360 = vpop.permute.xlu0 %359
      %361 = vrot.lane.b32.xlu0 %v350, 55
      %v362 = vpop.permute.xlu0 %361
      %363 = vrot.lane.b32.xlu0 %v354, 55
      %v364 = vpop.permute.xlu0 %363
      %365 = vrot.lane.b32.xlu0 %v358, 55
      %v366 = vpop.permute.xlu0 %365
      %vm367 = vcmask 449536
      %v368 = vsel %vm367, %v360, %v362
      %v369 = vsel %vm367, %v362, %v364
      %v370 = vsel %vm367, %v364, %v366
      %v376 = vmul.f32 %v336, %v360
      %v377 = vmul.f32 %v337, %v368
      %v378 = vmul.f32 %v338, %v369
      %v379 = vmul.f32 %v339, %v370
      %v380 = vmul.f32 %v340, %v366
      %v381 = vpack.c.bf16 %v376, %v376
      %v382 = vpack.c.bf16 %v377, %v377
      %v383 = vpack.c.bf16 %v378, %v378
      %v384 = vpack.c.bf16 %v379, %v379
      %v385 = vpack.c.bf16 %v380, %v380
      %391 = vrot.lane.b32.xlu0 %v381, 73
      %v392 = vpop.permute.xlu0 %391
      %393 = vrot.lane.b32.xlu0 %v382, 73
      %v394 = vpop.permute.xlu0 %393
      %395 = vrot.lane.b32.xlu0 %v383, 73
      %v396 = vpop.permute.xlu0 %395
      %397 = vrot.lane.b32.xlu0 %v384, 73
      %v398 = vpop.permute.xlu0 %397
      %399 = vrot.lane.b32.xlu0 %v385, 73
      %v400 = vpop.permute.xlu0 %399
      %vm401 = vcmask 596992
      %v402 = vsel %vm401, %v392, %v394
      %v403 = vsel %vm401, %v394, %v396
      %v404 = vsel %vm401, %v396, %v398
      %v405 = vsel %vm401, %v398, %v400
      %410 = vst [vmem:[#allocation3] sm:$0xf] %v402
      %411 = vst [vmem:[#allocation3 + $0x8] sm:$0xf] %v403
      %412 = vst [vmem:[#allocation3 + $0x10] sm:$0xf] %v404
      %413 = vst [vmem:[#allocation3 + $0x18] sm:$0xf] %v405
      %v414 = vld [vmem:[#allocation2] sm:$0xff]
      %v415 = vld [vmem:[#allocation2 + $0x8] sm:$0xff]
      %v416 = vld [vmem:[#allocation2 + $0x10] sm:$0xff]
      %v417 = vld [vmem:[#allocation2 + $0x18] sm:$0xff]
      %v418 = vld [vmem:[#allocation2 + $0x20] sm:$0xff]
      %s419 = scalar_lea.vmem %s5, 1
      %v420 = vld [vmem:[%s419] ss:$8 sm:$0xf]
      %v422 = vlaneseq
      %v423 = vshrl.u32 %v422, 7
      %v424 = vsub.s32 0, %v423
      %v425 = vrot.slane %v420, %v424
      %v426 = vlaneseq
      %v427 = vshrl.u32 %v426, 7
      %v428 = vsub.s32 1, %v427
      %v429 = vrot.slane %v420, %v428
      %v430 = vlaneseq
      %v431 = vshrl.u32 %v430, 7
      %v432 = vsub.s32 2, %v431
      %v433 = vrot.slane %v420, %v432
      %v434 = vlaneseq
      %v435 = vshrl.u32 %v434, 7
      %v436 = vsub.s32 3, %v435
      %v437 = vrot.slane %v420, %v436
      %438 = vrot.lane.b32.xlu0 %v425, 56
      %v439 = vpop.permute.xlu0 %438
      %440 = vrot.lane.b32.xlu0 %v429, 56
      %v441 = vpop.permute.xlu0 %440
      %442 = vrot.lane.b32.xlu0 %v433, 56
      %v443 = vpop.permute.xlu0 %442
      %444 = vrot.lane.b32.xlu0 %v437, 56
      %v445 = vpop.permute.xlu0 %444
      %vm446 = vcmask 457728
      %v447 = vsel %vm446, %v439, %v441
      %v448 = vsel %vm446, %v441, %v443
      %v449 = vsel %vm446, %v443, %v445
      %v455 = vmul.f32 %v414, %v439
      %v456 = vmul.f32 %v415, %v447
      %v457 = vmul.f32 %v416, %v448
      %v458 = vmul.f32 %v417, %v449
      %v459 = vmul.f32 %v418, %v445
      %v460 = vpack.c.bf16 %v455, %v455
      %v461 = vpack.c.bf16 %v456, %v456
      %v462 = vpack.c.bf16 %v457, %v457
      %v463 = vpack.c.bf16 %v458, %v458
      %v464 = vpack.c.bf16 %v459, %v459
      %v470 = vrot.slane %v460, 4
      %v471 = vrot.slane %v461, 4
      %v472 = vrot.slane %v462, 4
      %v473 = vrot.slane %v463, 4
      %v474 = vrot.slane %v464, 4
      %475 = vrot.lane.b32.xlu0 %v470, 72
      %v476 = vpop.permute.xlu0 %475
      %477 = vrot.lane.b32.xlu0 %v471, 72
      %v478 = vpop.permute.xlu0 %477
      %479 = vrot.lane.b32.xlu0 %v472, 72
      %v480 = vpop.permute.xlu0 %479
      %481 = vrot.lane.b32.xlu0 %v473, 72
      %v482 = vpop.permute.xlu0 %481
      %483 = vrot.lane.b32.xlu0 %v474, 72
      %v484 = vpop.permute.xlu0 %483
      %vm485 = vcmask 588800
      %v486 = vsel %vm485, %v476, %v478
      %v487 = vsel %vm485, %v478, %v480
      %v488 = vsel %vm485, %v480, %v482
      %v489 = vsel %vm485, %v482, %v484
      %494 = vst [vmem:[#allocation3] sm:$0xf0] %v486
      %495 = vst [vmem:[#allocation3 + $0x8] sm:$0xf0] %v487
      %496 = vst [vmem:[#allocation3 + $0x10] sm:$0xf0] %v488
      %497 = vst [vmem:[#allocation3 + $0x18] sm:$0xf0] %v489
      %v498 = vld [vmem:[#allocation2] sm:$0xff]
      %v499 = vld [vmem:[#allocation2 + $0x8] sm:$0xff]
      %v500 = vld [vmem:[#allocation2 + $0x10] sm:$0xff]
      %v501 = vld [vmem:[#allocation2 + $0x18] sm:$0xff]
      %v502 = vld [vmem:[#allocation2 + $0x20] sm:$0xff]
      %s503 = scalar_lea.vmem %s5, 2
      %v504 = vld [vmem:[%s503] ss:$8 sm:$0xf]
      %v506 = vlaneseq
      %v507 = vshrl.u32 %v506, 7
      %v508 = vsub.s32 0, %v507
      %v509 = vrot.slane %v504, %v508
      %v510 = vlaneseq
      %v511 = vshrl.u32 %v510, 7
      %v512 = vsub.s32 1, %v511
      %v513 = vrot.slane %v504, %v512
      %v514 = vlaneseq
      %v515 = vshrl.u32 %v514, 7
      %v516 = vsub.s32 2, %v515
      %v517 = vrot.slane %v504, %v516
      %v518 = vlaneseq
      %v519 = vshrl.u32 %v518, 7
      %v520 = vsub.s32 3, %v519
      %v521 = vrot.slane %v504, %v520
      %522 = vrot.lane.b32.xlu0 %v509, 57
      %v523 = vpop.permute.xlu0 %522
      %524 = vrot.lane.b32.xlu0 %v513, 57
      %v525 = vpop.permute.xlu0 %524
      %526 = vrot.lane.b32.xlu0 %v517, 57
      %v527 = vpop.permute.xlu0 %526
      %528 = vrot.lane.b32.xlu0 %v521, 57
      %v529 = vpop.permute.xlu0 %528
      %vm530 = vcmask 465920
      %v531 = vsel %vm530, %v523, %v525
      %v532 = vsel %vm530, %v525, %v527
      %v533 = vsel %vm530, %v527, %v529
      %v539 = vmul.f32 %v498, %v523
      %v540 = vmul.f32 %v499, %v531
      %v541 = vmul.f32 %v500, %v532
      %v542 = vmul.f32 %v501, %v533
      %v543 = vmul.f32 %v502, %v529
      %v544 = vpack.c.bf16 %v539, %v539
      %v545 = vpack.c.bf16 %v540, %v540
      %v546 = vpack.c.bf16 %v541, %v541
      %v547 = vpack.c.bf16 %v542, %v542
      %v548 = vpack.c.bf16 %v543, %v543
      %554 = vrot.lane.b32.xlu0 %v544, 71
      %v555 = vpop.permute.xlu0 %554
      %556 = vrot.lane.b32.xlu0 %v545, 71
      %v557 = vpop.permute.xlu0 %556
      %558 = vrot.lane.b32.xlu0 %v546, 71
      %v559 = vpop.permute.xlu0 %558
      %560 = vrot.lane.b32.xlu0 %v547, 71
      %v561 = vpop.permute.xlu0 %560
      %562 = vrot.lane.b32.xlu0 %v548, 71
      %v563 = vpop.permute.xlu0 %562
      %vm564 = vcmask 580608
      %v565 = vsel %vm564, %v555, %v557
      %v566 = vsel %vm564, %v557, %v559
      %v567 = vsel %vm564, %v559, %v561
      %v568 = vsel %vm564, %v561, %v563
      %573 = vst [vmem:[#allocation3 + $0x20] sm:$0xf] %v565
      %574 = vst [vmem:[#allocation3 + $0x28] sm:$0xf] %v566
      %575 = vst [vmem:[#allocation3 + $0x30] sm:$0xf] %v567
      %576 = vst [vmem:[#allocation3 + $0x38] sm:$0xf] %v568
      %v577 = vld [vmem:[#allocation2] sm:$0xff]
      %v578 = vld [vmem:[#allocation2 + $0x8] sm:$0xff]
      %v579 = vld [vmem:[#allocation2 + $0x10] sm:$0xff]
      %v580 = vld [vmem:[#allocation2 + $0x18] sm:$0xff]
      %v581 = vld [vmem:[#allocation2 + $0x20] sm:$0xff]
      %s582 = scalar_lea.vmem %s5, 3
      %v583 = vld [vmem:[%s582] ss:$8 sm:$0xf]
      %v585 = vlaneseq
      %v586 = vshrl.u32 %v585, 7
      %v587 = vsub.s32 0, %v586
      %v588 = vrot.slane %v583, %v587
      %v589 = vlaneseq
      %v590 = vshrl.u32 %v589, 7
      %v591 = vsub.s32 1, %v590
      %v592 = vrot.slane %v583, %v591
      %v593 = vlaneseq
      %v594 = vshrl.u32 %v593, 7
      %v595 = vsub.s32 2, %v594
      %v596 = vrot.slane %v583, %v595
      %v597 = vlaneseq
      %v598 = vshrl.u32 %v597, 7
      %v599 = vsub.s32 3, %v598
      %v600 = vrot.slane %v583, %v599
      %601 = vrot.lane.b32.xlu0 %v588, 63
      %v602 = vpop.permute.xlu0 %601
      %603 = vrot.lane.b32.xlu0 %v592, 63
      %v604 = vpop.permute.xlu0 %603
      %605 = vrot.lane.b32.xlu0 %v596, 63
      %v606 = vpop.permute.xlu0 %605
      %607 = vrot.lane.b32.xlu0 %v600, 63
      %v608 = vpop.permute.xlu0 %607
      %vm609 = vcmask 515072
      %v610 = vsel %vm609, %v602, %v604
      %v611 = vsel %vm609, %v604, %v606
      %v612 = vsel %vm609, %v606, %v608
      %v618 = vmul.f32 %v577, %v602
      %v619 = vmul.f32 %v578, %v610
      %v620 = vmul.f32 %v579, %v611
      %v621 = vmul.f32 %v580, %v612
      %v622 = vmul.f32 %v581, %v608
      %v623 = vpack.c.bf16 %v618, %v618
      %v624 = vpack.c.bf16 %v619, %v619
      %v625 = vpack.c.bf16 %v620, %v620
      %v626 = vpack.c.bf16 %v621, %v621
      %v627 = vpack.c.bf16 %v622, %v622
      %v633 = vrot.slane %v623, 4
      %v634 = vrot.slane %v624, 4
      %v635 = vrot.slane %v625, 4
      %v636 = vrot.slane %v626, 4
      %v637 = vrot.slane %v627, 4
      %638 = vrot.lane.b32.xlu0 %v633, 65
      %v639 = vpop.permute.xlu0 %638
      %640 = vrot.lane.b32.xlu0 %v634, 65
      %v641 = vpop.permute.xlu0 %640
      %642 = vrot.lane.b32.xlu0 %v635, 65
      %v643 = vpop.permute.xlu0 %642
      %644 = vrot.lane.b32.xlu0 %v636, 65
      %v645 = vpop.permute.xlu0 %644
      %646 = vrot.lane.b32.xlu0 %v637, 65
      %v647 = vpop.permute.xlu0 %646
      %vm648 = vcmask 531456
      %v649 = vsel %vm648, %v639, %v641
      %v650 = vsel %vm648, %v641, %v643
      %v651 = vsel %vm648, %v643, %v645
      %v652 = vsel %vm648, %v645, %v647
      %657 = vst [vmem:[#allocation3 + $0x20] sm:$0xf0] %v649
      %658 = vst [vmem:[#allocation3 + $0x28] sm:$0xf0] %v650
      %659 = vst [vmem:[#allocation3 + $0x30] sm:$0xf0] %v651
      %660 = vst [vmem:[#allocation3 + $0x38] sm:$0xf0] %v652
      %v661 = vld [vmem:[#allocation2] sm:$0xff]
      %v662 = vld [vmem:[#allocation2 + $0x8] sm:$0xff]
      %v663 = vld [vmem:[#allocation2 + $0x10] sm:$0xff]
      %v664 = vld [vmem:[#allocation2 + $0x18] sm:$0xff]
      %v665 = vld [vmem:[#allocation2 + $0x20] sm:$0xff]
      %s666 = scalar_lea.vmem %s5, 4
      %v667 = vld [vmem:[%s666] ss:$8 sm:$0xf]
      %v669 = vlaneseq
      %v670 = vshrl.u32 %v669, 7
      %v671 = vsub.s32 0, %v670
      %v672 = vrot.slane %v667, %v671
      %v673 = vlaneseq
      %v674 = vshrl.u32 %v673, 7
      %v675 = vsub.s32 1, %v674
      %v676 = vrot.slane %v667, %v675
      %v677 = vlaneseq
      %v678 = vshrl.u32 %v677, 7
      %v679 = vsub.s32 2, %v678
      %v680 = vrot.slane %v667, %v679
      %v681 = vlaneseq
      %v682 = vshrl.u32 %v681, 7
      %v683 = vsub.s32 3, %v682
      %v684 = vrot.slane %v667, %v683
      %685 = vrot.lane.b32.xlu0 %v672, 64
      %v686 = vpop.permute.xlu0 %685
      %687 = vrot.lane.b32.xlu0 %v676, 64
      %v688 = vpop.permute.xlu0 %687
      %689 = vrot.lane.b32.xlu0 %v680, 64
      %v690 = vpop.permute.xlu0 %689
      %691 = vrot.lane.b32.xlu0 %v684, 64
      %v692 = vpop.permute.xlu0 %691
      %vm693 = vcmask 523264
      %v694 = vsel %vm693, %v686, %v688
      %v695 = vsel %vm693, %v688, %v690
      %v696 = vsel %vm693, %v690, %v692
      %v702 = vmul.f32 %v661, %v686
      %v703 = vmul.f32 %v662, %v694
      %v704 = vmul.f32 %v663, %v695
      %v705 = vmul.f32 %v664, %v696
      %v706 = vmul.f32 %v665, %v692
      %v707 = vpack.c.bf16 %v702, %v702
      %v708 = vpack.c.bf16 %v703, %v703
      %v709 = vpack.c.bf16 %v704, %v704
      %v710 = vpack.c.bf16 %v705, %v705
      %v711 = vpack.c.bf16 %v706, %v706
      %717 = vrot.lane.b32.xlu0 %v707, 64
      %v718 = vpop.permute.xlu0 %717
      %719 = vrot.lane.b32.xlu0 %v708, 64
      %v720 = vpop.permute.xlu0 %719
      %721 = vrot.lane.b32.xlu0 %v709, 64
      %v722 = vpop.permute.xlu0 %721
      %723 = vrot.lane.b32.xlu0 %v710, 64
      %v724 = vpop.permute.xlu0 %723
      %725 = vrot.lane.b32.xlu0 %v711, 64
      %v726 = vpop.permute.xlu0 %725
      %vm727 = vcmask 523264
      %v728 = vsel %vm727, %v718, %v720
      %v729 = vsel %vm727, %v720, %v722
      %v730 = vsel %vm727, %v722, %v724
      %v731 = vsel %vm727, %v724, %v726
      %736 = vst [vmem:[#allocation3 + $0x40] sm:$0xf] %v728
      %737 = vst [vmem:[#allocation3 + $0x48] sm:$0xf] %v729
      %738 = vst [vmem:[#allocation3 + $0x50] sm:$0xf] %v730
      %739 = vst [vmem:[#allocation3 + $0x58] sm:$0xf] %v731
      %v740 = vld [vmem:[#allocation2] sm:$0xff]
      %v741 = vld [vmem:[#allocation2 + $0x8] sm:$0xff]
      %v742 = vld [vmem:[#allocation2 + $0x10] sm:$0xff]
      %v743 = vld [vmem:[#allocation2 + $0x18] sm:$0xff]
      %v744 = vld [vmem:[#allocation2 + $0x20] sm:$0xff]
      %s745 = scalar_lea.vmem %s5, 5
      %v746 = vld [vmem:[%s745] ss:$8 sm:$0xf]
      %v748 = vlaneseq
      %v749 = vshrl.u32 %v748, 7
      %v750 = vsub.s32 0, %v749
      %v751 = vrot.slane %v746, %v750
      %v752 = vlaneseq
      %v753 = vshrl.u32 %v752, 7
      %v754 = vsub.s32 1, %v753
      %v755 = vrot.slane %v746, %v754
      %v756 = vlaneseq
      %v757 = vshrl.u32 %v756, 7
      %v758 = vsub.s32 2, %v757
      %v759 = vrot.slane %v746, %v758
      %v760 = vlaneseq
      %v761 = vshrl.u32 %v760, 7
      %v762 = vsub.s32 3, %v761
      %v763 = vrot.slane %v746, %v762
      %764 = vrot.lane.b32.xlu0 %v751, 65
      %v765 = vpop.permute.xlu0 %764
      %766 = vrot.lane.b32.xlu0 %v755, 65
      %v767 = vpop.permute.xlu0 %766
      %768 = vrot.lane.b32.xlu0 %v759, 65
      %v769 = vpop.permute.xlu0 %768
      %770 = vrot.lane.b32.xlu0 %v763, 65
      %v771 = vpop.permute.xlu0 %770
      %vm772 = vcmask 531456
      %v773 = vsel %vm772, %v765, %v767
      %v774 = vsel %vm772, %v767, %v769
      %v775 = vsel %vm772, %v769, %v771
      %v781 = vmul.f32 %v740, %v765
      %v782 = vmul.f32 %v741, %v773
      %v783 = vmul.f32 %v742, %v774
      %v784 = vmul.f32 %v743, %v775
      %v785 = vmul.f32 %v744, %v771
      %v786 = vpack.c.bf16 %v781, %v781
      %v787 = vpack.c.bf16 %v782, %v782
      %v788 = vpack.c.bf16 %v783, %v783
      %v789 = vpack.c.bf16 %v784, %v784
      %v790 = vpack.c.bf16 %v785, %v785
      %v796 = vrot.slane %v786, 4
      %v797 = vrot.slane %v787, 4
      %v798 = vrot.slane %v788, 4
      %v799 = vrot.slane %v789, 4
      %v800 = vrot.slane %v790, 4
      %801 = vrot.lane.b32.xlu0 %v796, 63
      %v802 = vpop.permute.xlu0 %801
      %803 = vrot.lane.b32.xlu0 %v797, 63
      %v804 = vpop.permute.xlu0 %803
      %805 = vrot.lane.b32.xlu0 %v798, 63
      %v806 = vpop.permute.xlu0 %805
      %807 = vrot.lane.b32.xlu0 %v799, 63
      %v808 = vpop.permute.xlu0 %807
      %809 = vrot.lane.b32.xlu0 %v800, 63
      %v810 = vpop.permute.xlu0 %809
      %vm811 = vcmask 515072
      %v812 = vsel %vm811, %v802, %v804
      %v813 = vsel %vm811, %v804, %v806
      %v814 = vsel %vm811, %v806, %v808
      %v815 = vsel %vm811, %v808, %v810
      %820 = vst [vmem:[#allocation3 + $0x40] sm:$0xf0] %v812
      %821 = vst [vmem:[#allocation3 + $0x48] sm:$0xf0] %v813
      %822 = vst [vmem:[#allocation3 + $0x50] sm:$0xf0] %v814
      %823 = vst [vmem:[#allocation3 + $0x58] sm:$0xf0] %v815
      %v824 = vld [vmem:[#allocation2] sm:$0xff]
      %v825 = vld [vmem:[#allocation2 + $0x8] sm:$0xff]
      %v826 = vld [vmem:[#allocation2 + $0x10] sm:$0xff]
      %v827 = vld [vmem:[#allocation2 + $0x18] sm:$0xff]
      %v828 = vld [vmem:[#allocation2 + $0x20] sm:$0xff]
      %s829 = scalar_lea.vmem %s5, 6
      %v830 = vld [vmem:[%s829] ss:$8 sm:$0xf]
      %v832 = vlaneseq
      %v833 = vshrl.u32 %v832, 7
      %v834 = vsub.s32 0, %v833
      %v835 = vrot.slane %v830, %v834
      %v836 = vlaneseq
      %v837 = vshrl.u32 %v836, 7
      %v838 = vsub.s32 1, %v837
      %v839 = vrot.slane %v830, %v838
      %v840 = vlaneseq
      %v841 = vshrl.u32 %v840, 7
      %v842 = vsub.s32 2, %v841
      %v843 = vrot.slane %v830, %v842
      %v844 = vlaneseq
      %v845 = vshrl.u32 %v844, 7
      %v846 = vsub.s32 3, %v845
      %v847 = vrot.slane %v830, %v846
      %848 = vrot.lane.b32.xlu0 %v835, 71
      %v849 = vpop.permute.xlu0 %848
      %850 = vrot.lane.b32.xlu0 %v839, 71
      %v851 = vpop.permute.xlu0 %850
      %852 = vrot.lane.b32.xlu0 %v843, 71
      %v853 = vpop.permute.xlu0 %852
      %854 = vrot.lane.b32.xlu0 %v847, 71
      %v855 = vpop.permute.xlu0 %854
      %vm856 = vcmask 580608
      %v857 = vsel %vm856, %v849, %v851
      %v858 = vsel %vm856, %v851, %v853
      %v859 = vsel %vm856, %v853, %v855
      %v865 = vmul.f32 %v824, %v849
      %v866 = vmul.f32 %v825, %v857
      %v867 = vmul.f32 %v826, %v858
      %v868 = vmul.f32 %v827, %v859
      %v869 = vmul.f32 %v828, %v855
      %v870 = vpack.c.bf16 %v865, %v865
      %v871 = vpack.c.bf16 %v866, %v866
      %v872 = vpack.c.bf16 %v867, %v867
      %v873 = vpack.c.bf16 %v868, %v868
      %v874 = vpack.c.bf16 %v869, %v869
      %880 = vrot.lane.b32.xlu0 %v870, 57
      %v881 = vpop.permute.xlu0 %880
      %882 = vrot.lane.b32.xlu0 %v871, 57
      %v883 = vpop.permute.xlu0 %882
      %884 = vrot.lane.b32.xlu0 %v872, 57
      %v885 = vpop.permute.xlu0 %884
      %886 = vrot.lane.b32.xlu0 %v873, 57
      %v887 = vpop.permute.xlu0 %886
      %888 = vrot.lane.b32.xlu0 %v874, 57
      %v889 = vpop.permute.xlu0 %888
      %vm890 = vcmask 465920
      %v891 = vsel %vm890, %v881, %v883
      %v892 = vsel %vm890, %v883, %v885
      %v893 = vsel %vm890, %v885, %v887
      %v894 = vsel %vm890, %v887, %v889
      %899 = vst [vmem:[#allocation3 + $0x60] sm:$0xf] %v891
      %900 = vst [vmem:[#allocation3 + $0x68] sm:$0xf] %v892
      %901 = vst [vmem:[#allocation3 + $0x70] sm:$0xf] %v893
      %902 = vst [vmem:[#allocation3 + $0x78] sm:$0xf] %v894
      %v903 = vld [vmem:[#allocation2] sm:$0xff]
      %v904 = vld [vmem:[#allocation2 + $0x8] sm:$0xff]
      %v905 = vld [vmem:[#allocation2 + $0x10] sm:$0xff]
      %v906 = vld [vmem:[#allocation2 + $0x18] sm:$0xff]
      %v907 = vld [vmem:[#allocation2 + $0x20] sm:$0xff]
      %s908 = scalar_lea.vmem %s5, 7
      %v909 = vld [vmem:[%s908] ss:$8 sm:$0xf]
      %v911 = vlaneseq
      %v912 = vshrl.u32 %v911, 7
      %v913 = vsub.s32 0, %v912
      %v914 = vrot.slane %v909, %v913
      %v915 = vlaneseq
      %v916 = vshrl.u32 %v915, 7
      %v917 = vsub.s32 1, %v916
      %v918 = vrot.slane %v909, %v917
      %v919 = vlaneseq
      %v920 = vshrl.u32 %v919, 7
      %v921 = vsub.s32 2, %v920
      %v922 = vrot.slane %v909, %v921
      %v923 = vlaneseq
      %v924 = vshrl.u32 %v923, 7
      %v925 = vsub.s32 3, %v924
      %v926 = vrot.slane %v909, %v925
      %927 = vrot.lane.b32.xlu0 %v914, 72
      %v928 = vpop.permute.xlu0 %927
      %929 = vrot.lane.b32.xlu0 %v918, 72
      %v930 = vpop.permute.xlu0 %929
      %931 = vrot.lane.b32.xlu0 %v922, 72
      %v932 = vpop.permute.xlu0 %931
      %933 = vrot.lane.b32.xlu0 %v926, 72
      %v934 = vpop.permute.xlu0 %933
      %vm935 = vcmask 588800
      %v936 = vsel %vm935, %v928, %v930
      %v937 = vsel %vm935, %v930, %v932
      %v938 = vsel %vm935, %v932, %v934
      %v944 = vmul.f32 %v903, %v928
      %v945 = vmul.f32 %v904, %v936
      %v946 = vmul.f32 %v905, %v937
      %v947 = vmul.f32 %v906, %v938
      %v948 = vmul.f32 %v907, %v934
      %v949 = vpack.c.bf16 %v944, %v944
      %v950 = vpack.c.bf16 %v945, %v945
      %v951 = vpack.c.bf16 %v946, %v946
      %v952 = vpack.c.bf16 %v947, %v947
      %v953 = vpack.c.bf16 %v948, %v948
      %v959 = vrot.slane %v949, 4
      %v960 = vrot.slane %v950, 4
      %v961 = vrot.slane %v951, 4
      %v962 = vrot.slane %v952, 4
      %v963 = vrot.slane %v953, 4
      %964 = vrot.lane.b32.xlu0 %v959, 56
      %v965 = vpop.permute.xlu0 %964
      %966 = vrot.lane.b32.xlu0 %v960, 56
      %v967 = vpop.permute.xlu0 %966
      %968 = vrot.lane.b32.xlu0 %v961, 56
      %v969 = vpop.permute.xlu0 %968
      %970 = vrot.lane.b32.xlu0 %v962, 56
      %v971 = vpop.permute.xlu0 %970
      %972 = vrot.lane.b32.xlu0 %v963, 56
      %v973 = vpop.permute.xlu0 %972
      %vm974 = vcmask 457728
      %v975 = vsel %vm974, %v965, %v967
      %v976 = vsel %vm974, %v967, %v969
      %v977 = vsel %vm974, %v969, %v971
      %v978 = vsel %vm974, %v971, %v973
      %983 = vst [vmem:[#allocation3 + $0x60] sm:$0xf0] %v975
      %984 = vst [vmem:[#allocation3 + $0x68] sm:$0xf0] %v976
      %985 = vst [vmem:[#allocation3 + $0x70] sm:$0xf0] %v977
      %986 = vst [vmem:[#allocation3 + $0x78] sm:$0xf0] %v978
      %v987 = vld [vmem:[#allocation2] sm:$0xff]
      %v988 = vld [vmem:[#allocation2 + $0x8] sm:$0xff]
      %v989 = vld [vmem:[#allocation2 + $0x10] sm:$0xff]
      %v990 = vld [vmem:[#allocation2 + $0x18] sm:$0xff]
      %v991 = vld [vmem:[#allocation2 + $0x20] sm:$0xff]
      %s992 = scalar_lea.vmem %s5, 32
      %v993 = vld [vmem:[%s992] ss:$8 sm:$0xf]
      %v995 = vlaneseq
      %v996 = vshrl.u32 %v995, 7
      %v997 = vsub.s32 0, %v996
      %v998 = vrot.slane %v993, %v997
      %v999 = vlaneseq
      %v1000 = vshrl.u32 %v999, 7
      %v1001 = vsub.s32 1, %v1000
      %v1002 = vrot.slane %v993, %v1001
      %v1003 = vlaneseq
      %v1004 = vshrl.u32 %v1003, 7
      %v1005 = vsub.s32 2, %v1004
      %v1006 = vrot.slane %v993, %v1005
      %v1007 = vlaneseq
      %v1008 = vshrl.u32 %v1007, 7
      %v1009 = vsub.s32 3, %v1008
      %v1010 = vrot.slane %v993, %v1009
      %1011 = vrot.lane.b32.xlu0 %v998, 73
      %v1012 = vpop.permute.xlu0 %1011
      %1013 = vrot.lane.b32.xlu0 %v1002, 73
      %v1014 = vpop.permute.xlu0 %1013
      %1015 = vrot.lane.b32.xlu0 %v1006, 73
      %v1016 = vpop.permute.xlu0 %1015
      %1017 = vrot.lane.b32.xlu0 %v1010, 73
      %v1018 = vpop.permute.xlu0 %1017
      %vm1019 = vcmask 596992
      %v1020 = vsel %vm1019, %v1012, %v1014
      %v1021 = vsel %vm1019, %v1014, %v1016
      %v1022 = vsel %vm1019, %v1016, %v1018
      %v1028 = vmul.f32 %v987, %v1012
      %v1029 = vmul.f32 %v988, %v1020
      %v1030 = vmul.f32 %v989, %v1021
      %v1031 = vmul.f32 %v990, %v1022
      %v1032 = vmul.f32 %v991, %v1018
      %v1033 = vpack.c.bf16 %v1028, %v1028
      %v1034 = vpack.c.bf16 %v1029, %v1029
      %v1035 = vpack.c.bf16 %v1030, %v1030
      %v1036 = vpack.c.bf16 %v1031, %v1031
      %v1037 = vpack.c.bf16 %v1032, %v1032
      %1043 = vrot.lane.b32.xlu0 %v1033, 55
      %v1044 = vpop.permute.xlu0 %1043
      %1045 = vrot.lane.b32.xlu0 %v1034, 55
      %v1046 = vpop.permute.xlu0 %1045
      %1047 = vrot.lane.b32.xlu0 %v1035, 55
      %v1048 = vpop.permute.xlu0 %1047
      %1049 = vrot.lane.b32.xlu0 %v1036, 55
      %v1050 = vpop.permute.xlu0 %1049
      %1051 = vrot.lane.b32.xlu0 %v1037, 55
      %v1052 = vpop.permute.xlu0 %1051
      %vm1053 = vcmask 449536
      %v1054 = vsel %vm1053, %v1044, %v1046
      %v1055 = vsel %vm1053, %v1046, %v1048
      %v1056 = vsel %vm1053, %v1048, %v1050
      %v1057 = vsel %vm1053, %v1050, %v1052
      %1062 = vst [vmem:[#allocation3 + $0x80] sm:$0xf] %v1054
      %1063 = vst [vmem:[#allocation3 + $0x88] sm:$0xf] %v1055
      %1064 = vst [vmem:[#allocation3 + $0x90] sm:$0xf] %v1056
      %1065 = vst [vmem:[#allocation3 + $0x98] sm:$0xf] %v1057
      %v1066 = vld [vmem:[#allocation2] sm:$0xff]
      %v1067 = vld [vmem:[#allocation2 + $0x8] sm:$0xff]
      %v1068 = vld [vmem:[#allocation2 + $0x10] sm:$0xff]
      %v1069 = vld [vmem:[#allocation2 + $0x18] sm:$0xff]
      %v1070 = vld [vmem:[#allocation2 + $0x20] sm:$0xff]
      %s1071 = scalar_lea.vmem %s5, 33
      %v1072 = vld [vmem:[%s1071] ss:$8 sm:$0xf]
      %v1074 = vlaneseq
      %v1075 = vshrl.u32 %v1074, 7
      %v1076 = vsub.s32 0, %v1075
      %v1077 = vrot.slane %v1072, %v1076
      %v1078 = vlaneseq
      %v1079 = vshrl.u32 %v1078, 7
      %v1080 = vsub.s32 1, %v1079
      %v1081 = vrot.slane %v1072, %v1080
      %v1082 = vlaneseq
      %v1083 = vshrl.u32 %v1082, 7
      %v1084 = vsub.s32 2, %v1083
      %v1085 = vrot.slane %v1072, %v1084
      %v1086 = vlaneseq
      %v1087 = vshrl.u32 %v1086, 7
      %v1088 = vsub.s32 3, %v1087
      %v1089 = vrot.slane %v1072, %v1088
      %1090 = vrot.lane.b32.xlu0 %v1077, 119
      %v1091 = vpop.permute.xlu0 %1090
      %1092 = vrot.lane.b32.xlu0 %v1081, 119
      %v1093 = vpop.permute.xlu0 %1092
      %1094 = vrot.lane.b32.xlu0 %v1085, 119
      %v1095 = vpop.permute.xlu0 %1094
      %1096 = vrot.lane.b32.xlu0 %v1089, 119
      %v1097 = vpop.permute.xlu0 %1096
      %vm1098 = vcmask 973824
      %v1099 = vsel %vm1098, %v1091, %v1093
      %v1100 = vsel %vm1098, %v1093, %v1095
      %v1101 = vsel %vm1098, %v1095, %v1097
      %v1107 = vmul.f32 %v1066, %v1091
      %v1108 = vmul.f32 %v1067, %v1099
      %v1109 = vmul.f32 %v1068, %v1100
      %v1110 = vmul.f32 %v1069, %v1101
      %v1111 = vmul.f32 %v1070, %v1097
      %v1112 = vpack.c.bf16 %v1107, %v1107
      %v1113 = vpack.c.bf16 %v1108, %v1108
      %v1114 = vpack.c.bf16 %v1109, %v1109
      %v1115 = vpack.c.bf16 %v1110, %v1110
      %v1116 = vpack.c.bf16 %v1111, %v1111
      %v1122 = vrot.slane %v1112, 4
      %v1123 = vrot.slane %v1113, 4
      %v1124 = vrot.slane %v1114, 4
      %v1125 = vrot.slane %v1115, 4
      %v1126 = vrot.slane %v1116, 4
      %1127 = vrot.lane.b32.xlu0 %v1122, 9
      %v1128 = vpop.permute.xlu0 %1127
      %1129 = vrot.lane.b32.xlu0 %v1123, 9
      %v1130 = vpop.permute.xlu0 %1129
      %1131 = vrot.lane.b32.xlu0 %v1124, 9
      %v1132 = vpop.permute.xlu0 %1131
      %1133 = vrot.lane.b32.xlu0 %v1125, 9
      %v1134 = vpop.permute.xlu0 %1133
      %1135 = vrot.lane.b32.xlu0 %v1126, 9
      %v1136 = vpop.permute.xlu0 %1135
      %vm1137 = vcmask 72704
      %v1138 = vsel %vm1137, %v1128, %v1130
      %v1139 = vsel %vm1137, %v1130, %v1132
      %v1140 = vsel %vm1137, %v1132, %v1134
      %v1141 = vsel %vm1137, %v1134, %v1136
      %1146 = vst [vmem:[#allocation3 + $0x80] sm:$0xf0] %v1138
      %1147 = vst [vmem:[#allocation3 + $0x88] sm:$0xf0] %v1139
      %1148 = vst [vmem:[#allocation3 + $0x90] sm:$0xf0] %v1140
      %1149 = vst [vmem:[#allocation3 + $0x98] sm:$0xf0] %v1141
      %v1150 = vld [vmem:[#allocation2] sm:$0xff]
      %v1151 = vld [vmem:[#allocation2 + $0x8] sm:$0xff]
      %v1152 = vld [vmem:[#allocation2 + $0x10] sm:$0xff]
      %v1153 = vld [vmem:[#allocation2 + $0x18] sm:$0xff]
      %v1154 = vld [vmem:[#allocation2 + $0x20] sm:$0xff]
      %s1155 = scalar_lea.vmem %s5, 34
      %v1156 = vld [vmem:[%s1155] ss:$8 sm:$0xf]
      %v1158 = vlaneseq
      %v1159 = vshrl.u32 %v1158, 7
      %v1160 = vsub.s32 0, %v1159
      %v1161 = vrot.slane %v1156, %v1160
      %v1162 = vlaneseq
      %v1163 = vshrl.u32 %v1162, 7
      %v1164 = vsub.s32 1, %v1163
      %v1165 = vrot.slane %v1156, %v1164
      %v1166 = vlaneseq
      %v1167 = vshrl.u32 %v1166, 7
      %v1168 = vsub.s32 2, %v1167
      %v1169 = vrot.slane %v1156, %v1168
      %v1170 = vlaneseq
      %v1171 = vshrl.u32 %v1170, 7
      %v1172 = vsub.s32 3, %v1171
      %v1173 = vrot.slane %v1156, %v1172
      %1174 = vrot.lane.b32.xlu0 %v1161, 120
      %v1175 = vpop.permute.xlu0 %1174
      %1176 = vrot.lane.b32.xlu0 %v1165, 120
      %v1177 = vpop.permute.xlu0 %1176
      %1178 = vrot.lane.b32.xlu0 %v1169, 120
      %v1179 = vpop.permute.xlu0 %1178
      %1180 = vrot.lane.b32.xlu0 %v1173, 120
      %v1181 = vpop.permute.xlu0 %1180
      %vm1182 = vcmask 982016
      %v1183 = vsel %vm1182, %v1175, %v1177
      %v1184 = vsel %vm1182, %v1177, %v1179
      %v1185 = vsel %vm1182, %v1179, %v1181
      %v1191 = vmul.f32 %v1150, %v1175
      %v1192 = vmul.f32 %v1151, %v1183
      %v1193 = vmul.f32 %v1152, %v1184
      %v1194 = vmul.f32 %v1153, %v1185
      %v1195 = vmul.f32 %v1154, %v1181
      %v1196 = vpack.c.bf16 %v1191, %v1191
      %v1197 = vpack.c.bf16 %v1192, %v1192
      %v1198 = vpack.c.bf16 %v1193, %v1193
      %v1199 = vpack.c.bf16 %v1194, %v1194
      %v1200 = vpack.c.bf16 %v1195, %v1195
      %1206 = vrot.lane.b32.xlu0 %v1196, 8
      %v1207 = vpop.permute.xlu0 %1206
      %1208 = vrot.lane.b32.xlu0 %v1197, 8
      %v1209 = vpop.permute.xlu0 %1208
      %1210 = vrot.lane.b32.xlu0 %v1198, 8
      %v1211 = vpop.permute.xlu0 %1210
      %1212 = vrot.lane.b32.xlu0 %v1199, 8
      %v1213 = vpop.permute.xlu0 %1212
      %1214 = vrot.lane.b32.xlu0 %v1200, 8
      %v1215 = vpop.permute.xlu0 %1214
      %vm1216 = vcmask 64512
      %v1217 = vsel %vm1216, %v1207, %v1209
      %v1218 = vsel %vm1216, %v1209, %v1211
      %v1219 = vsel %vm1216, %v1211, %v1213
      %v1220 = vsel %vm1216, %v1213, %v1215
      %1225 = vst [vmem:[#allocation3 + $0xa0] sm:$0xf] %v1217
      %1226 = vst [vmem:[#allocation3 + $0xa8] sm:$0xf] %v1218
      %1227 = vst [vmem:[#allocation3 + $0xb0] sm:$0xf] %v1219
      %1228 = vst [vmem:[#allocation3 + $0xb8] sm:$0xf] %v1220
      %v1229 = vld [vmem:[#allocation2] sm:$0xff]
      %v1230 = vld [vmem:[#allocation2 + $0x8] sm:$0xff]
      %v1231 = vld [vmem:[#allocation2 + $0x10] sm:$0xff]
      %v1232 = vld [vmem:[#allocation2 + $0x18] sm:$0xff]
      %v1233 = vld [vmem:[#allocation2 + $0x20] sm:$0xff]
      %s1234 = scalar_lea.vmem %s5, 35
      %v1235 = vld [vmem:[%s1234] ss:$8 sm:$0xf]
      %v1237 = vlaneseq
      %v1238 = vshrl.u32 %v1237, 7
      %v1239 = vsub.s32 0, %v1238
      %v1240 = vrot.slane %v1235, %v1239
      %v1241 = vlaneseq
      %v1242 = vshrl.u32 %v1241, 7
      %v1243 = vsub.s32 1, %v1242
      %v1244 = vrot.slane %v1235, %v1243
      %v1245 = vlaneseq
      %v1246 = vshrl.u32 %v1245, 7
      %v1247 = vsub.s32 2, %v1246
      %v1248 = vrot.slane %v1235, %v1247
      %v1249 = vlaneseq
      %v1250 = vshrl.u32 %v1249, 7
      %v1251 = vsub.s32 3, %v1250
      %v1252 = vrot.slane %v1235, %v1251
      %1253 = vrot.lane.b32.xlu0 %v1240, 121
      %v1254 = vpop.permute.xlu0 %1253
      %1255 = vrot.lane.b32.xlu0 %v1244, 121
      %v1256 = vpop.permute.xlu0 %1255
      %1257 = vrot.lane.b32.xlu0 %v1248, 121
      %v1258 = vpop.permute.xlu0 %1257
      %1259 = vrot.lane.b32.xlu0 %v1252, 121
      %v1260 = vpop.permute.xlu0 %1259
      %vm1261 = vcmask 990208
      %v1262 = vsel %vm1261, %v1254, %v1256
      %v1263 = vsel %vm1261, %v1256, %v1258
      %v1264 = vsel %vm1261, %v1258, %v1260
      %v1270 = vmul.f32 %v1229, %v1254
      %v1271 = vmul.f32 %v1230, %v1262
      %v1272 = vmul.f32 %v1231, %v1263
      %v1273 = vmul.f32 %v1232, %v1264
      %v1274 = vmul.f32 %v1233, %v1260
      %v1275 = vpack.c.bf16 %v1270, %v1270
      %v1276 = vpack.c.bf16 %v1271, %v1271
      %v1277 = vpack.c.bf16 %v1272, %v1272
      %v1278 = vpack.c.bf16 %v1273, %v1273
      %v1279 = vpack.c.bf16 %v1274, %v1274
      %v1285 = vrot.slane %v1275, 4
      %v1286 = vrot.slane %v1276, 4
      %v1287 = vrot.slane %v1277, 4
      %v1288 = vrot.slane %v1278, 4
      %v1289 = vrot.slane %v1279, 4
      %1290 = vrot.lane.b32.xlu0 %v1285, 7
      %v1291 = vpop.permute.xlu0 %1290
      %1292 = vrot.lane.b32.xlu0 %v1286, 7
      %v1293 = vpop.permute.xlu0 %1292
      %1294 = vrot.lane.b32.xlu0 %v1287, 7
      %v1295 = vpop.permute.xlu0 %1294
      %1296 = vrot.lane.b32.xlu0 %v1288, 7
      %v1297 = vpop.permute.xlu0 %1296
      %1298 = vrot.lane.b32.xlu0 %v1289, 7
      %v1299 = vpop.permute.xlu0 %1298
      %vm1300 = vcmask 56320
      %v1301 = vsel %vm1300, %v1291, %v1293
      %v1302 = vsel %vm1300, %v1293, %v1295
      %v1303 = vsel %vm1300, %v1295, %v1297
      %v1304 = vsel %vm1300, %v1297, %v1299
      %1309 = vst [vmem:[#allocation3 + $0xa0] sm:$0xf0] %v1301
      %1310 = vst [vmem:[#allocation3 + $0xa8] sm:$0xf0] %v1302
      %1311 = vst [vmem:[#allocation3 + $0xb0] sm:$0xf0] %v1303
      %1312 = vst [vmem:[#allocation3 + $0xb8] sm:$0xf0] %v1304
      %v1313 = vld [vmem:[#allocation2] sm:$0xff]
      %v1314 = vld [vmem:[#allocation2 + $0x8] sm:$0xff]
      %v1315 = vld [vmem:[#allocation2 + $0x10] sm:$0xff]
      %v1316 = vld [vmem:[#allocation2 + $0x18] sm:$0xff]
      %v1317 = vld [vmem:[#allocation2 + $0x20] sm:$0xff]
      %s1318 = scalar_lea.vmem %s5, 36
      %v1319 = vld [vmem:[%s1318] ss:$8 sm:$0xf]
      %v1321 = vlaneseq
      %v1322 = vshrl.u32 %v1321, 7
      %v1323 = vsub.s32 0, %v1322
      %v1324 = vrot.slane %v1319, %v1323
      %v1325 = vlaneseq
      %v1326 = vshrl.u32 %v1325, 7
      %v1327 = vsub.s32 1, %v1326
      %v1328 = vrot.slane %v1319, %v1327
      %v1329 = vlaneseq
      %v1330 = vshrl.u32 %v1329, 7
      %v1331 = vsub.s32 2, %v1330
      %v1332 = vrot.slane %v1319, %v1331
      %v1333 = vlaneseq
      %v1334 = vshrl.u32 %v1333, 7
      %v1335 = vsub.s32 3, %v1334
      %v1336 = vrot.slane %v1319, %v1335
      %1337 = vrot.lane.b32.xlu0 %v1324, 127
      %v1338 = vpop.permute.xlu0 %1337
      %1339 = vrot.lane.b32.xlu0 %v1328, 127
      %v1340 = vpop.permute.xlu0 %1339
      %1341 = vrot.lane.b32.xlu0 %v1332, 127
      %v1342 = vpop.permute.xlu0 %1341
      %1343 = vrot.lane.b32.xlu0 %v1336, 127
      %v1344 = vpop.permute.xlu0 %1343
      %vm1345 = vcmask 1039360
      %v1346 = vsel %vm1345, %v1338, %v1340
      %v1347 = vsel %vm1345, %v1340, %v1342
      %v1348 = vsel %vm1345, %v1342, %v1344
      %v1354 = vmul.f32 %v1313, %v1338
      %v1355 = vmul.f32 %v1314, %v1346
      %v1356 = vmul.f32 %v1315, %v1347
      %v1357 = vmul.f32 %v1316, %v1348
      %v1358 = vmul.f32 %v1317, %v1344
      %v1359 = vpack.c.bf16 %v1354, %v1354
      %v1360 = vpack.c.bf16 %v1355, %v1355
      %v1361 = vpack.c.bf16 %v1356, %v1356
      %v1362 = vpack.c.bf16 %v1357, %v1357
      %v1363 = vpack.c.bf16 %v1358, %v1358
      %1369 = vrot.lane.b32.xlu0 %v1359, 1
      %v1370 = vpop.permute.xlu0 %1369
      %1371 = vrot.lane.b32.xlu0 %v1360, 1
      %v1372 = vpop.permute.xlu0 %1371
      %1373 = vrot.lane.b32.xlu0 %v1361, 1
      %v1374 = vpop.permute.xlu0 %1373
      %1375 = vrot.lane.b32.xlu0 %v1362, 1
      %v1376 = vpop.permute.xlu0 %1375
      %1377 = vrot.lane.b32.xlu0 %v1363, 1
      %v1378 = vpop.permute.xlu0 %1377
      %vm1379 = vcmask 7168
      %v1380 = vsel %vm1379, %v1370, %v1372
      %v1381 = vsel %vm1379, %v1372, %v1374
      %v1382 = vsel %vm1379, %v1374, %v1376
      %v1383 = vsel %vm1379, %v1376, %v1378
      %1388 = vst [vmem:[#allocation3 + $0xc0] sm:$0xf] %v1380
      %1389 = vst [vmem:[#allocation3 + $0xc8] sm:$0xf] %v1381
      %1390 = vst [vmem:[#allocation3 + $0xd0] sm:$0xf] %v1382
      %1391 = vst [vmem:[#allocation3 + $0xd8] sm:$0xf] %v1383
      %v1392 = vld [vmem:[#allocation2 + $0x8] sm:$0xff]
      %v1393 = vld [vmem:[#allocation2 + $0x10] sm:$0xff]
      %v1394 = vld [vmem:[#allocation2 + $0x18] sm:$0xff]
      %v1395 = vld [vmem:[#allocation2 + $0x20] sm:$0xff]
      %s1396 = scalar_lea.vmem %s5, 37
      %v1397 = vld [vmem:[%s1396] ss:$8 sm:$0xf]
      %v1399 = vlaneseq
      %v1400 = vshrl.u32 %v1399, 7
      %v1401 = vsub.s32 0, %v1400
      %v1402 = vrot.slane %v1397, %v1401
      %v1403 = vlaneseq
      %v1404 = vshrl.u32 %v1403, 7
      %v1405 = vsub.s32 1, %v1404
      %v1406 = vrot.slane %v1397, %v1405
      %v1407 = vlaneseq
      %v1408 = vshrl.u32 %v1407, 7
      %v1409 = vsub.s32 2, %v1408
      %v1410 = vrot.slane %v1397, %v1409
      %v1411 = vlaneseq
      %v1412 = vshrl.u32 %v1411, 7
      %v1413 = vsub.s32 3, %v1412
      %v1414 = vrot.slane %v1397, %v1413
      %v1419 = vmul.f32 %v1392, %v1402
      %v1420 = vmul.f32 %v1393, %v1406
      %v1421 = vmul.f32 %v1394, %v1410
      %v1422 = vmul.f32 %v1395, %v1414
      %v1423 = vpack.c.bf16 %v1419, %v1419
      %v1424 = vpack.c.bf16 %v1420, %v1420
      %v1425 = vpack.c.bf16 %v1421, %v1421
      %v1426 = vpack.c.bf16 %v1422, %v1422
      %v1431 = vrot.slane %v1423, 4
      %v1432 = vrot.slane %v1424, 4
      %v1433 = vrot.slane %v1425, 4
      %v1434 = vrot.slane %v1426, 4
      %1439 = vst [vmem:[#allocation3 + $0xc0] sm:$0xf0] %v1431
      %1440 = vst [vmem:[#allocation3 + $0xc8] sm:$0xf0] %v1432
      %1441 = vst [vmem:[#allocation3 + $0xd0] sm:$0xf0] %v1433
      %1442 = vst [vmem:[#allocation3 + $0xd8] sm:$0xf0] %v1434
      %v1443 = vld [vmem:[#allocation2 + $0x8] sm:$0xff]
      %v1444 = vld [vmem:[#allocation2 + $0x10] sm:$0xff]
      %v1445 = vld [vmem:[#allocation2 + $0x18] sm:$0xff]
      %v1446 = vld [vmem:[#allocation2 + $0x20] sm:$0xff]
      %v1447 = vld [vmem:[#allocation2 + $0x28] sm:$0xff]
      %s1448 = scalar_lea.vmem %s5, 38
      %v1449 = vld [vmem:[%s1448] ss:$8 sm:$0xf]
      %v1451 = vlaneseq
      %v1452 = vshrl.u32 %v1451, 7
      %v1453 = vsub.s32 0, %v1452
      %v1454 = vrot.slane %v1449, %v1453
      %v1455 = vlaneseq
      %v1456 = vshrl.u32 %v1455, 7
      %v1457 = vsub.s32 1, %v1456
      %v1458 = vrot.slane %v1449, %v1457
      %v1459 = vlaneseq
      %v1460 = vshrl.u32 %v1459, 7
      %v1461 = vsub.s32 2, %v1460
      %v1462 = vrot.slane %v1449, %v1461
      %v1463 = vlaneseq
      %v1464 = vshrl.u32 %v1463, 7
      %v1465 = vsub.s32 3, %v1464
      %v1466 = vrot.slane %v1449, %v1465
      %1467 = vrot.lane.b32.xlu0 %v1454, 1
      %v1468 = vpop.permute.xlu0 %1467
      %1469 = vrot.lane.b32.xlu0 %v1458, 1
      %v1470 = vpop.permute.xlu0 %1469
      %1471 = vrot.lane.b32.xlu0 %v1462, 1
      %v1472 = vpop.permute.xlu0 %1471
      %1473 = vrot.lane.b32.xlu0 %v1466, 1
      %v1474 = vpop.permute.xlu0 %1473
      %vm1475 = vcmask 7168
      %v1476 = vsel %vm1475, %v1468, %v1470
      %v1477 = vsel %vm1475, %v1470, %v1472
      %v1478 = vsel %vm1475, %v1472, %v1474
      %v1484 = vmul.f32 %v1443, %v1468
      %v1485 = vmul.f32 %v1444, %v1476
      %v1486 = vmul.f32 %v1445, %v1477
      %v1487 = vmul.f32 %v1446, %v1478
      %v1488 = vmul.f32 %v1447, %v1474
      %v1489 = vpack.c.bf16 %v1484, %v1484
      %v1490 = vpack.c.bf16 %v1485, %v1485
      %v1491 = vpack.c.bf16 %v1486, %v1486
      %v1492 = vpack.c.bf16 %v1487, %v1487
      %v1493 = vpack.c.bf16 %v1488, %v1488
      %1499 = vrot.lane.b32.xlu0 %v1489, 127
      %v1500 = vpop.permute.xlu0 %1499
      %1501 = vrot.lane.b32.xlu0 %v1490, 127
      %v1502 = vpop.permute.xlu0 %1501
      %1503 = vrot.lane.b32.xlu0 %v1491, 127
      %v1504 = vpop.permute.xlu0 %1503
      %1505 = vrot.lane.b32.xlu0 %v1492, 127
      %v1506 = vpop.permute.xlu0 %1505
      %1507 = vrot.lane.b32.xlu0 %v1493, 127
      %v1508 = vpop.permute.xlu0 %1507
      %vm1509 = vcmask 1039360
      %v1510 = vsel %vm1509, %v1500, %v1502
      %v1511 = vsel %vm1509, %v1502, %v1504
      %v1512 = vsel %vm1509, %v1504, %v1506
      %v1513 = vsel %vm1509, %v1506, %v1508
      %1518 = vst [vmem:[#allocation3 + $0xe0] sm:$0xf] %v1510
      %1519 = vst [vmem:[#allocation3 + $0xe8] sm:$0xf] %v1511
      %1520 = vst [vmem:[#allocation3 + $0xf0] sm:$0xf] %v1512
      %1521 = vst [vmem:[#allocation3 + $0xf8] sm:$0xf] %v1513
      %v1522 = vld [vmem:[#allocation2 + $0x8] sm:$0xff]
      %v1523 = vld [vmem:[#allocation2 + $0x10] sm:$0xff]
      %v1524 = vld [vmem:[#allocation2 + $0x18] sm:$0xff]
      %v1525 = vld [vmem:[#allocation2 + $0x20] sm:$0xff]
      %v1526 = vld [vmem:[#allocation2 + $0x28] sm:$0xff]
      %s1527 = scalar_lea.vmem %s5, 39
      %v1528 = vld [vmem:[%s1527] ss:$8 sm:$0xf]
      %v1530 = vlaneseq
      %v1531 = vshrl.u32 %v1530, 7
      %v1532 = vsub.s32 0, %v1531
      %v1533 = vrot.slane %v1528, %v1532
      %v1534 = vlaneseq
      %v1535 = vshrl.u32 %v1534, 7
      %v1536 = vsub.s32 1, %v1535
      %v1537 = vrot.slane %v1528, %v1536
      %v1538 = vlaneseq
      %v1539 = vshrl.u32 %v1538, 7
      %v1540 = vsub.s32 2, %v1539
      %v1541 = vrot.slane %v1528, %v1540
      %v1542 = vlaneseq
      %v1543 = vshrl.u32 %v1542, 7
      %v1544 = vsub.s32 3, %v1543
      %v1545 = vrot.slane %v1528, %v1544
      %1546 = vrot.lane.b32.xlu0 %v1533, 7
      %v1547 = vpop.permute.xlu0 %1546
      %1548 = vrot.lane.b32.xlu0 %v1537, 7
      %v1549 = vpop.permute.xlu0 %1548
      %1550 = vrot.lane.b32.xlu0 %v1541, 7
      %v1551 = vpop.permute.xlu0 %1550
      %1552 = vrot.lane.b32.xlu0 %v1545, 7
      %v1553 = vpop.permute.xlu0 %1552
      %vm1554 = vcmask 56320
      %v1555 = vsel %vm1554, %v1547, %v1549
      %v1556 = vsel %vm1554, %v1549, %v1551
      %v1557 = vsel %vm1554, %v1551, %v1553
      %v1563 = vmul.f32 %v1522, %v1547
      %v1564 = vmul.f32 %v1523, %v1555
      %v1565 = vmul.f32 %v1524, %v1556
      %v1566 = vmul.f32 %v1525, %v1557
      %v1567 = vmul.f32 %v1526, %v1553
      %v1568 = vpack.c.bf16 %v1563, %v1563
      %v1569 = vpack.c.bf16 %v1564, %v1564
      %v1570 = vpack.c.bf16 %v1565, %v1565
      %v1571 = vpack.c.bf16 %v1566, %v1566
      %v1572 = vpack.c.bf16 %v1567, %v1567
      %v1578 = vrot.slane %v1568, 4
      %v1579 = vrot.slane %v1569, 4
      %v1580 = vrot.slane %v1570, 4
      %v1581 = vrot.slane %v1571, 4
      %v1582 = vrot.slane %v1572, 4
      %1583 = vrot.lane.b32.xlu0 %v1578, 121
      %v1584 = vpop.permute.xlu0 %1583
      %1585 = vrot.lane.b32.xlu0 %v1579, 121
      %v1586 = vpop.permute.xlu0 %1585
      %1587 = vrot.lane.b32.xlu0 %v1580, 121
      %v1588 = vpop.permute.xlu0 %1587
      %1589 = vrot.lane.b32.xlu0 %v1581, 121
      %v1590 = vpop.permute.xlu0 %1589
      %1591 = vrot.lane.b32.xlu0 %v1582, 121
      %v1592 = vpop.permute.xlu0 %1591
      %vm1593 = vcmask 990208
      %v1594 = vsel %vm1593, %v1584, %v1586
      %v1595 = vsel %vm1593, %v1586, %v1588
      %v1596 = vsel %vm1593, %v1588, %v1590
      %v1597 = vsel %vm1593, %v1590, %v1592
      %1602 = vst [vmem:[#allocation3 + $0xe0] sm:$0xf0] %v1594
      %1603 = vst [vmem:[#allocation3 + $0xe8] sm:$0xf0] %v1595
      %1604 = vst [vmem:[#allocation3 + $0xf0] sm:$0xf0] %v1596
      %1605 = vst [vmem:[#allocation3 + $0xf8] sm:$0xf0] %v1597
      %v1606 = vld [vmem:[#allocation2 + $0x8] sm:$0xff]
      %v1607 = vld [vmem:[#allocation2 + $0x10] sm:$0xff]
      %v1608 = vld [vmem:[#allocation2 + $0x18] sm:$0xff]
      %v1609 = vld [vmem:[#allocation2 + $0x20] sm:$0xff]
      %v1610 = vld [vmem:[#allocation2 + $0x28] sm:$0xff]
      %s1611 = scalar_lea.vmem %s5, 64
      %v1612 = vld [vmem:[%s1611] ss:$8 sm:$0xf]
      %v1614 = vlaneseq
      %v1615 = vshrl.u32 %v1614, 7
      %v1616 = vsub.s32 0, %v1615
      %v1617 = vrot.slane %v1612, %v1616
      %v1618 = vlaneseq
      %v1619 = vshrl.u32 %v1618, 7
      %v1620 = vsub.s32 1, %v1619
      %v1621 = vrot.slane %v1612, %v1620
      %v1622 = vlaneseq
      %v1623 = vshrl.u32 %v1622, 7
      %v1624 = vsub.s32 2, %v1623
      %v1625 = vrot.slane %v1612, %v1624
      %v1626 = vlaneseq
      %v1627 = vshrl.u32 %v1626, 7
      %v1628 = vsub.s32 3, %v1627
      %v1629 = vrot.slane %v1612, %v1628
      %1630 = vrot.lane.b32.xlu0 %v1617, 8
      %v1631 = vpop.permute.xlu0 %1630
      %1632 = vrot.lane.b32.xlu0 %v1621, 8
      %v1633 = vpop.permute.xlu0 %1632
      %1634 = vrot.lane.b32.xlu0 %v1625, 8
      %v1635 = vpop.permute.xlu0 %1634
      %1636 = vrot.lane.b32.xlu0 %v1629, 8
      %v1637 = vpop.permute.xlu0 %1636
      %vm1638 = vcmask 64512
      %v1639 = vsel %vm1638, %v1631, %v1633
      %v1640 = vsel %vm1638, %v1633, %v1635
      %v1641 = vsel %vm1638, %v1635, %v1637
      %v1647 = vmul.f32 %v1606, %v1631
      %v1648 = vmul.f32 %v1607, %v1639
      %v1649 = vmul.f32 %v1608, %v1640
      %v1650 = vmul.f32 %v1609, %v1641
      %v1651 = vmul.f32 %v1610, %v1637
      %v1652 = vpack.c.bf16 %v1647, %v1647
      %v1653 = vpack.c.bf16 %v1648, %v1648
      %v1654 = vpack.c.bf16 %v1649, %v1649
      %v1655 = vpack.c.bf16 %v1650, %v1650
      %v1656 = vpack.c.bf16 %v1651, %v1651
      %1662 = vrot.lane.b32.xlu0 %v1652, 120
      %v1663 = vpop.permute.xlu0 %1662
      %1664 = vrot.lane.b32.xlu0 %v1653, 120
      %v1665 = vpop.permute.xlu0 %1664
      %1666 = vrot.lane.b32.xlu0 %v1654, 120
      %v1667 = vpop.permute.xlu0 %1666
      %1668 = vrot.lane.b32.xlu0 %v1655, 120
      %v1669 = vpop.permute.xlu0 %1668
      %1670 = vrot.lane.b32.xlu0 %v1656, 120
      %v1671 = vpop.permute.xlu0 %1670
      %vm1672 = vcmask 982016
      %v1673 = vsel %vm1672, %v1663, %v1665
      %v1674 = vsel %vm1672, %v1665, %v1667
      %v1675 = vsel %vm1672, %v1667, %v1669
      %v1676 = vsel %vm1672, %v1669, %v1671
      %1681 = vst [vmem:[#allocation3 + $0x100] sm:$0xf] %v1673
      %1682 = vst [vmem:[#allocation3 + $0x108] sm:$0xf] %v1674
      %1683 = vst [vmem:[#allocation3 + $0x110] sm:$0xf] %v1675
      %1684 = vst [vmem:[#allocation3 + $0x118] sm:$0xf] %v1676
      %v1685 = vld [vmem:[#allocation2 + $0x8] sm:$0xff]
      %v1686 = vld [vmem:[#allocation2 + $0x10] sm:$0xff]
      %v1687 = vld [vmem:[#allocation2 + $0x18] sm:$0xff]
      %v1688 = vld [vmem:[#allocation2 + $0x20] sm:$0xff]
      %v1689 = vld [vmem:[#allocation2 + $0x28] sm:$0xff]
      %s1690 = scalar_lea.vmem %s5, 65
      %v1691 = vld [vmem:[%s1690] ss:$8 sm:$0xf]
      %v1693 = vlaneseq
      %v1694 = vshrl.u32 %v1693, 7
      %v1695 = vsub.s32 0, %v1694
      %v1696 = vrot.slane %v1691, %v1695
      %v1697 = vlaneseq
      %v1698 = vshrl.u32 %v1697, 7
      %v1699 = vsub.s32 1, %v1698
      %v1700 = vrot.slane %v1691, %v1699
      %v1701 = vlaneseq
      %v1702 = vshrl.u32 %v1701, 7
      %v1703 = vsub.s32 2, %v1702
      %v1704 = vrot.slane %v1691, %v1703
      %v1705 = vlaneseq
      %v1706 = vshrl.u32 %v1705, 7
      %v1707 = vsub.s32 3, %v1706
      %v1708 = vrot.slane %v1691, %v1707
      %1709 = vrot.lane.b32.xlu0 %v1696, 9
      %v1710 = vpop.permute.xlu0 %1709
      %1711 = vrot.lane.b32.xlu0 %v1700, 9
      %v1712 = vpop.permute.xlu0 %1711
      %1713 = vrot.lane.b32.xlu0 %v1704, 9
      %v1714 = vpop.permute.xlu0 %1713
      %1715 = vrot.lane.b32.xlu0 %v1708, 9
      %v1716 = vpop.permute.xlu0 %1715
      %vm1717 = vcmask 72704
      %v1718 = vsel %vm1717, %v1710, %v1712
      %v1719 = vsel %vm1717, %v1712, %v1714
      %v1720 = vsel %vm1717, %v1714, %v1716
      %v1726 = vmul.f32 %v1685, %v1710
      %v1727 = vmul.f32 %v1686, %v1718
      %v1728 = vmul.f32 %v1687, %v1719
      %v1729 = vmul.f32 %v1688, %v1720
      %v1730 = vmul.f32 %v1689, %v1716
      %v1731 = vpack.c.bf16 %v1726, %v1726
      %v1732 = vpack.c.bf16 %v1727, %v1727
      %v1733 = vpack.c.bf16 %v1728, %v1728
      %v1734 = vpack.c.bf16 %v1729, %v1729
      %v1735 = vpack.c.bf16 %v1730, %v1730
      %v1741 = vrot.slane %v1731, 4
      %v1742 = vrot.slane %v1732, 4
      %v1743 = vrot.slane %v1733, 4
      %v1744 = vrot.slane %v1734, 4
      %v1745 = vrot.slane %v1735, 4
      %1746 = vrot.lane.b32.xlu0 %v1741, 119
      %v1747 = vpop.permute.xlu0 %1746
      %1748 = vrot.lane.b32.xlu0 %v1742, 119
      %v1749 = vpop.permute.xlu0 %1748
      %1750 = vrot.lane.b32.xlu0 %v1743, 119
      %v1751 = vpop.permute.xlu0 %1750
      %1752 = vrot.lane.b32.xlu0 %v1744, 119
      %v1753 = vpop.permute.xlu0 %1752
      %1754 = vrot.lane.b32.xlu0 %v1745, 119
      %v1755 = vpop.permute.xlu0 %1754
      %vm1756 = vcmask 973824
      %v1757 = vsel %vm1756, %v1747, %v1749
      %v1758 = vsel %vm1756, %v1749, %v1751
      %v1759 = vsel %vm1756, %v1751, %v1753
      %v1760 = vsel %vm1756, %v1753, %v1755
      %1765 = vst [vmem:[#allocation3 + $0x100] sm:$0xf0] %v1757
      %1766 = vst [vmem:[#allocation3 + $0x108] sm:$0xf0] %v1758
      %1767 = vst [vmem:[#allocation3 + $0x110] sm:$0xf0] %v1759
      %1768 = vst [vmem:[#allocation3 + $0x118] sm:$0xf0] %v1760
      %v1769 = vld [vmem:[#allocation2 + $0x8] sm:$0xff]
      %v1770 = vld [vmem:[#allocation2 + $0x10] sm:$0xff]
      %v1771 = vld [vmem:[#allocation2 + $0x18] sm:$0xff]
      %v1772 = vld [vmem:[#allocation2 + $0x20] sm:$0xff]
      %v1773 = vld [vmem:[#allocation2 + $0x28] sm:$0xff]
      %s1774 = scalar_lea.vmem %s5, 66
      %v1775 = vld [vmem:[%s1774] ss:$8 sm:$0xf]
      %v1777 = vlaneseq
      %v1778 = vshrl.u32 %v1777, 7
      %v1779 = vsub.s32 0, %v1778
      %v1780 = vrot.slane %v1775, %v1779
      %v1781 = vlaneseq
      %v1782 = vshrl.u32 %v1781, 7
      %v1783 = vsub.s32 1, %v1782
      %v1784 = vrot.slane %v1775, %v1783
      %v1785 = vlaneseq
      %v1786 = vshrl.u32 %v1785, 7
      %v1787 = vsub.s32 2, %v1786
      %v1788 = vrot.slane %v1775, %v1787
      %v1789 = vlaneseq
      %v1790 = vshrl.u32 %v1789, 7
      %v1791 = vsub.s32 3, %v1790
      %v1792 = vrot.slane %v1775, %v1791
      %1793 = vrot.lane.b32.xlu0 %v1780, 55
      %v1794 = vpop.permute.xlu0 %1793
      %1795 = vrot.lane.b32.xlu0 %v1784, 55
      %v1796 = vpop.permute.xlu0 %1795
      %1797 = vrot.lane.b32.xlu0 %v1788, 55
      %v1798 = vpop.permute.xlu0 %1797
      %1799 = vrot.lane.b32.xlu0 %v1792, 55
      %v1800 = vpop.permute.xlu0 %1799
      %v1801 = vsel %vm367, %v1794, %v1796
      %v1802 = vsel %vm367, %v1796, %v1798
      %v1803 = vsel %vm367, %v1798, %v1800
      %v1809 = vmul.f32 %v1769, %v1794
      %v1810 = vmul.f32 %v1770, %v1801
      %v1811 = vmul.f32 %v1771, %v1802
      %v1812 = vmul.f32 %v1772, %v1803
      %v1813 = vmul.f32 %v1773, %v1800
      %v1814 = vpack.c.bf16 %v1809, %v1809
      %v1815 = vpack.c.bf16 %v1810, %v1810
      %v1816 = vpack.c.bf16 %v1811, %v1811
      %v1817 = vpack.c.bf16 %v1812, %v1812
      %v1818 = vpack.c.bf16 %v1813, %v1813
      %1824 = vrot.lane.b32.xlu0 %v1814, 73
      %v1825 = vpop.permute.xlu0 %1824
      %1826 = vrot.lane.b32.xlu0 %v1815, 73
      %v1827 = vpop.permute.xlu0 %1826
      %1828 = vrot.lane.b32.xlu0 %v1816, 73
      %v1829 = vpop.permute.xlu0 %1828
      %1830 = vrot.lane.b32.xlu0 %v1817, 73
      %v1831 = vpop.permute.xlu0 %1830
      %1832 = vrot.lane.b32.xlu0 %v1818, 73
      %v1833 = vpop.permute.xlu0 %1832
      %v1834 = vsel %vm401, %v1825, %v1827
      %v1835 = vsel %vm401, %v1827, %v1829
      %v1836 = vsel %vm401, %v1829, %v1831
      %v1837 = vsel %vm401, %v1831, %v1833
      %1842 = vst [vmem:[#allocation3 + $0x120] sm:$0xf] %v1834
      %1843 = vst [vmem:[#allocation3 + $0x128] sm:$0xf] %v1835
      %1844 = vst [vmem:[#allocation3 + $0x130] sm:$0xf] %v1836
      %1845 = vst [vmem:[#allocation3 + $0x138] sm:$0xf] %v1837
      %v1846 = vld [vmem:[#allocation2 + $0x8] sm:$0xff]
      %v1847 = vld [vmem:[#allocation2 + $0x10] sm:$0xff]
      %v1848 = vld [vmem:[#allocation2 + $0x18] sm:$0xff]
      %v1849 = vld [vmem:[#allocation2 + $0x20] sm:$0xff]
      %v1850 = vld [vmem:[#allocation2 + $0x28] sm:$0xff]
      %s1851 = scalar_lea.vmem %s5, 67
      %v1852 = vld [vmem:[%s1851] ss:$8 sm:$0xf]
      %v1854 = vlaneseq
      %v1855 = vshrl.u32 %v1854, 7
      %v1856 = vsub.s32 0, %v1855
      %v1857 = vrot.slane %v1852, %v1856
      %v1858 = vlaneseq
      %v1859 = vshrl.u32 %v1858, 7
      %v1860 = vsub.s32 1, %v1859
      %v1861 = vrot.slane %v1852, %v1860
      %v1862 = vlaneseq
      %v1863 = vshrl.u32 %v1862, 7
      %v1864 = vsub.s32 2, %v1863
      %v1865 = vrot.slane %v1852, %v1864
      %v1866 = vlaneseq
      %v1867 = vshrl.u32 %v1866, 7
      %v1868 = vsub.s32 3, %v1867
      %v1869 = vrot.slane %v1852, %v1868
      %1870 = vrot.lane.b32.xlu0 %v1857, 56
      %v1871 = vpop.permute.xlu0 %1870
      %1872 = vrot.lane.b32.xlu0 %v1861, 56
      %v1873 = vpop.permute.xlu0 %1872
      %1874 = vrot.lane.b32.xlu0 %v1865, 56
      %v1875 = vpop.permute.xlu0 %1874
      %1876 = vrot.lane.b32.xlu0 %v1869, 56
      %v1877 = vpop.permute.xlu0 %1876
      %v1878 = vsel %vm446, %v1871, %v1873
      %v1879 = vsel %vm446, %v1873, %v1875
      %v1880 = vsel %vm446, %v1875, %v1877
      %v1886 = vmul.f32 %v1846, %v1871
      %v1887 = vmul.f32 %v1847, %v1878
      %v1888 = vmul.f32 %v1848, %v1879
      %v1889 = vmul.f32 %v1849, %v1880
      %v1890 = vmul.f32 %v1850, %v1877
      %v1891 = vpack.c.bf16 %v1886, %v1886
      %v1892 = vpack.c.bf16 %v1887, %v1887
      %v1893 = vpack.c.bf16 %v1888, %v1888
      %v1894 = vpack.c.bf16 %v1889, %v1889
      %v1895 = vpack.c.bf16 %v1890, %v1890
      %v1901 = vrot.slane %v1891, 4
      %v1902 = vrot.slane %v1892, 4
      %v1903 = vrot.slane %v1893, 4
      %v1904 = vrot.slane %v1894, 4
      %v1905 = vrot.slane %v1895, 4
      %1906 = vrot.lane.b32.xlu0 %v1901, 72
      %v1907 = vpop.permute.xlu0 %1906
      %1908 = vrot.lane.b32.xlu0 %v1902, 72
      %v1909 = vpop.permute.xlu0 %1908
      %1910 = vrot.lane.b32.xlu0 %v1903, 72
      %v1911 = vpop.permute.xlu0 %1910
      %1912 = vrot.lane.b32.xlu0 %v1904, 72
      %v1913 = vpop.permute.xlu0 %1912
      %1914 = vrot.lane.b32.xlu0 %v1905, 72
      %v1915 = vpop.permute.xlu0 %1914
      %v1916 = vsel %vm485, %v1907, %v1909
      %v1917 = vsel %vm485, %v1909, %v1911
      %v1918 = vsel %vm485, %v1911, %v1913
      %v1919 = vsel %vm485, %v1913, %v1915
      %1924 = vst [vmem:[#allocation3 + $0x120] sm:$0xf0] %v1916
      %1925 = vst [vmem:[#allocation3 + $0x128] sm:$0xf0] %v1917
      %1926 = vst [vmem:[#allocation3 + $0x130] sm:$0xf0] %v1918
      %1927 = vst [vmem:[#allocation3 + $0x138] sm:$0xf0] %v1919
      %v1928 = vld [vmem:[#allocation2 + $0x8] sm:$0xff]
      %v1929 = vld [vmem:[#allocation2 + $0x10] sm:$0xff]
      %v1930 = vld [vmem:[#allocation2 + $0x18] sm:$0xff]
      %v1931 = vld [vmem:[#allocation2 + $0x20] sm:$0xff]
      %v1932 = vld [vmem:[#allocation2 + $0x28] sm:$0xff]
      %s1933 = scalar_lea.vmem %s5, 68
      %v1934 = vld [vmem:[%s1933] ss:$8 sm:$0xf]
      %v1936 = vlaneseq
      %v1937 = vshrl.u32 %v1936, 7
      %v1938 = vsub.s32 0, %v1937
      %v1939 = vrot.slane %v1934, %v1938
      %v1940 = vlaneseq
      %v1941 = vshrl.u32 %v1940, 7
      %v1942 = vsub.s32 1, %v1941
      %v1943 = vrot.slane %v1934, %v1942
      %v1944 = vlaneseq
      %v1945 = vshrl.u32 %v1944, 7
      %v1946 = vsub.s32 2, %v1945
      %v1947 = vrot.slane %v1934, %v1946
      %v1948 = vlaneseq
      %v1949 = vshrl.u32 %v1948, 7
      %v1950 = vsub.s32 3, %v1949
      %v1951 = vrot.slane %v1934, %v1950
      %1952 = vrot.lane.b32.xlu0 %v1939, 57
      %v1953 = vpop.permute.xlu0 %1952
      %1954 = vrot.lane.b32.xlu0 %v1943, 57
      %v1955 = vpop.permute.xlu0 %1954
      %1956 = vrot.lane.b32.xlu0 %v1947, 57
      %v1957 = vpop.permute.xlu0 %1956
      %1958 = vrot.lane.b32.xlu0 %v1951, 57
      %v1959 = vpop.permute.xlu0 %1958
      %v1960 = vsel %vm530, %v1953, %v1955
      %v1961 = vsel %vm530, %v1955, %v1957
      %v1962 = vsel %vm530, %v1957, %v1959
      %v1968 = vmul.f32 %v1928, %v1953
      %v1969 = vmul.f32 %v1929, %v1960
      %v1970 = vmul.f32 %v1930, %v1961
      %v1971 = vmul.f32 %v1931, %v1962
      %v1972 = vmul.f32 %v1932, %v1959
      %v1973 = vpack.c.bf16 %v1968, %v1968
      %v1974 = vpack.c.bf16 %v1969, %v1969
      %v1975 = vpack.c.bf16 %v1970, %v1970
      %v1976 = vpack.c.bf16 %v1971, %v1971
      %v1977 = vpack.c.bf16 %v1972, %v1972
      %1983 = vrot.lane.b32.xlu0 %v1973, 71
      %v1984 = vpop.permute.xlu0 %1983
      %1985 = vrot.lane.b32.xlu0 %v1974, 71
      %v1986 = vpop.permute.xlu0 %1985
      %1987 = vrot.lane.b32.xlu0 %v1975, 71
      %v1988 = vpop.permute.xlu0 %1987
      %1989 = vrot.lane.b32.xlu0 %v1976, 71
      %v1990 = vpop.permute.xlu0 %1989
      %1991 = vrot.lane.b32.xlu0 %v1977, 71
      %v1992 = vpop.permute.xlu0 %1991
      %v1993 = vsel %vm564, %v1984, %v1986
      %v1994 = vsel %vm564, %v1986, %v1988
      %v1995 = vsel %vm564, %v1988, %v1990
      %v1996 = vsel %vm564, %v1990, %v1992
      %2001 = vst [vmem:[#allocation3 + $0x140] sm:$0xf] %v1993
      %2002 = vst [vmem:[#allocation3 + $0x148] sm:$0xf] %v1994
      %2003 = vst [vmem:[#allocation3 + $0x150] sm:$0xf] %v1995
      %2004 = vst [vmem:[#allocation3 + $0x158] sm:$0xf] %v1996
      %v2005 = vld [vmem:[#allocation2 + $0x8] sm:$0xff]
      %v2006 = vld [vmem:[#allocation2 + $0x10] sm:$0xff]
      %v2007 = vld [vmem:[#allocation2 + $0x18] sm:$0xff]
      %v2008 = vld [vmem:[#allocation2 + $0x20] sm:$0xff]
      %v2009 = vld [vmem:[#allocation2 + $0x28] sm:$0xff]
      %s2010 = scalar_lea.vmem %s5, 69
      %v2011 = vld [vmem:[%s2010] ss:$8 sm:$0xf]
      %v2013 = vlaneseq
      %v2014 = vshrl.u32 %v2013, 7
      %v2015 = vsub.s32 0, %v2014
      %v2016 = vrot.slane %v2011, %v2015
      %v2017 = vlaneseq
      %v2018 = vshrl.u32 %v2017, 7
      %v2019 = vsub.s32 1, %v2018
      %v2020 = vrot.slane %v2011, %v2019
      %v2021 = vlaneseq
      %v2022 = vshrl.u32 %v2021, 7
      %v2023 = vsub.s32 2, %v2022
      %v2024 = vrot.slane %v2011, %v2023
      %v2025 = vlaneseq
      %v2026 = vshrl.u32 %v2025, 7
      %v2027 = vsub.s32 3, %v2026
      %v2028 = vrot.slane %v2011, %v2027
      %2029 = vrot.lane.b32.xlu0 %v2016, 63
      %v2030 = vpop.permute.xlu0 %2029
      %2031 = vrot.lane.b32.xlu0 %v2020, 63
      %v2032 = vpop.permute.xlu0 %2031
      %2033 = vrot.lane.b32.xlu0 %v2024, 63
      %v2034 = vpop.permute.xlu0 %2033
      %2035 = vrot.lane.b32.xlu0 %v2028, 63
      %v2036 = vpop.permute.xlu0 %2035
      %v2037 = vsel %vm609, %v2030, %v2032
      %v2038 = vsel %vm609, %v2032, %v2034
      %v2039 = vsel %vm609, %v2034, %v2036
      %v2045 = vmul.f32 %v2005, %v2030
      %v2046 = vmul.f32 %v2006, %v2037
      %v2047 = vmul.f32 %v2007, %v2038
      %v2048 = vmul.f32 %v2008, %v2039
      %v2049 = vmul.f32 %v2009, %v2036
      %v2050 = vpack.c.bf16 %v2045, %v2045
      %v2051 = vpack.c.bf16 %v2046, %v2046
      %v2052 = vpack.c.bf16 %v2047, %v2047
      %v2053 = vpack.c.bf16 %v2048, %v2048
      %v2054 = vpack.c.bf16 %v2049, %v2049
      %v2060 = vrot.slane %v2050, 4
      %v2061 = vrot.slane %v2051, 4
      %v2062 = vrot.slane %v2052, 4
      %v2063 = vrot.slane %v2053, 4
      %v2064 = vrot.slane %v2054, 4
      %2065 = vrot.lane.b32.xlu0 %v2060, 65
      %v2066 = vpop.permute.xlu0 %2065
      %2067 = vrot.lane.b32.xlu0 %v2061, 65
      %v2068 = vpop.permute.xlu0 %2067
      %2069 = vrot.lane.b32.xlu0 %v2062, 65
      %v2070 = vpop.permute.xlu0 %2069
      %2071 = vrot.lane.b32.xlu0 %v2063, 65
      %v2072 = vpop.permute.xlu0 %2071
      %2073 = vrot.lane.b32.xlu0 %v2064, 65
      %v2074 = vpop.permute.xlu0 %2073
      %v2075 = vsel %vm648, %v2066, %v2068
      %v2076 = vsel %vm648, %v2068, %v2070
      %v2077 = vsel %vm648, %v2070, %v2072
      %v2078 = vsel %vm648, %v2072, %v2074
      %2083 = vst [vmem:[#allocation3 + $0x140] sm:$0xf0] %v2075
      %2084 = vst [vmem:[#allocation3 + $0x148] sm:$0xf0] %v2076
      %2085 = vst [vmem:[#allocation3 + $0x150] sm:$0xf0] %v2077
      %2086 = vst [vmem:[#allocation3 + $0x158] sm:$0xf0] %v2078
      %v2087 = vld [vmem:[#allocation2 + $0x8] sm:$0xff]
      %v2088 = vld [vmem:[#allocation2 + $0x10] sm:$0xff]
      %v2089 = vld [vmem:[#allocation2 + $0x18] sm:$0xff]
      %v2090 = vld [vmem:[#allocation2 + $0x20] sm:$0xff]
      %v2091 = vld [vmem:[#allocation2 + $0x28] sm:$0xff]
      %s2092 = scalar_lea.vmem %s5, 70
      %v2093 = vld [vmem:[%s2092] ss:$8 sm:$0xf]
      %v2095 = vlaneseq
      %v2096 = vshrl.u32 %v2095, 7
      %v2097 = vsub.s32 0, %v2096
      %v2098 = vrot.slane %v2093, %v2097
      %v2099 = vlaneseq
      %v2100 = vshrl.u32 %v2099, 7
      %v2101 = vsub.s32 1, %v2100
      %v2102 = vrot.slane %v2093, %v2101
      %v2103 = vlaneseq
      %v2104 = vshrl.u32 %v2103, 7
      %v2105 = vsub.s32 2, %v2104
      %v2106 = vrot.slane %v2093, %v2105
      %v2107 = vlaneseq
      %v2108 = vshrl.u32 %v2107, 7
      %v2109 = vsub.s32 3, %v2108
      %v2110 = vrot.slane %v2093, %v2109
      %2111 = vrot.lane.b32.xlu0 %v2098, 64
      %v2112 = vpop.permute.xlu0 %2111
      %2113 = vrot.lane.b32.xlu0 %v2102, 64
      %v2114 = vpop.permute.xlu0 %2113
      %2115 = vrot.lane.b32.xlu0 %v2106, 64
      %v2116 = vpop.permute.xlu0 %2115
      %2117 = vrot.lane.b32.xlu0 %v2110, 64
      %v2118 = vpop.permute.xlu0 %2117
      %v2119 = vsel %vm693, %v2112, %v2114
      %v2120 = vsel %vm693, %v2114, %v2116
      %v2121 = vsel %vm693, %v2116, %v2118
      %v2127 = vmul.f32 %v2087, %v2112
      %v2128 = vmul.f32 %v2088, %v2119
      %v2129 = vmul.f32 %v2089, %v2120
      %v2130 = vmul.f32 %v2090, %v2121
      %v2131 = vmul.f32 %v2091, %v2118
      %v2132 = vpack.c.bf16 %v2127, %v2127
      %v2133 = vpack.c.bf16 %v2128, %v2128
      %v2134 = vpack.c.bf16 %v2129, %v2129
      %v2135 = vpack.c.bf16 %v2130, %v2130
      %v2136 = vpack.c.bf16 %v2131, %v2131
      %2142 = vrot.lane.b32.xlu0 %v2132, 64
      %v2143 = vpop.permute.xlu0 %2142
      %2144 = vrot.lane.b32.xlu0 %v2133, 64
      %v2145 = vpop.permute.xlu0 %2144
      %2146 = vrot.lane.b32.xlu0 %v2134, 64
      %v2147 = vpop.permute.xlu0 %2146
      %2148 = vrot.lane.b32.xlu0 %v2135, 64
      %v2149 = vpop.permute.xlu0 %2148
      %2150 = vrot.lane.b32.xlu0 %v2136, 64
      %v2151 = vpop.permute.xlu0 %2150
      %v2152 = vsel %vm727, %v2143, %v2145
      %v2153 = vsel %vm727, %v2145, %v2147
      %v2154 = vsel %vm727, %v2147, %v2149
      %v2155 = vsel %vm727, %v2149, %v2151
      %2160 = vst [vmem:[#allocation3 + $0x160] sm:$0xf] %v2152
      %2161 = vst [vmem:[#allocation3 + $0x168] sm:$0xf] %v2153
      %2162 = vst [vmem:[#allocation3 + $0x170] sm:$0xf] %v2154
      %2163 = vst [vmem:[#allocation3 + $0x178] sm:$0xf] %v2155
      %v2164 = vld [vmem:[#allocation2 + $0x8] sm:$0xff]
      %v2165 = vld [vmem:[#allocation2 + $0x10] sm:$0xff]
      %v2166 = vld [vmem:[#allocation2 + $0x18] sm:$0xff]
      %v2167 = vld [vmem:[#allocation2 + $0x20] sm:$0xff]
      %v2168 = vld [vmem:[#allocation2 + $0x28] sm:$0xff]
      %s2169 = scalar_lea.vmem %s5, 71
      %v2170 = vld [vmem:[%s2169] ss:$8 sm:$0xf]
      %v2172 = vlaneseq
      %v2173 = vshrl.u32 %v2172, 7
      %v2174 = vsub.s32 0, %v2173
      %v2175 = vrot.slane %v2170, %v2174
      %v2176 = vlaneseq
      %v2177 = vshrl.u32 %v2176, 7
      %v2178 = vsub.s32 1, %v2177
      %v2179 = vrot.slane %v2170, %v2178
      %v2180 = vlaneseq
      %v2181 = vshrl.u32 %v2180, 7
      %v2182 = vsub.s32 2, %v2181
      %v2183 = vrot.slane %v2170, %v2182
      %v2184 = vlaneseq
      %v2185 = vshrl.u32 %v2184, 7
      %v2186 = vsub.s32 3, %v2185
      %v2187 = vrot.slane %v2170, %v2186
      %2188 = vrot.lane.b32.xlu0 %v2175, 65
      %v2189 = vpop.permute.xlu0 %2188
      %2190 = vrot.lane.b32.xlu0 %v2179, 65
      %v2191 = vpop.permute.xlu0 %2190
      %2192 = vrot.lane.b32.xlu0 %v2183, 65
      %v2193 = vpop.permute.xlu0 %2192
      %2194 = vrot.lane.b32.xlu0 %v2187, 65
      %v2195 = vpop.permute.xlu0 %2194
      %v2196 = vsel %vm772, %v2189, %v2191
      %v2197 = vsel %vm772, %v2191, %v2193
      %v2198 = vsel %vm772, %v2193, %v2195
      %v2204 = vmul.f32 %v2164, %v2189
      %v2205 = vmul.f32 %v2165, %v2196
      %v2206 = vmul.f32 %v2166, %v2197
      %v2207 = vmul.f32 %v2167, %v2198
      %v2208 = vmul.f32 %v2168, %v2195
      %v2209 = vpack.c.bf16 %v2204, %v2204
      %v2210 = vpack.c.bf16 %v2205, %v2205
      %v2211 = vpack.c.bf16 %v2206, %v2206
      %v2212 = vpack.c.bf16 %v2207, %v2207
      %v2213 = vpack.c.bf16 %v2208, %v2208
      %v2219 = vrot.slane %v2209, 4
      %v2220 = vrot.slane %v2210, 4
      %v2221 = vrot.slane %v2211, 4
      %v2222 = vrot.slane %v2212, 4
      %v2223 = vrot.slane %v2213, 4
      %2224 = vrot.lane.b32.xlu0 %v2219, 63
      %v2225 = vpop.permute.xlu0 %2224
      %2226 = vrot.lane.b32.xlu0 %v2220, 63
      %v2227 = vpop.permute.xlu0 %2226
      %2228 = vrot.lane.b32.xlu0 %v2221, 63
      %v2229 = vpop.permute.xlu0 %2228
      %2230 = vrot.lane.b32.xlu0 %v2222, 63
      %v2231 = vpop.permute.xlu0 %2230
      %2232 = vrot.lane.b32.xlu0 %v2223, 63
      %v2233 = vpop.permute.xlu0 %2232
      %v2234 = vsel %vm811, %v2225, %v2227
      %v2235 = vsel %vm811, %v2227, %v2229
      %v2236 = vsel %vm811, %v2229, %v2231
      %v2237 = vsel %vm811, %v2231, %v2233
      %2242 = vst [vmem:[#allocation3 + $0x160] sm:$0xf0] %v2234
      %2243 = vst [vmem:[#allocation3 + $0x168] sm:$0xf0] %v2235
      %2244 = vst [vmem:[#allocation3 + $0x170] sm:$0xf0] %v2236
      %2245 = vst [vmem:[#allocation3 + $0x178] sm:$0xf0] %v2237
      %v2246 = vld [vmem:[#allocation2 + $0x8] sm:$0xff]
      %v2247 = vld [vmem:[#allocation2 + $0x10] sm:$0xff]
      %v2248 = vld [vmem:[#allocation2 + $0x18] sm:$0xff]
      %v2249 = vld [vmem:[#allocation2 + $0x20] sm:$0xff]
      %v2250 = vld [vmem:[#allocation2 + $0x28] sm:$0xff]
      %s2251 = scalar_lea.vmem %s5, 96
      %v2252 = vld [vmem:[%s2251] ss:$8 sm:$0xf]
      %v2254 = vlaneseq
      %v2255 = vshrl.u32 %v2254, 7
      %v2256 = vsub.s32 0, %v2255
      %v2257 = vrot.slane %v2252, %v2256
      %v2258 = vlaneseq
      %v2259 = vshrl.u32 %v2258, 7
      %v2260 = vsub.s32 1, %v2259
      %v2261 = vrot.slane %v2252, %v2260
      %v2262 = vlaneseq
      %v2263 = vshrl.u32 %v2262, 7
      %v2264 = vsub.s32 2, %v2263
      %v2265 = vrot.slane %v2252, %v2264
      %v2266 = vlaneseq
      %v2267 = vshrl.u32 %v2266, 7
      %v2268 = vsub.s32 3, %v2267
      %v2269 = vrot.slane %v2252, %v2268
      %2270 = vrot.lane.b32.xlu0 %v2257, 71
      %v2271 = vpop.permute.xlu0 %2270
      %2272 = vrot.lane.b32.xlu0 %v2261, 71
      %v2273 = vpop.permute.xlu0 %2272
      %2274 = vrot.lane.b32.xlu0 %v2265, 71
      %v2275 = vpop.permute.xlu0 %2274
      %2276 = vrot.lane.b32.xlu0 %v2269, 71
      %v2277 = vpop.permute.xlu0 %2276
      %v2278 = vsel %vm856, %v2271, %v2273
      %v2279 = vsel %vm856, %v2273, %v2275
      %v2280 = vsel %vm856, %v2275, %v2277
      %v2286 = vmul.f32 %v2246, %v2271
      %v2287 = vmul.f32 %v2247, %v2278
      %v2288 = vmul.f32 %v2248, %v2279
      %v2289 = vmul.f32 %v2249, %v2280
      %v2290 = vmul.f32 %v2250, %v2277
      %v2291 = vpack.c.bf16 %v2286, %v2286
      %v2292 = vpack.c.bf16 %v2287, %v2287
      %v2293 = vpack.c.bf16 %v2288, %v2288
      %v2294 = vpack.c.bf16 %v2289, %v2289
      %v2295 = vpack.c.bf16 %v2290, %v2290
      %2301 = vrot.lane.b32.xlu0 %v2291, 57
      %v2302 = vpop.permute.xlu0 %2301
      %2303 = vrot.lane.b32.xlu0 %v2292, 57
      %v2304 = vpop.permute.xlu0 %2303
      %2305 = vrot.lane.b32.xlu0 %v2293, 57
      %v2306 = vpop.permute.xlu0 %2305
      %2307 = vrot.lane.b32.xlu0 %v2294, 57
      %v2308 = vpop.permute.xlu0 %2307
      %2309 = vrot.lane.b32.xlu0 %v2295, 57
      %v2310 = vpop.permute.xlu0 %2309
      %v2311 = vsel %vm890, %v2302, %v2304
      %v2312 = vsel %vm890, %v2304, %v2306
      %v2313 = vsel %vm890, %v2306, %v2308
      %v2314 = vsel %vm890, %v2308, %v2310
      %2319 = vst [vmem:[#allocation3 + $0x180] sm:$0xf] %v2311
      %2320 = vst [vmem:[#allocation3 + $0x188] sm:$0xf] %v2312
      %2321 = vst [vmem:[#allocation3 + $0x190] sm:$0xf] %v2313
      %2322 = vst [vmem:[#allocation3 + $0x198] sm:$0xf] %v2314
      %v2323 = vld [vmem:[#allocation2 + $0x8] sm:$0xff]
      %v2324 = vld [vmem:[#allocation2 + $0x10] sm:$0xff]
      %v2325 = vld [vmem:[#allocation2 + $0x18] sm:$0xff]
      %v2326 = vld [vmem:[#allocation2 + $0x20] sm:$0xff]
      %v2327 = vld [vmem:[#allocation2 + $0x28] sm:$0xff]
      %s2328 = scalar_lea.vmem %s5, 97
      %v2329 = vld [vmem:[%s2328] ss:$8 sm:$0xf]
      %v2331 = vlaneseq
      %v2332 = vshrl.u32 %v2331, 7
      %v2333 = vsub.s32 0, %v2332
      %v2334 = vrot.slane %v2329, %v2333
      %v2335 = vlaneseq
      %v2336 = vshrl.u32 %v2335, 7
      %v2337 = vsub.s32 1, %v2336
      %v2338 = vrot.slane %v2329, %v2337
      %v2339 = vlaneseq
      %v2340 = vshrl.u32 %v2339, 7
      %v2341 = vsub.s32 2, %v2340
      %v2342 = vrot.slane %v2329, %v2341
      %v2343 = vlaneseq
      %v2344 = vshrl.u32 %v2343, 7
      %v2345 = vsub.s32 3, %v2344
      %v2346 = vrot.slane %v2329, %v2345
      %2347 = vrot.lane.b32.xlu0 %v2334, 72
      %v2348 = vpop.permute.xlu0 %2347
      %2349 = vrot.lane.b32.xlu0 %v2338, 72
      %v2350 = vpop.permute.xlu0 %2349
      %2351 = vrot.lane.b32.xlu0 %v2342, 72
      %v2352 = vpop.permute.xlu0 %2351
      %2353 = vrot.lane.b32.xlu0 %v2346, 72
      %v2354 = vpop.permute.xlu0 %2353
      %v2355 = vsel %vm935, %v2348, %v2350
      %v2356 = vsel %vm935, %v2350, %v2352
      %v2357 = vsel %vm935, %v2352, %v2354
      %v2363 = vmul.f32 %v2323, %v2348
      %v2364 = vmul.f32 %v2324, %v2355
      %v2365 = vmul.f32 %v2325, %v2356
      %v2366 = vmul.f32 %v2326, %v2357
      %v2367 = vmul.f32 %v2327, %v2354
      %v2368 = vpack.c.bf16 %v2363, %v2363
      %v2369 = vpack.c.bf16 %v2364, %v2364
      %v2370 = vpack.c.bf16 %v2365, %v2365
      %v2371 = vpack.c.bf16 %v2366, %v2366
      %v2372 = vpack.c.bf16 %v2367, %v2367
      %v2378 = vrot.slane %v2368, 4
      %v2379 = vrot.slane %v2369, 4
      %v2380 = vrot.slane %v2370, 4
      %v2381 = vrot.slane %v2371, 4
      %v2382 = vrot.slane %v2372, 4
      %2383 = vrot.lane.b32.xlu0 %v2378, 56
      %v2384 = vpop.permute.xlu0 %2383
      %2385 = vrot.lane.b32.xlu0 %v2379, 56
      %v2386 = vpop.permute.xlu0 %2385
      %2387 = vrot.lane.b32.xlu0 %v2380, 56
      %v2388 = vpop.permute.xlu0 %2387
      %2389 = vrot.lane.b32.xlu0 %v2381, 56
      %v2390 = vpop.permute.xlu0 %2389
      %2391 = vrot.lane.b32.xlu0 %v2382, 56
      %v2392 = vpop.permute.xlu0 %2391
      %v2393 = vsel %vm974, %v2384, %v2386
      %v2394 = vsel %vm974, %v2386, %v2388
      %v2395 = vsel %vm974, %v2388, %v2390
      %v2396 = vsel %vm974, %v2390, %v2392
      %2401 = vst [vmem:[#allocation3 + $0x180] sm:$0xf0] %v2393
      %2402 = vst [vmem:[#allocation3 + $0x188] sm:$0xf0] %v2394
      %2403 = vst [vmem:[#allocation3 + $0x190] sm:$0xf0] %v2395
      %2404 = vst [vmem:[#allocation3 + $0x198] sm:$0xf0] %v2396
      %v2405 = vld [vmem:[#allocation2 + $0x8] sm:$0xff]
      %v2406 = vld [vmem:[#allocation2 + $0x10] sm:$0xff]
      %v2407 = vld [vmem:[#allocation2 + $0x18] sm:$0xff]
      %v2408 = vld [vmem:[#allocation2 + $0x20] sm:$0xff]
      %v2409 = vld [vmem:[#allocation2 + $0x28] sm:$0xff]
      %s2410 = scalar_lea.vmem %s5, 98
      %v2411 = vld [vmem:[%s2410] ss:$8 sm:$0xf]
      %v2413 = vlaneseq
      %v2414 = vshrl.u32 %v2413, 7
      %v2415 = vsub.s32 0, %v2414
      %v2416 = vrot.slane %v2411, %v2415
      %v2417 = vlaneseq
      %v2418 = vshrl.u32 %v2417, 7
      %v2419 = vsub.s32 1, %v2418
      %v2420 = vrot.slane %v2411, %v2419
      %v2421 = vlaneseq
      %v2422 = vshrl.u32 %v2421, 7
      %v2423 = vsub.s32 2, %v2422
      %v2424 = vrot.slane %v2411, %v2423
      %v2425 = vlaneseq
      %v2426 = vshrl.u32 %v2425, 7
      %v2427 = vsub.s32 3, %v2426
      %v2428 = vrot.slane %v2411, %v2427
      %2429 = vrot.lane.b32.xlu0 %v2416, 73
      %v2430 = vpop.permute.xlu0 %2429
      %2431 = vrot.lane.b32.xlu0 %v2420, 73
      %v2432 = vpop.permute.xlu0 %2431
      %2433 = vrot.lane.b32.xlu0 %v2424, 73
      %v2434 = vpop.permute.xlu0 %2433
      %2435 = vrot.lane.b32.xlu0 %v2428, 73
      %v2436 = vpop.permute.xlu0 %2435
      %v2437 = vsel %vm1019, %v2430, %v2432
      %v2438 = vsel %vm1019, %v2432, %v2434
      %v2439 = vsel %vm1019, %v2434, %v2436
      %v2445 = vmul.f32 %v2405, %v2430
      %v2446 = vmul.f32 %v2406, %v2437
      %v2447 = vmul.f32 %v2407, %v2438
      %v2448 = vmul.f32 %v2408, %v2439
      %v2449 = vmul.f32 %v2409, %v2436
      %v2450 = vpack.c.bf16 %v2445, %v2445
      %v2451 = vpack.c.bf16 %v2446, %v2446
      %v2452 = vpack.c.bf16 %v2447, %v2447
      %v2453 = vpack.c.bf16 %v2448, %v2448
      %v2454 = vpack.c.bf16 %v2449, %v2449
      %2460 = vrot.lane.b32.xlu0 %v2450, 55
      %v2461 = vpop.permute.xlu0 %2460
      %2462 = vrot.lane.b32.xlu0 %v2451, 55
      %v2463 = vpop.permute.xlu0 %2462
      %2464 = vrot.lane.b32.xlu0 %v2452, 55
      %v2465 = vpop.permute.xlu0 %2464
      %2466 = vrot.lane.b32.xlu0 %v2453, 55
      %v2467 = vpop.permute.xlu0 %2466
      %2468 = vrot.lane.b32.xlu0 %v2454, 55
      %v2469 = vpop.permute.xlu0 %2468
      %v2470 = vsel %vm1053, %v2461, %v2463
      %v2471 = vsel %vm1053, %v2463, %v2465
      %v2472 = vsel %vm1053, %v2465, %v2467
      %v2473 = vsel %vm1053, %v2467, %v2469
      %2478 = vst [vmem:[#allocation3 + $0x1a0] sm:$0xf] %v2470
      %2479 = vst [vmem:[#allocation3 + $0x1a8] sm:$0xf] %v2471
      %2480 = vst [vmem:[#allocation3 + $0x1b0] sm:$0xf] %v2472
      %2481 = vst [vmem:[#allocation3 + $0x1b8] sm:$0xf] %v2473
      %v2482 = vld [vmem:[%s293] sm:$0xff]
      %v2483 = vld [vmem:[%s293 + $0x8] sm:$0xff]
      %v2484 = vld [vmem:[%s293 + $0x10] sm:$0xff]
      %v2485 = vld [vmem:[%s293 + $0x18] sm:$0xff]
      %v2486 = vpack.c.bf16 %v2482, %v2482
      %v2487 = vpack.c.bf16 %v2483, %v2483
      %v2488 = vpack.c.bf16 %v2484, %v2484
      %v2489 = vpack.c.bf16 %v2485, %v2485
      %v2494 = vrot.slane %v2486, 4
      %v2495 = vrot.slane %v2487, 4
      %v2496 = vrot.slane %v2488, 4
      %v2497 = vrot.slane %v2489, 4
      %2502 = vst [vmem:[#allocation3 + $0x1a0] sm:$0xf0] %v2494
      %2503 = vst [vmem:[#allocation3 + $0x1a8] sm:$0xf0] %v2495
      %2504 = vst [vmem:[#allocation3 + $0x1b0] sm:$0xf0] %v2496
      %2505 = vst [vmem:[#allocation3 + $0x1b8] sm:$0xf0] %v2497
      %v2506 = vld [vmem:[%s3] sm:$0xff]
      %v2507 = vld [vmem:[#allocation3] sm:$0xff]
      %v2508 = vld [vmem:[#allocation3 + $0x8] sm:$0xff]
      %v2509 = vld [vmem:[#allocation3 + $0x10] sm:$0xff]
      %v2510 = vld [vmem:[#allocation3 + $0x18] sm:$0xff]
      %v2511 = vld [vmem:[#allocation3 + $0x20] sm:$0xff]
      %v2512 = vld [vmem:[#allocation3 + $0x28] sm:$0xff]
      %v2513 = vld [vmem:[#allocation3 + $0x30] sm:$0xff]
      %v2514 = vld [vmem:[#allocation3 + $0x38] sm:$0xff]
      %v2515 = vld [vmem:[#allocation3 + $0x40] sm:$0xff]
      %v2516 = vld [vmem:[#allocation3 + $0x48] sm:$0xff]
      %v2517 = vld [vmem:[#allocation3 + $0x50] sm:$0xff]
      %v2518 = vld [vmem:[#allocation3 + $0x58] sm:$0xff]
      %v2519 = vld [vmem:[#allocation3 + $0x60] sm:$0xff]
      %v2520 = vld [vmem:[#allocation3 + $0x68] sm:$0xff]
      %v2521 = vld [vmem:[#allocation3 + $0x70] sm:$0xff]
      %v2522 = vld [vmem:[#allocation3 + $0x78] sm:$0xff]
      %v2523 = vld [vmem:[#allocation3 + $0x80] sm:$0xff]
      %v2524 = vld [vmem:[#allocation3 + $0x88] sm:$0xff]
      %v2525 = vld [vmem:[#allocation3 + $0x90] sm:$0xff]
      %v2526 = vld [vmem:[#allocation3 + $0x98] sm:$0xff]
      %v2527 = vld [vmem:[#allocation3 + $0xa0] sm:$0xff]
      %v2528 = vld [vmem:[#allocation3 + $0xa8] sm:$0xff]
      %v2529 = vld [vmem:[#allocation3 + $0xb0] sm:$0xff]
      %v2530 = vld [vmem:[#allocation3 + $0xb8] sm:$0xff]
      %v2531 = vld [vmem:[#allocation3 + $0xc0] sm:$0xff]
      %v2532 = vld [vmem:[#allocation3 + $0xc8] sm:$0xff]
      %v2533 = vld [vmem:[#allocation3 + $0xd0] sm:$0xff]
      %v2534 = vld [vmem:[#allocation3 + $0xd8] sm:$0xff]
      %v2535 = vld [vmem:[#allocation3 + $0xe0] sm:$0xff]
      %v2536 = vld [vmem:[#allocation3 + $0xe8] sm:$0xff]
      %v2537 = vld [vmem:[#allocation3 + $0xf0] sm:$0xff]
      %v2538 = vld [vmem:[#allocation3 + $0xf8] sm:$0xff]
      %v2539 = vld [vmem:[#allocation3 + $0x100] sm:$0xff]
      %v2540 = vld [vmem:[#allocation3 + $0x108] sm:$0xff]
      %v2541 = vld [vmem:[#allocation3 + $0x110] sm:$0xff]
      %v2542 = vld [vmem:[#allocation3 + $0x118] sm:$0xff]
      %v2543 = vld [vmem:[#allocation3 + $0x120] sm:$0xff]
      %v2544 = vld [vmem:[#allocation3 + $0x128] sm:$0xff]
      %v2545 = vld [vmem:[#allocation3 + $0x130] sm:$0xff]
      %v2546 = vld [vmem:[#allocation3 + $0x138] sm:$0xff]
      %v2547 = vld [vmem:[#allocation3 + $0x140] sm:$0xff]
      %v2548 = vld [vmem:[#allocation3 + $0x148] sm:$0xff]
      %v2549 = vld [vmem:[#allocation3 + $0x150] sm:$0xff]
      %v2550 = vld [vmem:[#allocation3 + $0x158] sm:$0xff]
      %v2551 = vld [vmem:[#allocation3 + $0x160] sm:$0xff]
      %v2552 = vld [vmem:[#allocation3 + $0x168] sm:$0xff]
      %v2553 = vld [vmem:[#allocation3 + $0x170] sm:$0xff]
      %v2554 = vld [vmem:[#allocation3 + $0x178] sm:$0xff]
      %v2555 = vld [vmem:[#allocation3 + $0x180] sm:$0xff]
      %v2556 = vld [vmem:[#allocation3 + $0x188] sm:$0xff]
      %v2557 = vld [vmem:[#allocation3 + $0x190] sm:$0xff]
      %v2558 = vld [vmem:[#allocation3 + $0x198] sm:$0xff]
      %v2559 = vld [vmem:[#allocation3 + $0x1a0] sm:$0xff]
      %v2560 = vld [vmem:[#allocation3 + $0x1a8] sm:$0xff]
      %v2561 = vld [vmem:[#allocation3 + $0x1b0] sm:$0xff]
      %v2562 = vld [vmem:[#allocation3 + $0x1b8] sm:$0xff]
      %v2563 = vld [vmem:[%s4] sm:$0xff]
      %2565 = vset.pattern.permute.xlu0 0
      %2566 = vperm.xlu0 %2565, %v2563
      %v2567 = vpop.permute.xlu0 %2566
      %v2570 = vunpack.c.l.b16 %v2506
      %v2571 = vunpack.c.h.b16 %v2506
      %v2572 = vpack.c.b16 %v2570, %v2570
      %v2573 = vpack.c.b16 %v2571, %v2571
      %vm2575 = vcmask 785408
      %v2577 = vsel %vm2575, %v2573, 0
      %2579 = vmatprep.subr.bf16.mxu0 %v2508
      %2580 = vmatpush1.bf16.msra.mxu0 %v2507
      %2581 = vmatprep.subr.bf16.mxu0 %v2512
      %2582 = vmatpush1.bf16.msra.mxu0 %v2511
      %2583 = vmatprep.subr.bf16.mxu0 %v2516
      %2584 = vmatpush1.bf16.msra.mxu0 %v2515
      %2585 = vmatprep.subr.bf16.mxu0 %v2520
      %2586 = vmatpush1.bf16.msra.mxu0 %v2519
      %2587 = vmatprep.subr.bf16.mxu0 %v2524
      %2588 = vmatpush1.bf16.msra.mxu0 %v2523
      %2589 = vmatprep.subr.bf16.mxu0 %v2528
      %2590 = vmatpush1.bf16.msra.mxu0 %v2527
      %2591 = vmatprep.subr.bf16.mxu0 %v2532
      %2592 = vmatpush1.bf16.msra.mxu0 %v2531
      %2593 = vmatprep.subr.bf16.mxu0 %v2536
      %2594 = vmatpush1.bf16.msra.mxu0 %v2535
      %2595 = vmatprep.subr.bf16.mxu0 %v2540
      %2596 = vmatpush1.bf16.msra.mxu0 %v2539
      %2597 = vmatprep.subr.bf16.mxu0 %v2544
      %2598 = vmatpush1.bf16.msra.mxu0 %v2543
      %2599 = vmatprep.subr.bf16.mxu0 %v2548
      %2600 = vmatpush1.bf16.msra.mxu0 %v2547
      %2601 = vmatprep.subr.bf16.mxu0 %v2552
      %2602 = vmatpush1.bf16.msra.mxu0 %v2551
      %2603 = vmatprep.subr.bf16.mxu0 %v2556
      %2604 = vmatpush1.bf16.msra.mxu0 %v2555
      %2605 = vmatprep.subr.bf16.mxu0 %v2560
      %2606 = vmatpush1.bf16.msra.mxu0 %v2559
      %2607 = vmatprep.subr.bf16.mxu0 0
      %2608 = vmatpush1.bf16.msra.mxu0 0
      %2609 = vmatprep.subr.bf16.mxu0 0
      %2610 = vmatpush1.bf16.msra.mxu0 0
      %2611 = vmatprep.mubr.bf16.mxu0 %v2577
      %2612 = vmatmul.mubr.bf16.gmra.mrb[0].mxu0 %v2572
      %v2613 = vpop.f32.mrb[0].mxu0
      %v2614 = vadd.f32 %v2567, %v2613
      %v2615 = vpop.f32.mrb[0].mxu0
      %v2616 = vadd.f32 %v2567, %v2615
      %v2617 = vpop.f32.mrb[0].mxu0
      %v2618 = vpop.f32.mrb[0].mxu0
      %2619 = vdwg.mxu0
      %2620 = vmatprep.subr.bf16.mxu0 %v2510
      %2621 = vmatpush1.bf16.msra.mxu0 %v2509
      %2622 = vmatprep.subr.bf16.mxu0 %v2514
      %2623 = vmatpush1.bf16.msra.mxu0 %v2513
      %2624 = vmatprep.subr.bf16.mxu0 %v2518
      %2625 = vmatpush1.bf16.msra.mxu0 %v2517
      %2626 = vmatprep.subr.bf16.mxu0 %v2522
      %2627 = vmatpush1.bf16.msra.mxu0 %v2521
      %2628 = vmatprep.subr.bf16.mxu0 %v2526
      %2629 = vmatpush1.bf16.msra.mxu0 %v2525
      %2630 = vmatprep.subr.bf16.mxu0 %v2530
      %2631 = vmatpush1.bf16.msra.mxu0 %v2529
      %2632 = vmatprep.subr.bf16.mxu0 %v2534
      %2633 = vmatpush1.bf16.msra.mxu0 %v2533
      %2634 = vmatprep.subr.bf16.mxu0 %v2538
      %2635 = vmatpush1.bf16.msra.mxu0 %v2537
      %2636 = vmatprep.subr.bf16.mxu0 %v2542
      %2637 = vmatpush1.bf16.msra.mxu0 %v2541
      %2638 = vmatprep.subr.bf16.mxu0 %v2546
      %2639 = vmatpush1.bf16.msra.mxu0 %v2545
      %2640 = vmatprep.subr.bf16.mxu0 %v2550
      %2641 = vmatpush1.bf16.msra.mxu0 %v2549
      %2642 = vmatprep.subr.bf16.mxu0 %v2554
      %2643 = vmatpush1.bf16.msra.mxu0 %v2553
      %2644 = vmatprep.subr.bf16.mxu0 %v2558
      %2645 = vmatpush1.bf16.msra.mxu0 %v2557
      %2646 = vmatprep.subr.bf16.mxu0 %v2562
      %2647 = vmatpush1.bf16.msra.mxu0 %v2561
      %2648 = vmatprep.subr.bf16.mxu0 0
      %2649 = vmatpush1.bf16.msra.mxu0 0
      %2650 = vmatprep.subr.bf16.mxu0 0
      %2651 = vmatpush1.bf16.msra.mxu0 0
      %2652 = vmatprep.mubr.bf16.mxu0 %v2577
      %2653 = vmatmul.mubr.bf16.gmra.mrb[0].mxu0 %v2572
      %v2654 = vpop.f32.mrb[0].mxu0
      %v2655 = vadd.f32 %v2567, %v2654
      %v2656 = vpop.f32.mrb[0].mxu0
      %v2657 = vadd.f32 %v2567, %v2656
      %v2658 = vpop.f32.mrb[0].mxu0
      %v2659 = vpop.f32.mrb[0].mxu0
      %2660 = vdwg.mxu0
      %2661 = vst [vmem:[%s298] sm:$0xff] %v2614
      %2662 = vst [vmem:[%s298 + $0x8] sm:$0xff] %v2616
      %2663 = vst [vmem:[%s298 + $0x10] sm:$0xff] %v2655
      %2664 = vst [vmem:[%s298 + $0x18] sm:$0xff] %v2657
      %p2665 = scmp.lt.s32.totalorder %s18, 1
      %s2666 = scalar_select %p2665, %s18, 1
      %s2667 = smul.addr %s2666, 4
      %s2668 = smul.addr %s2667, 8
      %s2669 = scalar_lea.vmem %s7, %s2668
      // Predicated region
      $region49: #{resblock3d_forward.3} parent=47 // pred_check
        %p2670 = pneg %p193
      $region50: #{resblock3d_forward.3} parent=47 // pred_check_branch
        %2672 = sbr.rel (%p2670) target = $region52
      $region51: #{resblock3d_forward.3} parent=47 // pred_region
        _
      $region52: #{resblock3d_forward.3} parent=47 // pred_fallthru
        _
    $region48: #{resblock3d_forward.3} parent=5 // pred_fallthru
      _
    %p2673 = scmp.le.s32.totalorder 2, %s13
    // Predicated region
    $region53: #{resblock3d_forward.3} parent=5 // pred_check
      %p2674 = pneg %p2673
    $region54: #{resblock3d_forward.3} parent=5 // pred_check_branch
      %2676 = sbr.rel (%p2674) target = $region56
    $region55: #{resblock3d_forward.3} parent=5 // pred_region
      %s2677 = ssub.s32 %s13, 2
      // Predicated region
      $region57: #{resblock3d_forward.3} parent=55 // pred_check
        %p2678 = pneg %p199
      $region58: #{resblock3d_forward.3} parent=55 // pred_check_branch
        %2680 = sbr.rel (%p2678) target = $region60
      $region59: #{resblock3d_forward.3} parent=55 // pred_region
        %p2681 = scmp.lt.s32.totalorder %s19, 1
        %s2682 = scalar_select %p2681, %s19, 1
        %s2683 = smul.addr %s2682, 4
        %s2684 = smul.addr %s2683, 8
        %s2685 = scalar_lea.vmem %s7, %s2684
      $region60: #{resblock3d_forward.3} parent=55 // pred_fallthru
        _
    $region56: #{resblock3d_forward.3} parent=5 // pred_fallthru
      _
  $region6: #{resblock3d_forward.3} parent=0 // loop_footer
    %s17 = sadd.s32 1, %s13
  $region7: #{resblock3d_forward.3} parent=0 // loop_footer_branch
    %12 = sbr.rel target = $region3
  $region8: #{resblock3d_forward.3} parent=0 // loop_exit
    _

</llo_original>
